<compile_context>
chip_gen: v6e
topology: v6e:2x2x1
jax: 0.10.0
libtpu: 0.0.40
codegen_flags: <defaults>
</compile_context>

<pallas_src>
import functools
import math

import jax
import jax.numpy as jnp
from jax.experimental import pallas as pl
from jax.experimental.pallas import tpu as pltpu


def attention_qnet_kernel(xT_ref, wfe_ref, wqkv_ref, w1_ref, w2_ref, b_ref,
                          out_ref, *, window, hidden, fc_hidden):
    T, H, HF = window, hidden, fc_hidden
    TH = T * H
    A_pad = out_ref.shape[0]

    # Bias slab (one column, batch-broadcast along lanes).
    bfe = b_ref[0:TH, :]                                   # (T*H, 1)
    bqkv = b_ref[TH:4 * TH, :]                             # (3*T*H, 1)
    b1 = b_ref[4 * TH:4 * TH + HF, :]                      # (HF, 1)
    b2 = b_ref[4 * TH + HF:4 * TH + HF + A_pad, :]         # (A_pad, 1)

    # Feature extractor: blockdiag(wfe^T) (T*H, T*F) @ x^T (T*F, BB) -> (T*H, BB).
    x = xT_ref[...]                                        # bf16, batch on lanes
    h = jnp.dot(wfe_ref[...], x, preferred_element_type=jnp.float32)
    h = jnp.maximum(h + bfe, 0.0)

    # Fused Q/K/V: [blockdiag(wq^T*s); blockdiag(wk^T); blockdiag(wv^T)] @ h.
    qkv = jnp.dot(wqkv_ref[...], h.astype(jnp.bfloat16),
                  preferred_element_type=jnp.float32)      # (3*T*H, BB)
    qkv = qkv + bqkv
    BB = qkv.shape[-1]
    q3 = qkv[0:TH].reshape(T, H, BB)                       # 1/sqrt(32) pre-folded
    k3 = qkv[TH:2 * TH].reshape(T, H, BB)
    v3 = qkv[2 * TH:3 * TH].reshape(T, H, BB)

    # Attention with batch on lanes: VPU multiplies + sublane reductions,
    # exp/reciprocal on the EUP.  mean_t(attn @ v) == (mean_t attn) @ v, so only
    # the t-pooled attention row sum is carried (1/T is folded into w1).
    pa = jnp.zeros((T, BB), jnp.float32)
    for t in range(T):                                     # static unroll, T = 8
        s_t = jnp.sum(q3[t][None, :, :] * k3, axis=1)      # (T, BB) scores row t
        m_t = jnp.max(s_t, axis=0, keepdims=True)          # (1, BB)
        e_t = jnp.exp(s_t - m_t)
        z_t = jnp.sum(e_t, axis=0, keepdims=True)
        pa = pa + e_t * pl.reciprocal(z_t, approx=True)

    pooled = jnp.sum(pa[:, None, :] * v3, axis=0)          # (H, BB) = T * mean-pool

    # fc head: (HF,H)@(H,BB) -> ReLU -> (A_pad,HF)@(HF,BB); lane-dense store.
    hid = jnp.dot(w1_ref[...], pooled.astype(jnp.bfloat16),
                  preferred_element_type=jnp.float32)
    hid = jnp.maximum(hid + b1, 0.0)
    out = jnp.dot(w2_ref[...], hid.astype(jnp.bfloat16),
                  preferred_element_type=jnp.float32) + b2
    out_ref[...] = out.astype(out_ref.dtype)


def attention_qnetwork_forward(state, params, *, window_size, feature_dim,
                               block_batch=128):
    (wfe, bfe), (wq, bq), (wk, bk), (wv, bv), (w1, b1), (w2, b2) = params
    x = state.reshape(-1, window_size, feature_dim).astype(jnp.float32)  # (B,T,F)
    B, T, F = x.shape
    H = wfe.shape[1]           # 32
    HF = w1.shape[1]           # 16
    A = w2.shape[1]
    A_pad = max(8, ((A + 7) // 8) * 8)

    # Batch block lives on the lane axis -> must be a multiple of 128.
    BB = max(128, ((int(block_batch) + 127) // 128) * 128)
    B_pad = ((B + BB - 1) // BB) * BB

    # ---- parameter packing (transposed, block-diagonal, bf16) ----
    scale = 1.0 / math.sqrt(32.0)                          # matches np.sqrt(32)
    eye = jnp.eye(T, dtype=jnp.float32)
    wfe_big = jnp.kron(eye, wfe.T)                         # (T*H, T*F)
    wqkv_big = jnp.concatenate([jnp.kron(eye, (wq * scale).T),
                                jnp.kron(eye, wk.T),
                                jnp.kron(eye, wv.T)], axis=0)   # (3*T*H, T*H)
    w1t = (w1 / T).T                                       # (HF, H), mean folded
    w2t = jnp.zeros((A_pad, HF), jnp.float32).at[:A].set(w2.T)

    bias = jnp.concatenate([
        jnp.tile(bfe, T),
        jnp.tile(bq * scale, T), jnp.tile(bk, T), jnp.tile(bv, T),
        b1,
        jnp.zeros((A_pad,), jnp.float32).at[:A].set(b2),
    ]).reshape(-1, 1).astype(jnp.float32)                  # (4*T*H + HF + A_pad, 1)

    wfe_big = wfe_big.astype(jnp.bfloat16)
    wqkv_big = wqkv_big.astype(jnp.bfloat16)
    w1t = w1t.astype(jnp.bfloat16)
    w2t = w2t.astype(jnp.bfloat16)

    # Lane-dense transposed activations: (T*F, B_pad) bf16, batch on lanes.
    xT = jnp.zeros((T * F, B_pad), jnp.bfloat16).at[:, :B].set(
        x.reshape(B, T * F).T.astype(jnp.bfloat16))

    kernel = functools.partial(attention_qnet_kernel,
                               window=T, hidden=H, fc_hidden=HF)

    flops = 2 * B_pad * (T * (F * H + H * 3 * H + 2 * T * H) + H * HF + HF * A_pad)
    transcendentals = B_pad * T * (T + 1)                  # exp + reciprocal
    bytes_accessed = (xT.size * 2 + wfe_big.size * 2 + wqkv_big.size * 2
                      + w1t.size * 2 + w2t.size * 2 + bias.size * 4
                      + A_pad * B_pad * 4)

    out = pl.pallas_call(
        kernel,
        out_shape=jax.ShapeDtypeStruct((A_pad, B_pad), jnp.float32),
        grid_spec=pltpu.PrefetchScalarGridSpec(
            num_scalar_prefetch=0,
            grid=(B_pad // BB,),
            in_specs=[
                pl.BlockSpec((T * F, BB), lambda b: (0, b)),     # x^T, lane-dense
                pl.BlockSpec(wfe_big.shape, lambda b: (0, 0)),   # blockdiag fe
                pl.BlockSpec(wqkv_big.shape, lambda b: (0, 0)),  # blockdiag qkv
                pl.BlockSpec(w1t.shape, lambda b: (0, 0)),       # fc[0]^T
                pl.BlockSpec(w2t.shape, lambda b: (0, 0)),       # fc[2]^T padded
                pl.BlockSpec(bias.shape, lambda b: (0, 0)),      # packed bias col
            ],
            out_specs=pl.BlockSpec((A_pad, BB), lambda b: (0, b)),
        ),
        compiler_params=pltpu.CompilerParams(
            dimension_semantics=("parallel",),
            vmem_limit_bytes=32 * 1024 * 1024),
        cost_estimate=pl.CostEstimate(flops=flops,
                                      transcendentals=transcendentals,
                                      bytes_accessed=bytes_accessed),
    )(xT, wfe_big, wqkv_big, w1t, w2t, bias)
    return out[:A, :B].T                                   # (B, A)


def reference_forward(state, params, *, window_size, feature_dim):
    (wfe, bfe), (wq, bq), (wk, bk), (wv, bv), (w1, b1), (w2, b2) = params
    x = state.reshape(-1, window_size, feature_dim)
    h = jax.nn.relu(x @ wfe + bfe)
    q, k, v = h @ wq + bq, h @ wk + bk, h @ wv + bv
    scores = jnp.einsum("btd,bsd->bts", q, k) / math.sqrt(32.0)
    attn = jax.nn.softmax(scores, axis=-1)
    ctx = jnp.einsum("bts,bsd->btd", attn, v)
    pooled = jnp.mean(ctx, axis=1)
    hid = jax.nn.relu(pooled @ w1 + b1)
    return hid @ w2 + b2


def _linear_params(key, fan_in, fan_out):
    # Mimics PyTorch nn.Linear default init: U(-1/sqrt(fan_in), +1/sqrt(fan_in)).
    kw, kb = jax.random.split(key)
    bound = 1.0 / math.sqrt(fan_in)
    w = jax.random.uniform(kw, (fan_in, fan_out), jnp.float32, -bound, bound)
    b = jax.random.uniform(kb, (fan_out,), jnp.float32, -bound, bound)
    return w, b


def init_params(seed, feature_dim, action_size):
    keys = jax.random.split(jax.random.PRNGKey(seed), 6)
    return (
        _linear_params(keys[0], feature_dim, 32),   # feature_extractor
        _linear_params(keys[1], 32, 32),            # query
        _linear_params(keys[2], 32, 32),            # key
        _linear_params(keys[3], 32, 32),            # value
        _linear_params(keys[4], 32, 16),            # fc[0]
        _linear_params(keys[5], 16, action_size),   # fc[2]
    )


if __name__ == "__main__":
    batch = 2
    window_size = 8
    feature_dim = 32
    action_size = 4
    state_size = window_size * feature_dim

    params = init_params(seed=42, feature_dim=feature_dim, action_size=action_size)
    state = jax.random.normal(jax.random.PRNGKey(0), (batch, state_size), jnp.float32)

    out = attention_qnetwork_forward(
        state, params, window_size=window_size, feature_dim=feature_dim)
    out = jax.block_until_ready(out)
    assert out.shape == (batch, action_size), out.shape

    ref = reference_forward(
        state, params, window_size=window_size, feature_dim=feature_dim)
    # bf16 MXU inputs (f32 accumulation) + approx reciprocal -> tolerance 2e-2.
    assert jnp.allclose(out, ref, rtol=2e-2, atol=2e-2), \
        float(jnp.max(jnp.abs(out - ref)))

    print("KERNEL_OK")
</pallas_src>

<mosaic_0001>
module attributes {stable_mosaic.version = 11 : i64} {
  func.func @attention_qnet_kernel(%arg0: i32, %arg1: memref<256x128xbf16, #tpu.memory_space<vmem>>, %arg2: memref<256x256xbf16, #tpu.memory_space<vmem>>, %arg3: memref<768x256xbf16, #tpu.memory_space<vmem>>, %arg4: memref<16x32xbf16, #tpu.memory_space<vmem>>, %arg5: memref<8x16xbf16, #tpu.memory_space<vmem>>, %arg6: memref<1048x1xf32, #tpu.memory_space<vmem>>, %arg7: memref<8x128xf32, #tpu.memory_space<vmem>>) attributes {dimension_semantics = [#tpu.dimension_semantics<parallel>], iteration_bounds = array<i64: 1>, scalar_prefetch = 0 : i64, scratch_operands = 0 : i64, tpu.core_type = #tpu.core_type<tc>, window_params = [{transform_indices = @transform_0, window_bounds = array<i64: 256, 128>}, {pipeline_mode = #tpu.pipeline_mode<synchronous>, transform_indices = @transform_1, window_bounds = array<i64: 256, 256>}, {pipeline_mode = #tpu.pipeline_mode<synchronous>, transform_indices = @transform_2, window_bounds = array<i64: 768, 256>}, {pipeline_mode = #tpu.pipeline_mode<synchronous>, transform_indices = @transform_3, window_bounds = array<i64: 16, 32>}, {pipeline_mode = #tpu.pipeline_mode<synchronous>, transform_indices = @transform_4, window_bounds = array<i64: 8, 16>}, {pipeline_mode = #tpu.pipeline_mode<synchronous>, transform_indices = @transform_5, window_bounds = array<i64: 1048, 1>}, {transform_indices = @transform_6, window_bounds = array<i64: 8, 128>}]} {
    %c0 = arith.constant 0 : index
    %c0_0 = arith.constant 0 : index
    %0 = vector.load %arg6[%c0, %c0_0] : memref<1048x1xf32, #tpu.memory_space<vmem>>, vector<256x1xf32>
    %c256 = arith.constant 256 : index
    %c0_1 = arith.constant 0 : index
    %1 = vector.load %arg6[%c256, %c0_1] : memref<1048x1xf32, #tpu.memory_space<vmem>>, vector<768x1xf32>
    %c1024 = arith.constant 1024 : index
    %c0_2 = arith.constant 0 : index
    %2 = vector.load %arg6[%c1024, %c0_2] : memref<1048x1xf32, #tpu.memory_space<vmem>>, vector<16x1xf32>
    %c1040 = arith.constant 1040 : index
    %c0_3 = arith.constant 0 : index
    %3 = vector.load %arg6[%c1040, %c0_3] : memref<1048x1xf32, #tpu.memory_space<vmem>>, vector<8x1xf32>
    %c0_4 = arith.constant 0 : index
    %c0_5 = arith.constant 0 : index
    %4 = vector.load %arg1[%c0_4, %c0_5] : memref<256x128xbf16, #tpu.memory_space<vmem>>, vector<256x128xbf16>
    %c0_6 = arith.constant 0 : index
    %c0_7 = arith.constant 0 : index
    %5 = vector.load %arg2[%c0_6, %c0_7] : memref<256x256xbf16, #tpu.memory_space<vmem>>, vector<256x256xbf16>
    %cst = arith.constant dense<0.000000e+00> : vector<256x128xf32>
    %6 = tpu.matmul %5, %4, %cst {dimension_numbers = #tpu.dot_dimension_numbers<[1], [0], [0], [1], [0, 0, 1, 1], [], []>} : vector<256x256xbf16>, vector<256x128xbf16>, vector<256x128xf32> -> vector<256x128xf32>
    %7 = vector.broadcast %0 : vector<256x1xf32> to vector<256x128xf32>
    %8 = arith.addf %6, %7 : vector<256x128xf32>
    %cst_8 = arith.constant 0.000000e+00 : f32
    %9 = vector.broadcast %cst_8 : f32 to vector<256x128xf32>
    %10 = arith.maximumf %8, %9 : vector<256x128xf32>
    %c0_9 = arith.constant 0 : index
    %c0_10 = arith.constant 0 : index
    %11 = vector.load %arg3[%c0_9, %c0_10] : memref<768x256xbf16, #tpu.memory_space<vmem>>, vector<768x256xbf16>
    %12 = arith.truncf %10 : vector<256x128xf32> to vector<256x128xbf16>
    %cst_11 = arith.constant dense<0.000000e+00> : vector<768x128xf32>
    %13 = tpu.matmul %11, %12, %cst_11 {dimension_numbers = #tpu.dot_dimension_numbers<[1], [0], [0], [1], [0, 0, 1, 1], [], []>} : vector<768x256xbf16>, vector<256x128xbf16>, vector<768x128xf32> -> vector<768x128xf32>
    %14 = vector.broadcast %1 : vector<768x1xf32> to vector<768x128xf32>
    %15 = arith.addf %13, %14 : vector<768x128xf32>
    %16 = vector.extract_strided_slice %15 {offsets = [0, 0], sizes = [256, 128], strides = [1, 1]} : vector<768x128xf32> to vector<256x128xf32>
    %17 = vector.shape_cast %16 : vector<256x128xf32> to vector<8x32x128xf32>
    %18 = vector.extract_strided_slice %15 {offsets = [256, 0], sizes = [256, 128], strides = [1, 1]} : vector<768x128xf32> to vector<256x128xf32>
    %19 = vector.shape_cast %18 : vector<256x128xf32> to vector<8x32x128xf32>
    %20 = vector.extract_strided_slice %15 {offsets = [512, 0], sizes = [256, 128], strides = [1, 1]} : vector<768x128xf32> to vector<256x128xf32>
    %21 = vector.shape_cast %20 : vector<256x128xf32> to vector<8x32x128xf32>
    %cst_12 = arith.constant 0.000000e+00 : f32
    %22 = vector.broadcast %cst_12 : f32 to vector<8x128xf32>
    %23 = vector.extract_strided_slice %17 {offsets = [0, 0, 0], sizes = [1, 32, 128], strides = [1, 1, 1]} : vector<8x32x128xf32> to vector<1x32x128xf32>
    %24 = vector.shape_cast %23 : vector<1x32x128xf32> to vector<32x128xf32>
    %25 = vector.shape_cast %24 : vector<32x128xf32> to vector<1x32x128xf32>
    %26 = vector.broadcast %25 : vector<1x32x128xf32> to vector<8x32x128xf32>
    %27 = arith.mulf %26, %19 : vector<8x32x128xf32>
    %cst_13 = arith.constant dense<0.000000e+00> : vector<8x128xf32>
    %28 = vector.multi_reduction <add>, %27, %cst_13 [1] : vector<8x32x128xf32> to vector<8x128xf32>
    %cst_14 = arith.constant dense<0xFF800000> : vector<128xf32>
    %29 = vector.multi_reduction <maximumf>, %28, %cst_14 [0] : vector<8x128xf32> to vector<128xf32>
    %30 = vector.shape_cast %29 : vector<128xf32> to vector<1x128xf32>
    %31 = vector.broadcast %30 : vector<1x128xf32> to vector<8x128xf32>
    %32 = arith.subf %28, %31 : vector<8x128xf32>
    %33 = math.exp %32 : vector<8x128xf32>
    %cst_15 = arith.constant dense<0.000000e+00> : vector<128xf32>
    %34 = vector.multi_reduction <add>, %33, %cst_15 [0] : vector<8x128xf32> to vector<128xf32>
    %35 = vector.shape_cast %34 : vector<128xf32> to vector<1x128xf32>
    %36 = tpu.reciprocal %35 {approx = true} : vector<1x128xf32> -> vector<1x128xf32>
    %37 = vector.broadcast %36 : vector<1x128xf32> to vector<8x128xf32>
    %38 = arith.mulf %33, %37 : vector<8x128xf32>
    %39 = arith.addf %22, %38 : vector<8x128xf32>
    %40 = vector.extract_strided_slice %17 {offsets = [1, 0, 0], sizes = [1, 32, 128], strides = [1, 1, 1]} : vector<8x32x128xf32> to vector<1x32x128xf32>
    %41 = vector.shape_cast %40 : vector<1x32x128xf32> to vector<32x128xf32>
    %42 = vector.shape_cast %41 : vector<32x128xf32> to vector<1x32x128xf32>
    %43 = vector.broadcast %42 : vector<1x32x128xf32> to vector<8x32x128xf32>
    %44 = arith.mulf %43, %19 : vector<8x32x128xf32>
    %cst_16 = arith.constant dense<0.000000e+00> : vector<8x128xf32>
    %45 = vector.multi_reduction <add>, %44, %cst_16 [1] : vector<8x32x128xf32> to vector<8x128xf32>
    %cst_17 = arith.constant dense<0xFF800000> : vector<128xf32>
    %46 = vector.multi_reduction <maximumf>, %45, %cst_17 [0] : vector<8x128xf32> to vector<128xf32>
    %47 = vector.shape_cast %46 : vector<128xf32> to vector<1x128xf32>
    %48 = vector.broadcast %47 : vector<1x128xf32> to vector<8x128xf32>
    %49 = arith.subf %45, %48 : vector<8x128xf32>
    %50 = math.exp %49 : vector<8x128xf32>
    %cst_18 = arith.constant dense<0.000000e+00> : vector<128xf32>
    %51 = vector.multi_reduction <add>, %50, %cst_18 [0] : vector<8x128xf32> to vector<128xf32>
    %52 = vector.shape_cast %51 : vector<128xf32> to vector<1x128xf32>
    %53 = tpu.reciprocal %52 {approx = true} : vector<1x128xf32> -> vector<1x128xf32>
    %54 = vector.broadcast %53 : vector<1x128xf32> to vector<8x128xf32>
    %55 = arith.mulf %50, %54 : vector<8x128xf32>
    %56 = arith.addf %39, %55 : vector<8x128xf32>
    %57 = vector.extract_strided_slice %17 {offsets = [2, 0, 0], sizes = [1, 32, 128], strides = [1, 1, 1]} : vector<8x32x128xf32> to vector<1x32x128xf32>
    %58 = vector.shape_cast %57 : vector<1x32x128xf32> to vector<32x128xf32>
    %59 = vector.shape_cast %58 : vector<32x128xf32> to vector<1x32x128xf32>
    %60 = vector.broadcast %59 : vector<1x32x128xf32> to vector<8x32x128xf32>
    %61 = arith.mulf %60, %19 : vector<8x32x128xf32>
    %cst_19 = arith.constant dense<0.000000e+00> : vector<8x128xf32>
    %62 = vector.multi_reduction <add>, %61, %cst_19 [1] : vector<8x32x128xf32> to vector<8x128xf32>
    %cst_20 = arith.constant dense<0xFF800000> : vector<128xf32>
    %63 = vector.multi_reduction <maximumf>, %62, %cst_20 [0] : vector<8x128xf32> to vector<128xf32>
    %64 = vector.shape_cast %63 : vector<128xf32> to vector<1x128xf32>
    %65 = vector.broadcast %64 : vector<1x128xf32> to vector<8x128xf32>
    %66 = arith.subf %62, %65 : vector<8x128xf32>
    %67 = math.exp %66 : vector<8x128xf32>
    %cst_21 = arith.constant dense<0.000000e+00> : vector<128xf32>
    %68 = vector.multi_reduction <add>, %67, %cst_21 [0] : vector<8x128xf32> to vector<128xf32>
    %69 = vector.shape_cast %68 : vector<128xf32> to vector<1x128xf32>
    %70 = tpu.reciprocal %69 {approx = true} : vector<1x128xf32> -> vector<1x128xf32>
    %71 = vector.broadcast %70 : vector<1x128xf32> to vector<8x128xf32>
    %72 = arith.mulf %67, %71 : vector<8x128xf32>
    %73 = arith.addf %56, %72 : vector<8x128xf32>
    %74 = vector.extract_strided_slice %17 {offsets = [3, 0, 0], sizes = [1, 32, 128], strides = [1, 1, 1]} : vector<8x32x128xf32> to vector<1x32x128xf32>
    %75 = vector.shape_cast %74 : vector<1x32x128xf32> to vector<32x128xf32>
    %76 = vector.shape_cast %75 : vector<32x128xf32> to vector<1x32x128xf32>
    %77 = vector.broadcast %76 : vector<1x32x128xf32> to vector<8x32x128xf32>
    %78 = arith.mulf %77, %19 : vector<8x32x128xf32>
    %cst_22 = arith.constant dense<0.000000e+00> : vector<8x128xf32>
    %79 = vector.multi_reduction <add>, %78, %cst_22 [1] : vector<8x32x128xf32> to vector<8x128xf32>
    %cst_23 = arith.constant dense<0xFF800000> : vector<128xf32>
    %80 = vector.multi_reduction <maximumf>, %79, %cst_23 [0] : vector<8x128xf32> to vector<128xf32>
    %81 = vector.shape_cast %80 : vector<128xf32> to vector<1x128xf32>
    %82 = vector.broadcast %81 : vector<1x128xf32> to vector<8x128xf32>
    %83 = arith.subf %79, %82 : vector<8x128xf32>
    %84 = math.exp %83 : vector<8x128xf32>
    %cst_24 = arith.constant dense<0.000000e+00> : vector<128xf32>
    %85 = vector.multi_reduction <add>, %84, %cst_24 [0] : vector<8x128xf32> to vector<128xf32>
    %86 = vector.shape_cast %85 : vector<128xf32> to vector<1x128xf32>
    %87 = tpu.reciprocal %86 {approx = true} : vector<1x128xf32> -> vector<1x128xf32>
    %88 = vector.broadcast %87 : vector<1x128xf32> to vector<8x128xf32>
    %89 = arith.mulf %84, %88 : vector<8x128xf32>
    %90 = arith.addf %73, %89 : vector<8x128xf32>
    %91 = vector.extract_strided_slice %17 {offsets = [4, 0, 0], sizes = [1, 32, 128], strides = [1, 1, 1]} : vector<8x32x128xf32> to vector<1x32x128xf32>
    %92 = vector.shape_cast %91 : vector<1x32x128xf32> to vector<32x128xf32>
    %93 = vector.shape_cast %92 : vector<32x128xf32> to vector<1x32x128xf32>
    %94 = vector.broadcast %93 : vector<1x32x128xf32> to vector<8x32x128xf32>
    %95 = arith.mulf %94, %19 : vector<8x32x128xf32>
    %cst_25 = arith.constant dense<0.000000e+00> : vector<8x128xf32>
    %96 = vector.multi_reduction <add>, %95, %cst_25 [1] : vector<8x32x128xf32> to vector<8x128xf32>
    %cst_26 = arith.constant dense<0xFF800000> : vector<128xf32>
    %97 = vector.multi_reduction <maximumf>, %96, %cst_26 [0] : vector<8x128xf32> to vector<128xf32>
    %98 = vector.shape_cast %97 : vector<128xf32> to vector<1x128xf32>
    %99 = vector.broadcast %98 : vector<1x128xf32> to vector<8x128xf32>
    %100 = arith.subf %96, %99 : vector<8x128xf32>
    %101 = math.exp %100 : vector<8x128xf32>
    %cst_27 = arith.constant dense<0.000000e+00> : vector<128xf32>
    %102 = vector.multi_reduction <add>, %101, %cst_27 [0] : vector<8x128xf32> to vector<128xf32>
    %103 = vector.shape_cast %102 : vector<128xf32> to vector<1x128xf32>
    %104 = tpu.reciprocal %103 {approx = true} : vector<1x128xf32> -> vector<1x128xf32>
    %105 = vector.broadcast %104 : vector<1x128xf32> to vector<8x128xf32>
    %106 = arith.mulf %101, %105 : vector<8x128xf32>
    %107 = arith.addf %90, %106 : vector<8x128xf32>
    %108 = vector.extract_strided_slice %17 {offsets = [5, 0, 0], sizes = [1, 32, 128], strides = [1, 1, 1]} : vector<8x32x128xf32> to vector<1x32x128xf32>
    %109 = vector.shape_cast %108 : vector<1x32x128xf32> to vector<32x128xf32>
    %110 = vector.shape_cast %109 : vector<32x128xf32> to vector<1x32x128xf32>
    %111 = vector.broadcast %110 : vector<1x32x128xf32> to vector<8x32x128xf32>
    %112 = arith.mulf %111, %19 : vector<8x32x128xf32>
    %cst_28 = arith.constant dense<0.000000e+00> : vector<8x128xf32>
    %113 = vector.multi_reduction <add>, %112, %cst_28 [1] : vector<8x32x128xf32> to vector<8x128xf32>
    %cst_29 = arith.constant dense<0xFF800000> : vector<128xf32>
    %114 = vector.multi_reduction <maximumf>, %113, %cst_29 [0] : vector<8x128xf32> to vector<128xf32>
    %115 = vector.shape_cast %114 : vector<128xf32> to vector<1x128xf32>
    %116 = vector.broadcast %115 : vector<1x128xf32> to vector<8x128xf32>
    %117 = arith.subf %113, %116 : vector<8x128xf32>
    %118 = math.exp %117 : vector<8x128xf32>
    %cst_30 = arith.constant dense<0.000000e+00> : vector<128xf32>
    %119 = vector.multi_reduction <add>, %118, %cst_30 [0] : vector<8x128xf32> to vector<128xf32>
    %120 = vector.shape_cast %119 : vector<128xf32> to vector<1x128xf32>
    %121 = tpu.reciprocal %120 {approx = true} : vector<1x128xf32> -> vector<1x128xf32>
    %122 = vector.broadcast %121 : vector<1x128xf32> to vector<8x128xf32>
    %123 = arith.mulf %118, %122 : vector<8x128xf32>
    %124 = arith.addf %107, %123 : vector<8x128xf32>
    %125 = vector.extract_strided_slice %17 {offsets = [6, 0, 0], sizes = [1, 32, 128], strides = [1, 1, 1]} : vector<8x32x128xf32> to vector<1x32x128xf32>
    %126 = vector.shape_cast %125 : vector<1x32x128xf32> to vector<32x128xf32>
    %127 = vector.shape_cast %126 : vector<32x128xf32> to vector<1x32x128xf32>
    %128 = vector.broadcast %127 : vector<1x32x128xf32> to vector<8x32x128xf32>
    %129 = arith.mulf %128, %19 : vector<8x32x128xf32>
    %cst_31 = arith.constant dense<0.000000e+00> : vector<8x128xf32>
    %130 = vector.multi_reduction <add>, %129, %cst_31 [1] : vector<8x32x128xf32> to vector<8x128xf32>
    %cst_32 = arith.constant dense<0xFF800000> : vector<128xf32>
    %131 = vector.multi_reduction <maximumf>, %130, %cst_32 [0] : vector<8x128xf32> to vector<128xf32>
    %132 = vector.shape_cast %131 : vector<128xf32> to vector<1x128xf32>
    %133 = vector.broadcast %132 : vector<1x128xf32> to vector<8x128xf32>
    %134 = arith.subf %130, %133 : vector<8x128xf32>
    %135 = math.exp %134 : vector<8x128xf32>
    %cst_33 = arith.constant dense<0.000000e+00> : vector<128xf32>
    %136 = vector.multi_reduction <add>, %135, %cst_33 [0] : vector<8x128xf32> to vector<128xf32>
    %137 = vector.shape_cast %136 : vector<128xf32> to vector<1x128xf32>
    %138 = tpu.reciprocal %137 {approx = true} : vector<1x128xf32> -> vector<1x128xf32>
    %139 = vector.broadcast %138 : vector<1x128xf32> to vector<8x128xf32>
    %140 = arith.mulf %135, %139 : vector<8x128xf32>
    %141 = arith.addf %124, %140 : vector<8x128xf32>
    %142 = vector.extract_strided_slice %17 {offsets = [7, 0, 0], sizes = [1, 32, 128], strides = [1, 1, 1]} : vector<8x32x128xf32> to vector<1x32x128xf32>
    %143 = vector.shape_cast %142 : vector<1x32x128xf32> to vector<32x128xf32>
    %144 = vector.shape_cast %143 : vector<32x128xf32> to vector<1x32x128xf32>
    %145 = vector.broadcast %144 : vector<1x32x128xf32> to vector<8x32x128xf32>
    %146 = arith.mulf %145, %19 : vector<8x32x128xf32>
    %cst_34 = arith.constant dense<0.000000e+00> : vector<8x128xf32>
    %147 = vector.multi_reduction <add>, %146, %cst_34 [1] : vector<8x32x128xf32> to vector<8x128xf32>
    %cst_35 = arith.constant dense<0xFF800000> : vector<128xf32>
    %148 = vector.multi_reduction <maximumf>, %147, %cst_35 [0] : vector<8x128xf32> to vector<128xf32>
    %149 = vector.shape_cast %148 : vector<128xf32> to vector<1x128xf32>
    %150 = vector.broadcast %149 : vector<1x128xf32> to vector<8x128xf32>
    %151 = arith.subf %147, %150 : vector<8x128xf32>
    %152 = math.exp %151 : vector<8x128xf32>
    %cst_36 = arith.constant dense<0.000000e+00> : vector<128xf32>
    %153 = vector.multi_reduction <add>, %152, %cst_36 [0] : vector<8x128xf32> to vector<128xf32>
    %154 = vector.shape_cast %153 : vector<128xf32> to vector<1x128xf32>
    %155 = tpu.reciprocal %154 {approx = true} : vector<1x128xf32> -> vector<1x128xf32>
    %156 = vector.broadcast %155 : vector<1x128xf32> to vector<8x128xf32>
    %157 = arith.mulf %152, %156 : vector<8x128xf32>
    %158 = arith.addf %141, %157 : vector<8x128xf32>
    %159 = vector.shape_cast %158 : vector<8x128xf32> to vector<8x1x128xf32>
    %160 = vector.broadcast %159 : vector<8x1x128xf32> to vector<8x32x128xf32>
    %161 = arith.mulf %160, %21 : vector<8x32x128xf32>
    %cst_37 = arith.constant dense<0.000000e+00> : vector<32x128xf32>
    %162 = vector.multi_reduction <add>, %161, %cst_37 [0] : vector<8x32x128xf32> to vector<32x128xf32>
    %c0_38 = arith.constant 0 : index
    %c0_39 = arith.constant 0 : index
    %163 = vector.load %arg4[%c0_38, %c0_39] : memref<16x32xbf16, #tpu.memory_space<vmem>>, vector<16x32xbf16>
    %164 = arith.truncf %162 : vector<32x128xf32> to vector<32x128xbf16>
    %cst_40 = arith.constant dense<0.000000e+00> : vector<16x128xf32>
    %165 = tpu.matmul %163, %164, %cst_40 {dimension_numbers = #tpu.dot_dimension_numbers<[1], [0], [0], [1], [0, 0, 1, 1], [], []>} : vector<16x32xbf16>, vector<32x128xbf16>, vector<16x128xf32> -> vector<16x128xf32>
    %166 = vector.broadcast %2 : vector<16x1xf32> to vector<16x128xf32>
    %167 = arith.addf %165, %166 : vector<16x128xf32>
    %cst_41 = arith.constant 0.000000e+00 : f32
    %168 = vector.broadcast %cst_41 : f32 to vector<16x128xf32>
    %169 = arith.maximumf %167, %168 : vector<16x128xf32>
    %c0_42 = arith.constant 0 : index
    %c0_43 = arith.constant 0 : index
    %170 = vector.load %arg5[%c0_42, %c0_43] : memref<8x16xbf16, #tpu.memory_space<vmem>>, vector<8x16xbf16>
    %171 = arith.truncf %169 : vector<16x128xf32> to vector<16x128xbf16>
    %cst_44 = arith.constant dense<0.000000e+00> : vector<8x128xf32>
    %172 = tpu.matmul %170, %171, %cst_44 {dimension_numbers = #tpu.dot_dimension_numbers<[1], [0], [0], [1], [0, 0, 1, 1], [], []>} : vector<8x16xbf16>, vector<16x128xbf16>, vector<8x128xf32> -> vector<8x128xf32>
    %173 = vector.broadcast %3 : vector<8x1xf32> to vector<8x128xf32>
    %174 = arith.addf %172, %173 : vector<8x128xf32>
    %c0_45 = arith.constant 0 : index
    %c0_46 = arith.constant 0 : index
    %175 = vector.load %arg7[%c0_45, %c0_46] : memref<8x128xf32, #tpu.memory_space<vmem>>, vector<8x128xf32>
    tpu.vector_store %arg7[%c0_45, %c0_46], %174 {strides = array<i32>} : memref<8x128xf32, #tpu.memory_space<vmem>>, vector<8x128xf32>,
    return
  }
  func.func @transform_0(%arg0: i32) -> (i32, i32) {
    %c0_i32 = arith.constant 0 : i32
    %c0_i32_0 = arith.constant 0 : i32
    return %c0_i32, %arg0 : i32, i32
  }
  func.func @transform_1(%arg0: i32) -> (i32, i32) {
    %c0_i32 = arith.constant 0 : i32
    %c0_i32_0 = arith.constant 0 : i32
    %c0_i32_1 = arith.constant 0 : i32
    return %c0_i32, %c0_i32_0 : i32, i32
  }
  func.func @transform_2(%arg0: i32) -> (i32, i32) {
    %c0_i32 = arith.constant 0 : i32
    %c0_i32_0 = arith.constant 0 : i32
    %c0_i32_1 = arith.constant 0 : i32
    return %c0_i32, %c0_i32_0 : i32, i32
  }
  func.func @transform_3(%arg0: i32) -> (i32, i32) {
    %c0_i32 = arith.constant 0 : i32
    %c0_i32_0 = arith.constant 0 : i32
    %c0_i32_1 = arith.constant 0 : i32
    return %c0_i32, %c0_i32_0 : i32, i32
  }
  func.func @transform_4(%arg0: i32) -> (i32, i32) {
    %c0_i32 = arith.constant 0 : i32
    %c0_i32_0 = arith.constant 0 : i32
    %c0_i32_1 = arith.constant 0 : i32
    return %c0_i32, %c0_i32_0 : i32, i32
  }
  func.func @transform_5(%arg0: i32) -> (i32, i32) {
    %c0_i32 = arith.constant 0 : i32
    %c0_i32_0 = arith.constant 0 : i32
    %c0_i32_1 = arith.constant 0 : i32
    return %c0_i32, %c0_i32_0 : i32, i32
  }
  func.func @transform_6(%arg0: i32) -> (i32, i32) {
    %c0_i32 = arith.constant 0 : i32
    %c0_i32_0 = arith.constant 0 : i32
    return %c0_i32, %arg0 : i32, i32
  }
}

</mosaic_0001>

<llo_original>
// kernel: tpu_custom_call.1
$region0: #{tpu_custom_call.1}
  #allocation0 [shape = 'u32[]', space=smem, size = 0x4, offset = 0x4, fixed_abs, tag = 'smem constant byte address 0x4 - core index']
  #allocation1 [shape = 'u32[144,128]{1,0:T(1,128)}', space=vmem, size = 0x12000, scoped, tag = 'internal scratch']
  %s0 = inlined_call_operand.hbm [shape: bf16[256,128], index: 0, kind: input, shape index: {}]
  %s1 = inlined_call_operand.vmem [shape: bf16[256,256], index: 1, kind: input, shape index: {}]
  %s2 = inlined_call_operand.vmem [shape: bf16[768,256], index: 2, kind: input, shape index: {}]
  %s3 = inlined_call_operand.vmem [shape: bf16[16,32], index: 3, kind: input, shape index: {}]
  %s4 = inlined_call_operand.vmem [shape: bf16[8,16], index: 4, kind: input, shape index: {}]
  %s5 = inlined_call_operand.vmem [shape: f32[1048,1], index: 5, kind: input, shape index: {}]
  %s6 = inlined_call_operand.hbm [shape: f32[8,128], index: 6, kind: output, shape index: {}]
  %s7 = sld [smem:[#allocation0]]
  $region38: #{tpu_custom_call.1} parent=0
    _
  %s9 = ssub.s32 1, %s7
  %s10 = scalar_select 0, %s9, %s7
  $region1: #{tpu_custom_call.1} parent=0
    #allocation2 [shape = 'u8[65536]{0}', space=vmem, size = 0x10000, scoped, tag = 'input window, operand 0, single buffered']
    #allocation3 [shape = 's32[1]{0}', space=sflag, size = 0x4, scoped, tag = 'scoped memory for tpu_custom_call.1']
    #allocation4 [shape = 's32[1]{0}', space=sflag, size = 0x4, scoped, tag = 'scoped memory for tpu_custom_call.1']
    #allocation5 [shape = 'u8[4096]{0}', space=vmem, size = 0x1000, scoped, tag = 'output window, operand 0, single buffered']
    %11 = vsyncpa [#allocation3], 0
    %12 = vsyncpa [#allocation4], 0
    // Predicated region
    $region2: #{tpu_custom_call.1} parent=1 // pred_check
      _
    $region3: #{tpu_custom_call.1} parent=1 // pred_check_branch
      %14 = sbr.rel (0) target = $region5
    $region4: #{tpu_custom_call.1} parent=1 // pred_region
      %s16 = ssub.s32 2048, 2048
      %17 = vsyncadd [#allocation3], %s16
      %s18 = sshll.u32 [#allocation2], 4
      %s19 = int_to_ptr.vmem [resolvable:$true] %s18
      %24 = dma.hbm_to_vmem [thread:$0]  %s0, 2048, %s19, [#allocation3], 64, 64, 4
    $region5: #{tpu_custom_call.1} parent=1 // pred_fallthru
      _
    // Predicated region
    $region6: #{tpu_custom_call.1} parent=1 // pred_check
      _
    $region7: #{tpu_custom_call.1} parent=1 // pred_check_branch
      %26 = sbr.rel (0) target = $region9
    $region8: #{tpu_custom_call.1} parent=1 // pred_region
      _
    $region9: #{tpu_custom_call.1} parent=1 // pred_fallthru
      _
    // Predicated region
    $region10: #{tpu_custom_call.1} parent=1 // pred_check
      _
    $region11: #{tpu_custom_call.1} parent=1 // pred_check_branch
      %28 = sbr.rel (0) target = $region13
    $region12: #{tpu_custom_call.1} parent=1 // pred_region
      _
    $region13: #{tpu_custom_call.1} parent=1 // pred_fallthru
      _
    // Predicated region
    $region14: #{tpu_custom_call.1} parent=1 // pred_check
      _
    $region15: #{tpu_custom_call.1} parent=1 // pred_check_branch
      %30 = sbr.rel (0) target = $region17
    $region16: #{tpu_custom_call.1} parent=1 // pred_region
      _
    $region17: #{tpu_custom_call.1} parent=1 // pred_fallthru
      _
    // Predicated region
    $region18: #{tpu_custom_call.1} parent=1 // pred_check
      _
    $region19: #{tpu_custom_call.1} parent=1 // pred_check_branch
      %32 = sbr.rel (0) target = $region21
    $region20: #{tpu_custom_call.1} parent=1 // pred_region
      _
    $region21: #{tpu_custom_call.1} parent=1 // pred_fallthru
      _
    // Predicated region
    $region22: #{tpu_custom_call.1} parent=1 // pred_check
      _
    $region23: #{tpu_custom_call.1} parent=1 // pred_check_branch
      %34 = sbr.rel (0) target = $region25
    $region24: #{tpu_custom_call.1} parent=1 // pred_region
      _
    $region25: #{tpu_custom_call.1} parent=1 // pred_fallthru
      _
    // Predicated region
    $region26: #{tpu_custom_call.1} parent=1 // pred_check
      _
    $region27: #{tpu_custom_call.1} parent=1 // pred_check_branch
      %36 = sbr.rel (0) target = $region29
    $region28: #{tpu_custom_call.1} parent=1 // pred_region
      %37 = dma.done [#allocation3], 2048
    $region29: #{tpu_custom_call.1} parent=1 // pred_fallthru
      _
    %v39 = vld [vmem:[%s5] sm:$0xff]
    %v40 = vld [vmem:[%s5 + $0x8] sm:$0xff]
    %v41 = vld [vmem:[%s5 + $0x10] sm:$0xff]
    %v42 = vld [vmem:[%s5 + $0x18] sm:$0xff]
    %v43 = vld [vmem:[%s5 + $0x20] sm:$0xff]
    %v44 = vld [vmem:[%s5 + $0x28] sm:$0xff]
    %v45 = vld [vmem:[%s5 + $0x30] sm:$0xff]
    %v46 = vld [vmem:[%s5 + $0x38] sm:$0xff]
    %v47 = vld [vmem:[%s5 + $0x40] sm:$0xff]
    %v48 = vld [vmem:[%s5 + $0x48] sm:$0xff]
    %v49 = vld [vmem:[%s5 + $0x50] sm:$0xff]
    %v50 = vld [vmem:[%s5 + $0x58] sm:$0xff]
    %v51 = vld [vmem:[%s5 + $0x60] sm:$0xff]
    %v52 = vld [vmem:[%s5 + $0x68] sm:$0xff]
    %v53 = vld [vmem:[%s5 + $0x70] sm:$0xff]
    %v54 = vld [vmem:[%s5 + $0x78] sm:$0xff]
    %v55 = vld [vmem:[%s5 + $0x80] sm:$0xff]
    %v56 = vld [vmem:[%s5 + $0x88] sm:$0xff]
    %v57 = vld [vmem:[%s5 + $0x90] sm:$0xff]
    %v58 = vld [vmem:[%s5 + $0x98] sm:$0xff]
    %v59 = vld [vmem:[%s5 + $0xa0] sm:$0xff]
    %v60 = vld [vmem:[%s5 + $0xa8] sm:$0xff]
    %v61 = vld [vmem:[%s5 + $0xb0] sm:$0xff]
    %v62 = vld [vmem:[%s5 + $0xb8] sm:$0xff]
    %v63 = vld [vmem:[%s5 + $0xc0] sm:$0xff]
    %v64 = vld [vmem:[%s5 + $0xc8] sm:$0xff]
    %v65 = vld [vmem:[%s5 + $0xd0] sm:$0xff]
    %v66 = vld [vmem:[%s5 + $0xd8] sm:$0xff]
    %v67 = vld [vmem:[%s5 + $0xe0] sm:$0xff]
    %v68 = vld [vmem:[%s5 + $0xe8] sm:$0xff]
    %v69 = vld [vmem:[%s5 + $0xf0] sm:$0xff]
    %v70 = vld [vmem:[%s5 + $0xf8] sm:$0xff]
    %v71 = vld [vmem:[%s5 + $0x100] sm:$0xff]
    %v72 = vld [vmem:[%s5 + $0x108] sm:$0xff]
    %v73 = vld [vmem:[%s5 + $0x110] sm:$0xff]
    %v74 = vld [vmem:[%s5 + $0x118] sm:$0xff]
    %v75 = vld [vmem:[%s5 + $0x120] sm:$0xff]
    %v76 = vld [vmem:[%s5 + $0x128] sm:$0xff]
    %v77 = vld [vmem:[%s5 + $0x130] sm:$0xff]
    %v78 = vld [vmem:[%s5 + $0x138] sm:$0xff]
    %v79 = vld [vmem:[%s5 + $0x140] sm:$0xff]
    %v80 = vld [vmem:[%s5 + $0x148] sm:$0xff]
    %v81 = vld [vmem:[%s5 + $0x150] sm:$0xff]
    %v82 = vld [vmem:[%s5 + $0x158] sm:$0xff]
    %v83 = vld [vmem:[%s5 + $0x160] sm:$0xff]
    %v84 = vld [vmem:[%s5 + $0x168] sm:$0xff]
    %v85 = vld [vmem:[%s5 + $0x170] sm:$0xff]
    %v86 = vld [vmem:[%s5 + $0x178] sm:$0xff]
    %v87 = vld [vmem:[%s5 + $0x180] sm:$0xff]
    %v88 = vld [vmem:[%s5 + $0x188] sm:$0xff]
    %v89 = vld [vmem:[%s5 + $0x190] sm:$0xff]
    %v90 = vld [vmem:[%s5 + $0x198] sm:$0xff]
    %v91 = vld [vmem:[%s5 + $0x1a0] sm:$0xff]
    %v92 = vld [vmem:[%s5 + $0x1a8] sm:$0xff]
    %v93 = vld [vmem:[%s5 + $0x1b0] sm:$0xff]
    %v94 = vld [vmem:[%s5 + $0x1b8] sm:$0xff]
    %v95 = vld [vmem:[%s5 + $0x1c0] sm:$0xff]
    %v96 = vld [vmem:[%s5 + $0x1c8] sm:$0xff]
    %v97 = vld [vmem:[%s5 + $0x1d0] sm:$0xff]
    %v98 = vld [vmem:[%s5 + $0x1d8] sm:$0xff]
    %v99 = vld [vmem:[%s5 + $0x1e0] sm:$0xff]
    %v100 = vld [vmem:[%s5 + $0x1e8] sm:$0xff]
    %v101 = vld [vmem:[%s5 + $0x1f0] sm:$0xff]
    %v102 = vld [vmem:[%s5 + $0x1f8] sm:$0xff]
    %v103 = vld [vmem:[%s5 + $0x200] sm:$0xff]
    %v104 = vld [vmem:[%s5 + $0x208] sm:$0xff]
    %v105 = vld [vmem:[%s5 + $0x210] sm:$0xff]
    %v106 = vld [vmem:[%s5 + $0x218] sm:$0xff]
    %v107 = vld [vmem:[%s5 + $0x220] sm:$0xff]
    %v108 = vld [vmem:[%s5 + $0x228] sm:$0xff]
    %v109 = vld [vmem:[%s5 + $0x230] sm:$0xff]
    %v110 = vld [vmem:[%s5 + $0x238] sm:$0xff]
    %v111 = vld [vmem:[%s5 + $0x240] sm:$0xff]
    %v112 = vld [vmem:[%s5 + $0x248] sm:$0xff]
    %v113 = vld [vmem:[%s5 + $0x250] sm:$0xff]
    %v114 = vld [vmem:[%s5 + $0x258] sm:$0xff]
    %v115 = vld [vmem:[%s5 + $0x260] sm:$0xff]
    %v116 = vld [vmem:[%s5 + $0x268] sm:$0xff]
    %v117 = vld [vmem:[%s5 + $0x270] sm:$0xff]
    %v118 = vld [vmem:[%s5 + $0x278] sm:$0xff]
    %v119 = vld [vmem:[%s5 + $0x280] sm:$0xff]
    %v120 = vld [vmem:[%s5 + $0x288] sm:$0xff]
    %v121 = vld [vmem:[%s5 + $0x290] sm:$0xff]
    %v122 = vld [vmem:[%s5 + $0x298] sm:$0xff]
    %v123 = vld [vmem:[%s5 + $0x2a0] sm:$0xff]
    %v124 = vld [vmem:[%s5 + $0x2a8] sm:$0xff]
    %v125 = vld [vmem:[%s5 + $0x2b0] sm:$0xff]
    %v126 = vld [vmem:[%s5 + $0x2b8] sm:$0xff]
    %v127 = vld [vmem:[%s5 + $0x2c0] sm:$0xff]
    %v128 = vld [vmem:[%s5 + $0x2c8] sm:$0xff]
    %v129 = vld [vmem:[%s5 + $0x2d0] sm:$0xff]
    %v130 = vld [vmem:[%s5 + $0x2d8] sm:$0xff]
    %v131 = vld [vmem:[%s5 + $0x2e0] sm:$0xff]
    %v132 = vld [vmem:[%s5 + $0x2e8] sm:$0xff]
    %v133 = vld [vmem:[%s5 + $0x2f0] sm:$0xff]
    %v134 = vld [vmem:[%s5 + $0x2f8] sm:$0xff]
    %v135 = vld [vmem:[%s5 + $0x300] sm:$0xff]
    %v136 = vld [vmem:[%s5 + $0x308] sm:$0xff]
    %v137 = vld [vmem:[%s5 + $0x310] sm:$0xff]
    %v138 = vld [vmem:[%s5 + $0x318] sm:$0xff]
    %v139 = vld [vmem:[%s5 + $0x320] sm:$0xff]
    %v140 = vld [vmem:[%s5 + $0x328] sm:$0xff]
    %v141 = vld [vmem:[%s5 + $0x330] sm:$0xff]
    %v142 = vld [vmem:[%s5 + $0x338] sm:$0xff]
    %v143 = vld [vmem:[%s5 + $0x340] sm:$0xff]
    %v144 = vld [vmem:[%s5 + $0x348] sm:$0xff]
    %v145 = vld [vmem:[%s5 + $0x350] sm:$0xff]
    %v146 = vld [vmem:[%s5 + $0x358] sm:$0xff]
    %v147 = vld [vmem:[%s5 + $0x360] sm:$0xff]
    %v148 = vld [vmem:[%s5 + $0x368] sm:$0xff]
    %v149 = vld [vmem:[%s5 + $0x370] sm:$0xff]
    %v150 = vld [vmem:[%s5 + $0x378] sm:$0xff]
    %v151 = vld [vmem:[%s5 + $0x380] sm:$0xff]
    %v152 = vld [vmem:[%s5 + $0x388] sm:$0xff]
    %v153 = vld [vmem:[%s5 + $0x390] sm:$0xff]
    %v154 = vld [vmem:[%s5 + $0x398] sm:$0xff]
    %v155 = vld [vmem:[%s5 + $0x3a0] sm:$0xff]
    %v156 = vld [vmem:[%s5 + $0x3a8] sm:$0xff]
    %v157 = vld [vmem:[%s5 + $0x3b0] sm:$0xff]
    %v158 = vld [vmem:[%s5 + $0x3b8] sm:$0xff]
    %v159 = vld [vmem:[%s5 + $0x3c0] sm:$0xff]
    %v160 = vld [vmem:[%s5 + $0x3c8] sm:$0xff]
    %v161 = vld [vmem:[%s5 + $0x3d0] sm:$0xff]
    %v162 = vld [vmem:[%s5 + $0x3d8] sm:$0xff]
    %v163 = vld [vmem:[%s5 + $0x3e0] sm:$0xff]
    %v164 = vld [vmem:[%s5 + $0x3e8] sm:$0xff]
    %v165 = vld [vmem:[%s5 + $0x3f0] sm:$0xff]
    %v166 = vld [vmem:[%s5 + $0x3f8] sm:$0xff]
    %v167 = vld [vmem:[%s5 + $0x400] sm:$0xff]
    %v168 = vld [vmem:[%s5 + $0x408] sm:$0xff]
    %v169 = vld [vmem:[%s5 + $0x410] sm:$0xff]
    %v170 = vld [vmem:[#allocation2] sm:$0xf]
    %v171 = vld [vmem:[#allocation2 + $0x4] sm:$0xf]
    %v172 = vld [vmem:[#allocation2 + $0x8] sm:$0xf]
    %v173 = vld [vmem:[#allocation2 + $0xc] sm:$0xf]
    %v174 = vld [vmem:[#allocation2 + $0x10] sm:$0xf]
    %v175 = vld [vmem:[#allocation2 + $0x14] sm:$0xf]
    %v176 = vld [vmem:[#allocation2 + $0x18] sm:$0xf]
    %v177 = vld [vmem:[#allocation2 + $0x1c] sm:$0xf]
    %v178 = vld [vmem:[#allocation2 + $0x20] sm:$0xf]
    %v179 = vld [vmem:[#allocation2 + $0x24] sm:$0xf]
    %v180 = vld [vmem:[#allocation2 + $0x28] sm:$0xf]
    %v181 = vld [vmem:[#allocation2 + $0x2c] sm:$0xf]
    %v182 = vld [vmem:[#allocation2 + $0x30] sm:$0xf]
    %v183 = vld [vmem:[#allocation2 + $0x34] sm:$0xf]
    %v184 = vld [vmem:[#allocation2 + $0x38] sm:$0xf]
    %v185 = vld [vmem:[#allocation2 + $0x3c] sm:$0xf]
    %v186 = vld [vmem:[#allocation2 + $0x40] sm:$0xf]
    %v187 = vld [vmem:[#allocation2 + $0x44] sm:$0xf]
    %v188 = vld [vmem:[#allocation2 + $0x48] sm:$0xf]
    %v189 = vld [vmem:[#allocation2 + $0x4c] sm:$0xf]
    %v190 = vld [vmem:[#allocation2 + $0x50] sm:$0xf]
    %v191 = vld [vmem:[#allocation2 + $0x54] sm:$0xf]
    %v192 = vld [vmem:[#allocation2 + $0x58] sm:$0xf]
    %v193 = vld [vmem:[#allocation2 + $0x5c] sm:$0xf]
    %v194 = vld [vmem:[#allocation2 + $0x60] sm:$0xf]
    %v195 = vld [vmem:[#allocation2 + $0x64] sm:$0xf]
    %v196 = vld [vmem:[#allocation2 + $0x68] sm:$0xf]
    %v197 = vld [vmem:[#allocation2 + $0x6c] sm:$0xf]
    %v198 = vld [vmem:[#allocation2 + $0x70] sm:$0xf]
    %v199 = vld [vmem:[#allocation2 + $0x74] sm:$0xf]
    %v200 = vld [vmem:[#allocation2 + $0x78] sm:$0xf]
    %v201 = vld [vmem:[#allocation2 + $0x7c] sm:$0xf]
    %v202 = vld [vmem:[%s1] sm:$0xff]
    %v203 = vld [vmem:[%s1 + $0x8] sm:$0xff]
    %v204 = vld [vmem:[%s1 + $0x10] sm:$0xff]
    %v205 = vld [vmem:[%s1 + $0x18] sm:$0xff]
    %v206 = vld [vmem:[%s1 + $0x20] sm:$0xff]
    %v207 = vld [vmem:[%s1 + $0x28] sm:$0xff]
    %v208 = vld [vmem:[%s1 + $0x30] sm:$0xff]
    %v209 = vld [vmem:[%s1 + $0x38] sm:$0xff]
    %v210 = vld [vmem:[%s1 + $0x40] sm:$0xff]
    %v211 = vld [vmem:[%s1 + $0x48] sm:$0xff]
    %v212 = vld [vmem:[%s1 + $0x50] sm:$0xff]
    %v213 = vld [vmem:[%s1 + $0x58] sm:$0xff]
    %v214 = vld [vmem:[%s1 + $0x60] sm:$0xff]
    %v215 = vld [vmem:[%s1 + $0x68] sm:$0xff]
    %v216 = vld [vmem:[%s1 + $0x70] sm:$0xff]
    %v217 = vld [vmem:[%s1 + $0x78] sm:$0xff]
    %v218 = vld [vmem:[%s1 + $0x80] sm:$0xff]
    %v219 = vld [vmem:[%s1 + $0x88] sm:$0xff]
    %v220 = vld [vmem:[%s1 + $0x90] sm:$0xff]
    %v221 = vld [vmem:[%s1 + $0x98] sm:$0xff]
    %v222 = vld [vmem:[%s1 + $0xa0] sm:$0xff]
    %v223 = vld [vmem:[%s1 + $0xa8] sm:$0xff]
    %v224 = vld [vmem:[%s1 + $0xb0] sm:$0xff]
    %v225 = vld [vmem:[%s1 + $0xb8] sm:$0xff]
    %v226 = vld [vmem:[%s1 + $0xc0] sm:$0xff]
    %v227 = vld [vmem:[%s1 + $0xc8] sm:$0xff]
    %v228 = vld [vmem:[%s1 + $0xd0] sm:$0xff]
    %v229 = vld [vmem:[%s1 + $0xd8] sm:$0xff]
    %v230 = vld [vmem:[%s1 + $0xe0] sm:$0xff]
    %v231 = vld [vmem:[%s1 + $0xe8] sm:$0xff]
    %v232 = vld [vmem:[%s1 + $0xf0] sm:$0xff]
    %v233 = vld [vmem:[%s1 + $0xf8] sm:$0xff]
    %235 = vset.pattern.permute.xlu0 0
    %236 = vperm.xlu0 %235, %v39
    %v237 = vpop.permute.xlu0 %236
    %240 = vset.pattern.permute.xlu0 0
    %241 = vperm.xlu0 %240, %v40
    %v242 = vpop.permute.xlu0 %241
    %245 = vset.pattern.permute.xlu0 0
    %246 = vperm.xlu0 %245, %v41
    %v247 = vpop.permute.xlu0 %246
    %250 = vset.pattern.permute.xlu0 0
    %251 = vperm.xlu0 %250, %v42
    %v252 = vpop.permute.xlu0 %251
    %255 = vset.pattern.permute.xlu0 0
    %256 = vperm.xlu0 %255, %v43
    %v257 = vpop.permute.xlu0 %256
    %260 = vset.pattern.permute.xlu0 0
    %261 = vperm.xlu0 %260, %v44
    %v262 = vpop.permute.xlu0 %261
    %265 = vset.pattern.permute.xlu0 0
    %266 = vperm.xlu0 %265, %v45
    %v267 = vpop.permute.xlu0 %266
    %270 = vset.pattern.permute.xlu0 0
    %271 = vperm.xlu0 %270, %v46
    %v272 = vpop.permute.xlu0 %271
    %275 = vset.pattern.permute.xlu0 0
    %276 = vperm.xlu0 %275, %v47
    %v277 = vpop.permute.xlu0 %276
    %280 = vset.pattern.permute.xlu0 0
    %281 = vperm.xlu0 %280, %v48
    %v282 = vpop.permute.xlu0 %281
    %285 = vset.pattern.permute.xlu0 0
    %286 = vperm.xlu0 %285, %v49
    %v287 = vpop.permute.xlu0 %286
    %290 = vset.pattern.permute.xlu0 0
    %291 = vperm.xlu0 %290, %v50
    %v292 = vpop.permute.xlu0 %291
    %295 = vset.pattern.permute.xlu0 0
    %296 = vperm.xlu0 %295, %v51
    %v297 = vpop.permute.xlu0 %296
    %300 = vset.pattern.permute.xlu0 0
    %301 = vperm.xlu0 %300, %v52
    %v302 = vpop.permute.xlu0 %301
    %305 = vset.pattern.permute.xlu0 0
    %306 = vperm.xlu0 %305, %v53
    %v307 = vpop.permute.xlu0 %306
    %310 = vset.pattern.permute.xlu0 0
    %311 = vperm.xlu0 %310, %v54
    %v312 = vpop.permute.xlu0 %311
    %315 = vset.pattern.permute.xlu0 0
    %316 = vperm.xlu0 %315, %v55
    %v317 = vpop.permute.xlu0 %316
    %320 = vset.pattern.permute.xlu0 0
    %321 = vperm.xlu0 %320, %v56
    %v322 = vpop.permute.xlu0 %321
    %325 = vset.pattern.permute.xlu0 0
    %326 = vperm.xlu0 %325, %v57
    %v327 = vpop.permute.xlu0 %326
    %330 = vset.pattern.permute.xlu0 0
    %331 = vperm.xlu0 %330, %v58
    %v332 = vpop.permute.xlu0 %331
    %335 = vset.pattern.permute.xlu0 0
    %336 = vperm.xlu0 %335, %v59
    %v337 = vpop.permute.xlu0 %336
    %340 = vset.pattern.permute.xlu0 0
    %341 = vperm.xlu0 %340, %v60
    %v342 = vpop.permute.xlu0 %341
    %345 = vset.pattern.permute.xlu0 0
    %346 = vperm.xlu0 %345, %v61
    %v347 = vpop.permute.xlu0 %346
    %350 = vset.pattern.permute.xlu0 0
    %351 = vperm.xlu0 %350, %v62
    %v352 = vpop.permute.xlu0 %351
    %355 = vset.pattern.permute.xlu0 0
    %356 = vperm.xlu0 %355, %v63
    %v357 = vpop.permute.xlu0 %356
    %360 = vset.pattern.permute.xlu0 0
    %361 = vperm.xlu0 %360, %v64
    %v362 = vpop.permute.xlu0 %361
    %365 = vset.pattern.permute.xlu0 0
    %366 = vperm.xlu0 %365, %v65
    %v367 = vpop.permute.xlu0 %366
    %370 = vset.pattern.permute.xlu0 0
    %371 = vperm.xlu0 %370, %v66
    %v372 = vpop.permute.xlu0 %371
    %375 = vset.pattern.permute.xlu0 0
    %376 = vperm.xlu0 %375, %v67
    %v377 = vpop.permute.xlu0 %376
    %380 = vset.pattern.permute.xlu0 0
    %381 = vperm.xlu0 %380, %v68
    %v382 = vpop.permute.xlu0 %381
    %385 = vset.pattern.permute.xlu0 0
    %386 = vperm.xlu0 %385, %v69
    %v387 = vpop.permute.xlu0 %386
    %390 = vset.pattern.permute.xlu0 0
    %391 = vperm.xlu0 %390, %v70
    %v392 = vpop.permute.xlu0 %391
    %v426 = vunpack.c.l.b16 %v202
    %v427 = vunpack.c.h.b16 %v202
    %v428 = vunpack.c.l.b16 %v203
    %v429 = vunpack.c.h.b16 %v203
    %v430 = vunpack.c.l.b16 %v204
    %v431 = vunpack.c.h.b16 %v204
    %v432 = vunpack.c.l.b16 %v205
    %v433 = vunpack.c.h.b16 %v205
    %v434 = vunpack.c.l.b16 %v206
    %v435 = vunpack.c.h.b16 %v206
    %v436 = vunpack.c.l.b16 %v207
    %v437 = vunpack.c.h.b16 %v207
    %v438 = vunpack.c.l.b16 %v208
    %v439 = vunpack.c.h.b16 %v208
    %v440 = vunpack.c.l.b16 %v209
    %v441 = vunpack.c.h.b16 %v209
    %v442 = vunpack.c.l.b16 %v210
    %v443 = vunpack.c.h.b16 %v210
    %v444 = vunpack.c.l.b16 %v211
    %v445 = vunpack.c.h.b16 %v211
    %v446 = vunpack.c.l.b16 %v212
    %v447 = vunpack.c.h.b16 %v212
    %v448 = vunpack.c.l.b16 %v213
    %v449 = vunpack.c.h.b16 %v213
    %v450 = vunpack.c.l.b16 %v214
    %v451 = vunpack.c.h.b16 %v214
    %v452 = vunpack.c.l.b16 %v215
    %v453 = vunpack.c.h.b16 %v215
    %v454 = vunpack.c.l.b16 %v216
    %v455 = vunpack.c.h.b16 %v216
    %v456 = vunpack.c.l.b16 %v217
    %v457 = vunpack.c.h.b16 %v217
    %v458 = vunpack.c.l.b16 %v218
    %v459 = vunpack.c.h.b16 %v218
    %v460 = vunpack.c.l.b16 %v219
    %v461 = vunpack.c.h.b16 %v219
    %v462 = vunpack.c.l.b16 %v220
    %v463 = vunpack.c.h.b16 %v220
    %v464 = vunpack.c.l.b16 %v221
    %v465 = vunpack.c.h.b16 %v221
    %v466 = vunpack.c.l.b16 %v222
    %v467 = vunpack.c.h.b16 %v222
    %v468 = vunpack.c.l.b16 %v223
    %v469 = vunpack.c.h.b16 %v223
    %v470 = vunpack.c.l.b16 %v224
    %v471 = vunpack.c.h.b16 %v224
    %v472 = vunpack.c.l.b16 %v225
    %v473 = vunpack.c.h.b16 %v225
    %v474 = vunpack.c.l.b16 %v226
    %v475 = vunpack.c.h.b16 %v226
    %v476 = vunpack.c.l.b16 %v227
    %v477 = vunpack.c.h.b16 %v227
    %v478 = vunpack.c.l.b16 %v228
    %v479 = vunpack.c.h.b16 %v228
    %v480 = vunpack.c.l.b16 %v229
    %v481 = vunpack.c.h.b16 %v229
    %v482 = vunpack.c.l.b16 %v230
    %v483 = vunpack.c.h.b16 %v230
    %v484 = vunpack.c.l.b16 %v231
    %v485 = vunpack.c.h.b16 %v231
    %v486 = vunpack.c.l.b16 %v232
    %v487 = vunpack.c.h.b16 %v232
    %v488 = vunpack.c.l.b16 %v233
    %v489 = vunpack.c.h.b16 %v233
    %v490 = vpack.c.b16 %v428, %v426
    %v491 = vpack.c.b16 %v429, %v427
    %v492 = vpack.c.b16 %v432, %v430
    %v493 = vpack.c.b16 %v433, %v431
    %v494 = vpack.c.b16 %v436, %v434
    %v495 = vpack.c.b16 %v437, %v435
    %v496 = vpack.c.b16 %v440, %v438
    %v497 = vpack.c.b16 %v441, %v439
    %v498 = vpack.c.b16 %v444, %v442
    %v499 = vpack.c.b16 %v445, %v443
    %v500 = vpack.c.b16 %v448, %v446
    %v501 = vpack.c.b16 %v449, %v447
    %v502 = vpack.c.b16 %v452, %v450
    %v503 = vpack.c.b16 %v453, %v451
    %v504 = vpack.c.b16 %v456, %v454
    %v505 = vpack.c.b16 %v457, %v455
    %v506 = vpack.c.b16 %v460, %v458
    %v507 = vpack.c.b16 %v461, %v459
    %v508 = vpack.c.b16 %v464, %v462
    %v509 = vpack.c.b16 %v465, %v463
    %v510 = vpack.c.b16 %v468, %v466
    %v511 = vpack.c.b16 %v469, %v467
    %v512 = vpack.c.b16 %v472, %v470
    %v513 = vpack.c.b16 %v473, %v471
    %v514 = vpack.c.b16 %v476, %v474
    %v515 = vpack.c.b16 %v477, %v475
    %v516 = vpack.c.b16 %v480, %v478
    %v517 = vpack.c.b16 %v481, %v479
    %v518 = vpack.c.b16 %v484, %v482
    %v519 = vpack.c.b16 %v485, %v483
    %v520 = vpack.c.b16 %v488, %v486
    %v521 = vpack.c.b16 %v489, %v487
    %v586 = vunpack.c.l.b16 %v170
    %v587 = vunpack.c.l.b16 %v171
    %v588 = vunpack.c.l.b16 %v172
    %v589 = vunpack.c.l.b16 %v173
    %v590 = vunpack.c.l.b16 %v174
    %v591 = vunpack.c.l.b16 %v175
    %v592 = vunpack.c.l.b16 %v176
    %v593 = vunpack.c.l.b16 %v177
    %v594 = vunpack.c.l.b16 %v178
    %v595 = vunpack.c.l.b16 %v179
    %v596 = vunpack.c.l.b16 %v180
    %v597 = vunpack.c.l.b16 %v181
    %v598 = vunpack.c.l.b16 %v182
    %v599 = vunpack.c.l.b16 %v183
    %v600 = vunpack.c.l.b16 %v184
    %v601 = vunpack.c.l.b16 %v185
    %v602 = vunpack.c.l.b16 %v186
    %v603 = vunpack.c.l.b16 %v187
    %v604 = vunpack.c.l.b16 %v188
    %v605 = vunpack.c.l.b16 %v189
    %v606 = vunpack.c.l.b16 %v190
    %v607 = vunpack.c.l.b16 %v191
    %v608 = vunpack.c.l.b16 %v192
    %v609 = vunpack.c.l.b16 %v193
    %v610 = vunpack.c.l.b16 %v194
    %v611 = vunpack.c.l.b16 %v195
    %v612 = vunpack.c.l.b16 %v196
    %v613 = vunpack.c.l.b16 %v197
    %v614 = vunpack.c.l.b16 %v198
    %v615 = vunpack.c.l.b16 %v199
    %v616 = vunpack.c.l.b16 %v200
    %v617 = vunpack.c.l.b16 %v201
    %v618 = vpack.c.b16 %v587, %v586
    %v619 = vpack.c.b16 %v589, %v588
    %v620 = vpack.c.b16 %v591, %v590
    %v621 = vpack.c.b16 %v593, %v592
    %v622 = vpack.c.b16 %v595, %v594
    %v623 = vpack.c.b16 %v597, %v596
    %v624 = vpack.c.b16 %v599, %v598
    %v625 = vpack.c.b16 %v601, %v600
    %v626 = vpack.c.b16 %v603, %v602
    %v627 = vpack.c.b16 %v605, %v604
    %v628 = vpack.c.b16 %v607, %v606
    %v629 = vpack.c.b16 %v609, %v608
    %v630 = vpack.c.b16 %v611, %v610
    %v631 = vpack.c.b16 %v613, %v612
    %v632 = vpack.c.b16 %v615, %v614
    %v633 = vpack.c.b16 %v617, %v616
    %650 = vmatprep.subr.bf16.mxu0 0
    %651 = vmatpush1.bf16.msra.mxu0 %v625
    %652 = vmatprep.subr.bf16.mxu0 0
    %653 = vmatpush1.bf16.msra.mxu0 %v624
    %654 = vmatprep.subr.bf16.mxu0 0
    %655 = vmatpush1.bf16.msra.mxu0 %v623
    %656 = vmatprep.subr.bf16.mxu0 0
    %657 = vmatpush1.bf16.msra.mxu0 %v622
    %658 = vmatprep.subr.bf16.mxu0 0
    %659 = vmatpush1.bf16.msra.mxu0 %v621
    %660 = vmatprep.subr.bf16.mxu0 0
    %661 = vmatpush1.bf16.msra.mxu0 %v620
    %662 = vmatprep.subr.bf16.mxu0 0
    %663 = vmatpush1.bf16.msra.mxu0 %v619
    %664 = vmatprep.subr.bf16.mxu0 0
    %665 = vmatpush1.bf16.msra.mxu0 %v618
    %666 = vmatprep.subr.bf16.mxu0 0
    %667 = vmatpush2.bf16.msra.mxu0 %v633
    %668 = vmatprep.subr.bf16.mxu0 0
    %669 = vmatpush2.bf16.msra.mxu0 %v632
    %670 = vmatprep.subr.bf16.mxu0 0
    %671 = vmatpush2.bf16.msra.mxu0 %v631
    %672 = vmatprep.subr.bf16.mxu0 0
    %673 = vmatpush2.bf16.msra.mxu0 %v630
    %674 = vmatprep.subr.bf16.mxu0 0
    %675 = vmatpush2.bf16.msra.mxu0 %v629
    %676 = vmatprep.subr.bf16.mxu0 0
    %677 = vmatpush2.bf16.msra.mxu0 %v628
    %678 = vmatprep.subr.bf16.mxu0 0
    %679 = vmatpush2.bf16.msra.mxu0 %v627
    %680 = vmatprep.subr.bf16.mxu0 0
    %681 = vmatpush2.bf16.msra.mxu0 %v626
    %682 = vmatprep.mubr.bf16.mxu0 %v491
    %683 = vmatmul.mubr.bf16.gmra.mxu0 %v490
    %v684 = vpop.f32.mrf.mxu0
    %v685 = vadd.f32 %v237, %v684
    %v686 = vpop.f32.mrf.mxu0
    %v687 = vpop.f32.mrf.mxu0
    %v688 = vadd.f32 %v242, %v687
    %v689 = vpop.f32.mrf.mxu0
    %690 = vmatprep.mubr.bf16.mxu0 %v493
    %691 = vmatmul.mubr.bf16.gmra.mxu0 %v492
    %v692 = vpop.f32.mrf.mxu0
    %v693 = vadd.f32 %v247, %v692
    %v694 = vpop.f32.mrf.mxu0
    %v695 = vpop.f32.mrf.mxu0
    %v696 = vadd.f32 %v252, %v695
    %v697 = vpop.f32.mrf.mxu0
    %698 = vmatprep.mubr.bf16.mxu0 %v495
    %699 = vmatmul.mubr.bf16.gmra.mxu0 %v494
    %v700 = vpop.f32.mrf.mxu0
    %v701 = vadd.f32 %v257, %v700
    %v702 = vpop.f32.mrf.mxu0
    %v703 = vpop.f32.mrf.mxu0
    %v704 = vadd.f32 %v262, %v703
    %v705 = vpop.f32.mrf.mxu0
    %706 = vmatprep.mubr.bf16.mxu0 %v497
    %707 = vmatmul.mubr.bf16.gmra.mxu0 %v496
    %v708 = vpop.f32.mrf.mxu0
    %v709 = vadd.f32 %v267, %v708
    %v710 = vpop.f32.mrf.mxu0
    %v711 = vpop.f32.mrf.mxu0
    %v712 = vadd.f32 %v272, %v711
    %v713 = vpop.f32.mrf.mxu0
    %714 = vmatprep.mubr.bf16.mxu0 %v499
    %715 = vmatmul.mubr.bf16.gmra.mxu0 %v498
    %v716 = vpop.f32.mrf.mxu0
    %v717 = vadd.f32 %v277, %v716
    %v718 = vpop.f32.mrf.mxu0
    %v719 = vpop.f32.mrf.mxu0
    %v720 = vadd.f32 %v282, %v719
    %v721 = vpop.f32.mrf.mxu0
    %722 = vmatprep.mubr.bf16.mxu0 %v501
    %723 = vmatmul.mubr.bf16.gmra.mxu0 %v500
    %v724 = vpop.f32.mrf.mxu0
    %v725 = vadd.f32 %v287, %v724
    %v726 = vpop.f32.mrf.mxu0
    %v727 = vpop.f32.mrf.mxu0
    %v728 = vadd.f32 %v292, %v727
    %v729 = vpop.f32.mrf.mxu0
    %730 = vmatprep.mubr.bf16.mxu0 %v503
    %731 = vmatmul.mubr.bf16.gmra.mxu0 %v502
    %v732 = vpop.f32.mrf.mxu0
    %v733 = vadd.f32 %v297, %v732
    %v734 = vpop.f32.mrf.mxu0
    %v735 = vpop.f32.mrf.mxu0
    %v736 = vadd.f32 %v302, %v735
    %v737 = vpop.f32.mrf.mxu0
    %738 = vmatprep.mubr.bf16.mxu0 %v505
    %739 = vmatmul.mubr.bf16.gmra.mxu0 %v504
    %v740 = vpop.f32.mrf.mxu0
    %v741 = vadd.f32 %v307, %v740
    %v742 = vpop.f32.mrf.mxu0
    %v743 = vpop.f32.mrf.mxu0
    %v744 = vadd.f32 %v312, %v743
    %v745 = vpop.f32.mrf.mxu0
    %746 = vmatprep.mubr.bf16.mxu0 %v507
    %747 = vmatmul.mubr.bf16.gmra.mxu0 %v506
    %v748 = vpop.f32.mrf.mxu0
    %v749 = vadd.f32 %v317, %v748
    %v750 = vpop.f32.mrf.mxu0
    %v751 = vpop.f32.mrf.mxu0
    %v752 = vadd.f32 %v322, %v751
    %v753 = vpop.f32.mrf.mxu0
    %754 = vmatprep.mubr.bf16.mxu0 %v509
    %755 = vmatmul.mubr.bf16.gmra.mxu0 %v508
    %v756 = vpop.f32.mrf.mxu0
    %v757 = vadd.f32 %v327, %v756
    %v758 = vpop.f32.mrf.mxu0
    %v759 = vpop.f32.mrf.mxu0
    %v760 = vadd.f32 %v332, %v759
    %v761 = vpop.f32.mrf.mxu0
    %762 = vmatprep.mubr.bf16.mxu0 %v511
    %763 = vmatmul.mubr.bf16.gmra.mxu0 %v510
    %v764 = vpop.f32.mrf.mxu0
    %v765 = vadd.f32 %v337, %v764
    %v766 = vpop.f32.mrf.mxu0
    %v767 = vpop.f32.mrf.mxu0
    %v768 = vadd.f32 %v342, %v767
    %v769 = vpop.f32.mrf.mxu0
    %770 = vmatprep.mubr.bf16.mxu0 %v513
    %771 = vmatmul.mubr.bf16.gmra.mxu0 %v512
    %v772 = vpop.f32.mrf.mxu0
    %v773 = vadd.f32 %v347, %v772
    %v774 = vpop.f32.mrf.mxu0
    %v775 = vpop.f32.mrf.mxu0
    %v776 = vadd.f32 %v352, %v775
    %v777 = vpop.f32.mrf.mxu0
    %778 = vmatprep.mubr.bf16.mxu0 %v515
    %779 = vmatmul.mubr.bf16.gmra.mxu0 %v514
    %v780 = vpop.f32.mrf.mxu0
    %v781 = vadd.f32 %v357, %v780
    %v782 = vpop.f32.mrf.mxu0
    %v783 = vpop.f32.mrf.mxu0
    %v784 = vadd.f32 %v362, %v783
    %v785 = vpop.f32.mrf.mxu0
    %786 = vmatprep.mubr.bf16.mxu0 %v517
    %787 = vmatmul.mubr.bf16.gmra.mxu0 %v516
    %v788 = vpop.f32.mrf.mxu0
    %v789 = vadd.f32 %v367, %v788
    %v790 = vpop.f32.mrf.mxu0
    %v791 = vpop.f32.mrf.mxu0
    %v792 = vadd.f32 %v372, %v791
    %v793 = vpop.f32.mrf.mxu0
    %794 = vmatprep.mubr.bf16.mxu0 %v519
    %795 = vmatmul.mubr.bf16.gmra.mxu0 %v518
    %v796 = vpop.f32.mrf.mxu0
    %v797 = vadd.f32 %v377, %v796
    %v798 = vpop.f32.mrf.mxu0
    %v799 = vpop.f32.mrf.mxu0
    %v800 = vadd.f32 %v382, %v799
    %v801 = vpop.f32.mrf.mxu0
    %802 = vmatprep.mubr.bf16.mxu0 %v521
    %803 = vmatmul.mubr.bf16.gmra.mxu0 %v520
    %v804 = vpop.f32.mrf.mxu0
    %v805 = vadd.f32 %v387, %v804
    %v806 = vpop.f32.mrf.mxu0
    %v807 = vpop.f32.mrf.mxu0
    %v808 = vadd.f32 %v392, %v807
    %v809 = vpop.f32.mrf.mxu0
    %810 = vdwg.mxu0
    %v811 = vmax.f32 %v685, 0.0
    %v812 = vmax.f32 %v688, 0.0
    %v813 = vmax.f32 %v693, 0.0
    %v814 = vmax.f32 %v696, 0.0
    %v815 = vmax.f32 %v701, 0.0
    %v816 = vmax.f32 %v704, 0.0
    %v817 = vmax.f32 %v709, 0.0
    %v818 = vmax.f32 %v712, 0.0
    %v819 = vmax.f32 %v717, 0.0
    %v820 = vmax.f32 %v720, 0.0
    %v821 = vmax.f32 %v725, 0.0
    %v822 = vmax.f32 %v728, 0.0
    %v823 = vmax.f32 %v733, 0.0
    %v824 = vmax.f32 %v736, 0.0
    %v825 = vmax.f32 %v741, 0.0
    %v826 = vmax.f32 %v744, 0.0
    %v827 = vmax.f32 %v749, 0.0
    %v828 = vmax.f32 %v752, 0.0
    %v829 = vmax.f32 %v757, 0.0
    %v830 = vmax.f32 %v760, 0.0
    %v831 = vmax.f32 %v765, 0.0
    %v832 = vmax.f32 %v768, 0.0
    %v833 = vmax.f32 %v773, 0.0
    %v834 = vmax.f32 %v776, 0.0
    %v835 = vmax.f32 %v781, 0.0
    %v836 = vmax.f32 %v784, 0.0
    %v837 = vmax.f32 %v789, 0.0
    %v838 = vmax.f32 %v792, 0.0
    %v839 = vmax.f32 %v797, 0.0
    %v840 = vmax.f32 %v800, 0.0
    %v841 = vmax.f32 %v805, 0.0
    %v842 = vmax.f32 %v808, 0.0
    %v843 = vld [vmem:[%s2] sm:$0xff]
    %v844 = vld [vmem:[%s2 + $0x8] sm:$0xff]
    %v845 = vld [vmem:[%s2 + $0x10] sm:$0xff]
    %v846 = vld [vmem:[%s2 + $0x18] sm:$0xff]
    %v847 = vld [vmem:[%s2 + $0x20] sm:$0xff]
    %v848 = vld [vmem:[%s2 + $0x28] sm:$0xff]
    %v849 = vld [vmem:[%s2 + $0x30] sm:$0xff]
    %v850 = vld [vmem:[%s2 + $0x38] sm:$0xff]
    %v851 = vld [vmem:[%s2 + $0x40] sm:$0xff]
    %v852 = vld [vmem:[%s2 + $0x48] sm:$0xff]
    %v853 = vld [vmem:[%s2 + $0x50] sm:$0xff]
    %v854 = vld [vmem:[%s2 + $0x58] sm:$0xff]
    %v855 = vld [vmem:[%s2 + $0x60] sm:$0xff]
    %v856 = vld [vmem:[%s2 + $0x68] sm:$0xff]
    %v857 = vld [vmem:[%s2 + $0x70] sm:$0xff]
    %v858 = vld [vmem:[%s2 + $0x78] sm:$0xff]
    %v859 = vld [vmem:[%s2 + $0x80] sm:$0xff]
    %v860 = vld [vmem:[%s2 + $0x88] sm:$0xff]
    %v861 = vld [vmem:[%s2 + $0x90] sm:$0xff]
    %v862 = vld [vmem:[%s2 + $0x98] sm:$0xff]
    %v863 = vld [vmem:[%s2 + $0xa0] sm:$0xff]
    %v864 = vld [vmem:[%s2 + $0xa8] sm:$0xff]
    %v865 = vld [vmem:[%s2 + $0xb0] sm:$0xff]
    %v866 = vld [vmem:[%s2 + $0xb8] sm:$0xff]
    %v867 = vld [vmem:[%s2 + $0xc0] sm:$0xff]
    %v868 = vld [vmem:[%s2 + $0xc8] sm:$0xff]
    %v869 = vld [vmem:[%s2 + $0xd0] sm:$0xff]
    %v870 = vld [vmem:[%s2 + $0xd8] sm:$0xff]
    %v871 = vld [vmem:[%s2 + $0xe0] sm:$0xff]
    %v872 = vld [vmem:[%s2 + $0xe8] sm:$0xff]
    %v873 = vld [vmem:[%s2 + $0xf0] sm:$0xff]
    %v874 = vld [vmem:[%s2 + $0xf8] sm:$0xff]
    %v875 = vld [vmem:[%s2 + $0x100] sm:$0xff]
    %v876 = vld [vmem:[%s2 + $0x108] sm:$0xff]
    %v877 = vld [vmem:[%s2 + $0x110] sm:$0xff]
    %v878 = vld [vmem:[%s2 + $0x118] sm:$0xff]
    %v879 = vld [vmem:[%s2 + $0x120] sm:$0xff]
    %v880 = vld [vmem:[%s2 + $0x128] sm:$0xff]
    %v881 = vld [vmem:[%s2 + $0x130] sm:$0xff]
    %v882 = vld [vmem:[%s2 + $0x138] sm:$0xff]
    %v883 = vld [vmem:[%s2 + $0x140] sm:$0xff]
    %v884 = vld [vmem:[%s2 + $0x148] sm:$0xff]
    %v885 = vld [vmem:[%s2 + $0x150] sm:$0xff]
    %v886 = vld [vmem:[%s2 + $0x158] sm:$0xff]
    %v887 = vld [vmem:[%s2 + $0x160] sm:$0xff]
    %v888 = vld [vmem:[%s2 + $0x168] sm:$0xff]
    %v889 = vld [vmem:[%s2 + $0x170] sm:$0xff]
    %v890 = vld [vmem:[%s2 + $0x178] sm:$0xff]
    %v891 = vld [vmem:[%s2 + $0x180] sm:$0xff]
    %v892 = vld [vmem:[%s2 + $0x188] sm:$0xff]
    %v893 = vld [vmem:[%s2 + $0x190] sm:$0xff]
    %v894 = vld [vmem:[%s2 + $0x198] sm:$0xff]
    %v895 = vld [vmem:[%s2 + $0x1a0] sm:$0xff]
    %v896 = vld [vmem:[%s2 + $0x1a8] sm:$0xff]
    %v897 = vld [vmem:[%s2 + $0x1b0] sm:$0xff]
    %v898 = vld [vmem:[%s2 + $0x1b8] sm:$0xff]
    %v899 = vld [vmem:[%s2 + $0x1c0] sm:$0xff]
    %v900 = vld [vmem:[%s2 + $0x1c8] sm:$0xff]
    %v901 = vld [vmem:[%s2 + $0x1d0] sm:$0xff]
    %v902 = vld [vmem:[%s2 + $0x1d8] sm:$0xff]
    %v903 = vld [vmem:[%s2 + $0x1e0] sm:$0xff]
    %v904 = vld [vmem:[%s2 + $0x1e8] sm:$0xff]
    %v905 = vld [vmem:[%s2 + $0x1f0] sm:$0xff]
    %v906 = vld [vmem:[%s2 + $0x1f8] sm:$0xff]
    %v907 = vld [vmem:[%s2 + $0x200] sm:$0xff]
    %v908 = vld [vmem:[%s2 + $0x208] sm:$0xff]
    %v909 = vld [vmem:[%s2 + $0x210] sm:$0xff]
    %v910 = vld [vmem:[%s2 + $0x218] sm:$0xff]
    %v911 = vld [vmem:[%s2 + $0x220] sm:$0xff]
    %v912 = vld [vmem:[%s2 + $0x228] sm:$0xff]
    %v913 = vld [vmem:[%s2 + $0x230] sm:$0xff]
    %v914 = vld [vmem:[%s2 + $0x238] sm:$0xff]
    %v915 = vld [vmem:[%s2 + $0x240] sm:$0xff]
    %v916 = vld [vmem:[%s2 + $0x248] sm:$0xff]
    %v917 = vld [vmem:[%s2 + $0x250] sm:$0xff]
    %v918 = vld [vmem:[%s2 + $0x258] sm:$0xff]
    %v919 = vld [vmem:[%s2 + $0x260] sm:$0xff]
    %v920 = vld [vmem:[%s2 + $0x268] sm:$0xff]
    %v921 = vld [vmem:[%s2 + $0x270] sm:$0xff]
    %v922 = vld [vmem:[%s2 + $0x278] sm:$0xff]
    %v923 = vld [vmem:[%s2 + $0x280] sm:$0xff]
    %v924 = vld [vmem:[%s2 + $0x288] sm:$0xff]
    %v925 = vld [vmem:[%s2 + $0x290] sm:$0xff]
    %v926 = vld [vmem:[%s2 + $0x298] sm:$0xff]
    %v927 = vld [vmem:[%s2 + $0x2a0] sm:$0xff]
    %v928 = vld [vmem:[%s2 + $0x2a8] sm:$0xff]
    %v929 = vld [vmem:[%s2 + $0x2b0] sm:$0xff]
    %v930 = vld [vmem:[%s2 + $0x2b8] sm:$0xff]
    %v931 = vld [vmem:[%s2 + $0x2c0] sm:$0xff]
    %v932 = vld [vmem:[%s2 + $0x2c8] sm:$0xff]
    %v933 = vld [vmem:[%s2 + $0x2d0] sm:$0xff]
    %v934 = vld [vmem:[%s2 + $0x2d8] sm:$0xff]
    %v935 = vld [vmem:[%s2 + $0x2e0] sm:$0xff]
    %v936 = vld [vmem:[%s2 + $0x2e8] sm:$0xff]
    %v937 = vld [vmem:[%s2 + $0x2f0] sm:$0xff]
    %v938 = vld [vmem:[%s2 + $0x2f8] sm:$0xff]
    %v939 = vpack.c.bf16 %v812, %v811
    %v940 = vpack.c.bf16 %v814, %v813
    %v941 = vpack.c.bf16 %v816, %v815
    %v942 = vpack.c.bf16 %v818, %v817
    %v943 = vpack.c.bf16 %v820, %v819
    %v944 = vpack.c.bf16 %v822, %v821
    %v945 = vpack.c.bf16 %v824, %v823
    %v946 = vpack.c.bf16 %v826, %v825
    %v947 = vpack.c.bf16 %v828, %v827
    %v948 = vpack.c.bf16 %v830, %v829
    %v949 = vpack.c.bf16 %v832, %v831
    %v950 = vpack.c.bf16 %v834, %v833
    %v951 = vpack.c.bf16 %v836, %v835
    %v952 = vpack.c.bf16 %v838, %v837
    %v953 = vpack.c.bf16 %v840, %v839
    %v954 = vpack.c.bf16 %v842, %v841
    %956 = vset.pattern.permute.xlu0 0
    %957 = vperm.xlu0 %956, %v71
    %v958 = vpop.permute.xlu0 %957
    %961 = vset.pattern.permute.xlu0 0
    %962 = vperm.xlu0 %961, %v72
    %v963 = vpop.permute.xlu0 %962
    %966 = vset.pattern.permute.xlu0 0
    %967 = vperm.xlu0 %966, %v73
    %v968 = vpop.permute.xlu0 %967
    %971 = vset.pattern.permute.xlu0 0
    %972 = vperm.xlu0 %971, %v74
    %v973 = vpop.permute.xlu0 %972
    %976 = vset.pattern.permute.xlu0 0
    %977 = vperm.xlu0 %976, %v75
    %v978 = vpop.permute.xlu0 %977
    %981 = vset.pattern.permute.xlu0 0
    %982 = vperm.xlu0 %981, %v76
    %v983 = vpop.permute.xlu0 %982
    %986 = vset.pattern.permute.xlu0 0
    %987 = vperm.xlu0 %986, %v77
    %v988 = vpop.permute.xlu0 %987
    %991 = vset.pattern.permute.xlu0 0
    %992 = vperm.xlu0 %991, %v78
    %v993 = vpop.permute.xlu0 %992
    %996 = vset.pattern.permute.xlu0 0
    %997 = vperm.xlu0 %996, %v79
    %v998 = vpop.permute.xlu0 %997
    %1001 = vset.pattern.permute.xlu0 0
    %1002 = vperm.xlu0 %1001, %v80
    %v1003 = vpop.permute.xlu0 %1002
    %1006 = vset.pattern.permute.xlu0 0
    %1007 = vperm.xlu0 %1006, %v81
    %v1008 = vpop.permute.xlu0 %1007
    %1011 = vset.pattern.permute.xlu0 0
    %1012 = vperm.xlu0 %1011, %v82
    %v1013 = vpop.permute.xlu0 %1012
    %1016 = vset.pattern.permute.xlu0 0
    %1017 = vperm.xlu0 %1016, %v83
    %v1018 = vpop.permute.xlu0 %1017
    %1021 = vset.pattern.permute.xlu0 0
    %1022 = vperm.xlu0 %1021, %v84
    %v1023 = vpop.permute.xlu0 %1022
    %1026 = vset.pattern.permute.xlu0 0
    %1027 = vperm.xlu0 %1026, %v85
    %v1028 = vpop.permute.xlu0 %1027
    %1031 = vset.pattern.permute.xlu0 0
    %1032 = vperm.xlu0 %1031, %v86
    %v1033 = vpop.permute.xlu0 %1032
    %1036 = vset.pattern.permute.xlu0 0
    %1037 = vperm.xlu0 %1036, %v87
    %v1038 = vpop.permute.xlu0 %1037
    %1041 = vset.pattern.permute.xlu0 0
    %1042 = vperm.xlu0 %1041, %v88
    %v1043 = vpop.permute.xlu0 %1042
    %1046 = vset.pattern.permute.xlu0 0
    %1047 = vperm.xlu0 %1046, %v89
    %v1048 = vpop.permute.xlu0 %1047
    %1051 = vset.pattern.permute.xlu0 0
    %1052 = vperm.xlu0 %1051, %v90
    %v1053 = vpop.permute.xlu0 %1052
    %1056 = vset.pattern.permute.xlu0 0
    %1057 = vperm.xlu0 %1056, %v91
    %v1058 = vpop.permute.xlu0 %1057
    %1061 = vset.pattern.permute.xlu0 0
    %1062 = vperm.xlu0 %1061, %v92
    %v1063 = vpop.permute.xlu0 %1062
    %1066 = vset.pattern.permute.xlu0 0
    %1067 = vperm.xlu0 %1066, %v93
    %v1068 = vpop.permute.xlu0 %1067
    %1071 = vset.pattern.permute.xlu0 0
    %1072 = vperm.xlu0 %1071, %v94
    %v1073 = vpop.permute.xlu0 %1072
    %1076 = vset.pattern.permute.xlu0 0
    %1077 = vperm.xlu0 %1076, %v95
    %v1078 = vpop.permute.xlu0 %1077
    %1081 = vset.pattern.permute.xlu0 0
    %1082 = vperm.xlu0 %1081, %v96
    %v1083 = vpop.permute.xlu0 %1082
    %1086 = vset.pattern.permute.xlu0 0
    %1087 = vperm.xlu0 %1086, %v97
    %v1088 = vpop.permute.xlu0 %1087
    %1091 = vset.pattern.permute.xlu0 0
    %1092 = vperm.xlu0 %1091, %v98
    %v1093 = vpop.permute.xlu0 %1092
    %1096 = vset.pattern.permute.xlu0 0
    %1097 = vperm.xlu0 %1096, %v99
    %v1098 = vpop.permute.xlu0 %1097
    %1101 = vset.pattern.permute.xlu0 0
    %1102 = vperm.xlu0 %1101, %v100
    %v1103 = vpop.permute.xlu0 %1102
    %1106 = vset.pattern.permute.xlu0 0
    %1107 = vperm.xlu0 %1106, %v101
    %v1108 = vpop.permute.xlu0 %1107
    %1111 = vset.pattern.permute.xlu0 0
    %1112 = vperm.xlu0 %1111, %v102
    %v1113 = vpop.permute.xlu0 %1112
    %1116 = vset.pattern.permute.xlu0 0
    %1117 = vperm.xlu0 %1116, %v103
    %v1118 = vpop.permute.xlu0 %1117
    %1121 = vset.pattern.permute.xlu0 0
    %1122 = vperm.xlu0 %1121, %v104
    %v1123 = vpop.permute.xlu0 %1122
    %1126 = vset.pattern.permute.xlu0 0
    %1127 = vperm.xlu0 %1126, %v105
    %v1128 = vpop.permute.xlu0 %1127
    %1131 = vset.pattern.permute.xlu0 0
    %1132 = vperm.xlu0 %1131, %v106
    %v1133 = vpop.permute.xlu0 %1132
    %1136 = vset.pattern.permute.xlu0 0
    %1137 = vperm.xlu0 %1136, %v107
    %v1138 = vpop.permute.xlu0 %1137
    %1141 = vset.pattern.permute.xlu0 0
    %1142 = vperm.xlu0 %1141, %v108
    %v1143 = vpop.permute.xlu0 %1142
    %1146 = vset.pattern.permute.xlu0 0
    %1147 = vperm.xlu0 %1146, %v109
    %v1148 = vpop.permute.xlu0 %1147
    %1151 = vset.pattern.permute.xlu0 0
    %1152 = vperm.xlu0 %1151, %v110
    %v1153 = vpop.permute.xlu0 %1152
    %1156 = vset.pattern.permute.xlu0 0
    %1157 = vperm.xlu0 %1156, %v111
    %v1158 = vpop.permute.xlu0 %1157
    %1161 = vset.pattern.permute.xlu0 0
    %1162 = vperm.xlu0 %1161, %v112
    %v1163 = vpop.permute.xlu0 %1162
    %1166 = vset.pattern.permute.xlu0 0
    %1167 = vperm.xlu0 %1166, %v113
    %v1168 = vpop.permute.xlu0 %1167
    %1171 = vset.pattern.permute.xlu0 0
    %1172 = vperm.xlu0 %1171, %v114
    %v1173 = vpop.permute.xlu0 %1172
    %1176 = vset.pattern.permute.xlu0 0
    %1177 = vperm.xlu0 %1176, %v115
    %v1178 = vpop.permute.xlu0 %1177
    %1181 = vset.pattern.permute.xlu0 0
    %1182 = vperm.xlu0 %1181, %v116
    %v1183 = vpop.permute.xlu0 %1182
    %1186 = vset.pattern.permute.xlu0 0
    %1187 = vperm.xlu0 %1186, %v117
    %v1188 = vpop.permute.xlu0 %1187
    %1191 = vset.pattern.permute.xlu0 0
    %1192 = vperm.xlu0 %1191, %v118
    %v1193 = vpop.permute.xlu0 %1192
    %1196 = vset.pattern.permute.xlu0 0
    %1197 = vperm.xlu0 %1196, %v119
    %v1198 = vpop.permute.xlu0 %1197
    %1201 = vset.pattern.permute.xlu0 0
    %1202 = vperm.xlu0 %1201, %v120
    %v1203 = vpop.permute.xlu0 %1202
    %1206 = vset.pattern.permute.xlu0 0
    %1207 = vperm.xlu0 %1206, %v121
    %v1208 = vpop.permute.xlu0 %1207
    %1211 = vset.pattern.permute.xlu0 0
    %1212 = vperm.xlu0 %1211, %v122
    %v1213 = vpop.permute.xlu0 %1212
    %1216 = vset.pattern.permute.xlu0 0
    %1217 = vperm.xlu0 %1216, %v123
    %v1218 = vpop.permute.xlu0 %1217
    %1221 = vset.pattern.permute.xlu0 0
    %1222 = vperm.xlu0 %1221, %v124
    %v1223 = vpop.permute.xlu0 %1222
    %1226 = vset.pattern.permute.xlu0 0
    %1227 = vperm.xlu0 %1226, %v125
    %v1228 = vpop.permute.xlu0 %1227
    %1231 = vset.pattern.permute.xlu0 0
    %1232 = vperm.xlu0 %1231, %v126
    %v1233 = vpop.permute.xlu0 %1232
    %1236 = vset.pattern.permute.xlu0 0
    %1237 = vperm.xlu0 %1236, %v127
    %v1238 = vpop.permute.xlu0 %1237
    %1241 = vset.pattern.permute.xlu0 0
    %1242 = vperm.xlu0 %1241, %v128
    %v1243 = vpop.permute.xlu0 %1242
    %1246 = vset.pattern.permute.xlu0 0
    %1247 = vperm.xlu0 %1246, %v129
    %v1248 = vpop.permute.xlu0 %1247
    %1251 = vset.pattern.permute.xlu0 0
    %1252 = vperm.xlu0 %1251, %v130
    %v1253 = vpop.permute.xlu0 %1252
    %1256 = vset.pattern.permute.xlu0 0
    %1257 = vperm.xlu0 %1256, %v131
    %v1258 = vpop.permute.xlu0 %1257
    %1261 = vset.pattern.permute.xlu0 0
    %1262 = vperm.xlu0 %1261, %v132
    %v1263 = vpop.permute.xlu0 %1262
    %1266 = vset.pattern.permute.xlu0 0
    %1267 = vperm.xlu0 %1266, %v133
    %v1268 = vpop.permute.xlu0 %1267
    %1271 = vset.pattern.permute.xlu0 0
    %1272 = vperm.xlu0 %1271, %v134
    %v1273 = vpop.permute.xlu0 %1272
    %1276 = vset.pattern.permute.xlu0 0
    %1277 = vperm.xlu0 %1276, %v135
    %v1278 = vpop.permute.xlu0 %1277
    %1281 = vset.pattern.permute.xlu0 0
    %1282 = vperm.xlu0 %1281, %v136
    %v1283 = vpop.permute.xlu0 %1282
    %1286 = vset.pattern.permute.xlu0 0
    %1287 = vperm.xlu0 %1286, %v137
    %v1288 = vpop.permute.xlu0 %1287
    %1291 = vset.pattern.permute.xlu0 0
    %1292 = vperm.xlu0 %1291, %v138
    %v1293 = vpop.permute.xlu0 %1292
    %1296 = vset.pattern.permute.xlu0 0
    %1297 = vperm.xlu0 %1296, %v139
    %v1298 = vpop.permute.xlu0 %1297
    %1301 = vset.pattern.permute.xlu0 0
    %1302 = vperm.xlu0 %1301, %v140
    %v1303 = vpop.permute.xlu0 %1302
    %1306 = vset.pattern.permute.xlu0 0
    %1307 = vperm.xlu0 %1306, %v141
    %v1308 = vpop.permute.xlu0 %1307
    %1311 = vset.pattern.permute.xlu0 0
    %1312 = vperm.xlu0 %1311, %v142
    %v1313 = vpop.permute.xlu0 %1312
    %1316 = vset.pattern.permute.xlu0 0
    %1317 = vperm.xlu0 %1316, %v143
    %v1318 = vpop.permute.xlu0 %1317
    %1321 = vset.pattern.permute.xlu0 0
    %1322 = vperm.xlu0 %1321, %v144
    %v1323 = vpop.permute.xlu0 %1322
    %1326 = vset.pattern.permute.xlu0 0
    %1327 = vperm.xlu0 %1326, %v145
    %v1328 = vpop.permute.xlu0 %1327
    %1331 = vset.pattern.permute.xlu0 0
    %1332 = vperm.xlu0 %1331, %v146
    %v1333 = vpop.permute.xlu0 %1332
    %1336 = vset.pattern.permute.xlu0 0
    %1337 = vperm.xlu0 %1336, %v147
    %v1338 = vpop.permute.xlu0 %1337
    %1341 = vset.pattern.permute.xlu0 0
    %1342 = vperm.xlu0 %1341, %v148
    %v1343 = vpop.permute.xlu0 %1342
    %1346 = vset.pattern.permute.xlu0 0
    %1347 = vperm.xlu0 %1346, %v149
    %v1348 = vpop.permute.xlu0 %1347
    %1351 = vset.pattern.permute.xlu0 0
    %1352 = vperm.xlu0 %1351, %v150
    %v1353 = vpop.permute.xlu0 %1352
    %1356 = vset.pattern.permute.xlu0 0
    %1357 = vperm.xlu0 %1356, %v151
    %v1358 = vpop.permute.xlu0 %1357
    %1361 = vset.pattern.permute.xlu0 0
    %1362 = vperm.xlu0 %1361, %v152
    %v1363 = vpop.permute.xlu0 %1362
    %1366 = vset.pattern.permute.xlu0 0
    %1367 = vperm.xlu0 %1366, %v153
    %v1368 = vpop.permute.xlu0 %1367
    %1371 = vset.pattern.permute.xlu0 0
    %1372 = vperm.xlu0 %1371, %v154
    %v1373 = vpop.permute.xlu0 %1372
    %1376 = vset.pattern.permute.xlu0 0
    %1377 = vperm.xlu0 %1376, %v155
    %v1378 = vpop.permute.xlu0 %1377
    %1381 = vset.pattern.permute.xlu0 0
    %1382 = vperm.xlu0 %1381, %v156
    %v1383 = vpop.permute.xlu0 %1382
    %1386 = vset.pattern.permute.xlu0 0
    %1387 = vperm.xlu0 %1386, %v157
    %v1388 = vpop.permute.xlu0 %1387
    %1391 = vset.pattern.permute.xlu0 0
    %1392 = vperm.xlu0 %1391, %v158
    %v1393 = vpop.permute.xlu0 %1392
    %1396 = vset.pattern.permute.xlu0 0
    %1397 = vperm.xlu0 %1396, %v159
    %v1398 = vpop.permute.xlu0 %1397
    %1401 = vset.pattern.permute.xlu0 0
    %1402 = vperm.xlu0 %1401, %v160
    %v1403 = vpop.permute.xlu0 %1402
    %1406 = vset.pattern.permute.xlu0 0
    %1407 = vperm.xlu0 %1406, %v161
    %v1408 = vpop.permute.xlu0 %1407
    %1411 = vset.pattern.permute.xlu0 0
    %1412 = vperm.xlu0 %1411, %v162
    %v1413 = vpop.permute.xlu0 %1412
    %1416 = vset.pattern.permute.xlu0 0
    %1417 = vperm.xlu0 %1416, %v163
    %v1418 = vpop.permute.xlu0 %1417
    %1421 = vset.pattern.permute.xlu0 0
    %1422 = vperm.xlu0 %1421, %v164
    %v1423 = vpop.permute.xlu0 %1422
    %1426 = vset.pattern.permute.xlu0 0
    %1427 = vperm.xlu0 %1426, %v165
    %v1428 = vpop.permute.xlu0 %1427
    %1431 = vset.pattern.permute.xlu0 0
    %1432 = vperm.xlu0 %1431, %v166
    %v1433 = vpop.permute.xlu0 %1432
    %v1531 = vunpack.c.l.b16 %v843
    %v1532 = vunpack.c.h.b16 %v843
    %v1533 = vunpack.c.l.b16 %v844
    %v1534 = vunpack.c.h.b16 %v844
    %v1535 = vunpack.c.l.b16 %v845
    %v1536 = vunpack.c.h.b16 %v845
    %v1537 = vunpack.c.l.b16 %v846
    %v1538 = vunpack.c.h.b16 %v846
    %v1539 = vunpack.c.l.b16 %v847
    %v1540 = vunpack.c.h.b16 %v847
    %v1541 = vunpack.c.l.b16 %v848
    %v1542 = vunpack.c.h.b16 %v848
    %v1543 = vunpack.c.l.b16 %v849
    %v1544 = vunpack.c.h.b16 %v849
    %v1545 = vunpack.c.l.b16 %v850
    %v1546 = vunpack.c.h.b16 %v850
    %v1547 = vunpack.c.l.b16 %v851
    %v1548 = vunpack.c.h.b16 %v851
    %v1549 = vunpack.c.l.b16 %v852
    %v1550 = vunpack.c.h.b16 %v852
    %v1551 = vunpack.c.l.b16 %v853
    %v1552 = vunpack.c.h.b16 %v853
    %v1553 = vunpack.c.l.b16 %v854
    %v1554 = vunpack.c.h.b16 %v854
    %v1555 = vunpack.c.l.b16 %v855
    %v1556 = vunpack.c.h.b16 %v855
    %v1557 = vunpack.c.l.b16 %v856
    %v1558 = vunpack.c.h.b16 %v856
    %v1559 = vunpack.c.l.b16 %v857
    %v1560 = vunpack.c.h.b16 %v857
    %v1561 = vunpack.c.l.b16 %v858
    %v1562 = vunpack.c.h.b16 %v858
    %v1563 = vunpack.c.l.b16 %v859
    %v1564 = vunpack.c.h.b16 %v859
    %v1565 = vunpack.c.l.b16 %v860
    %v1566 = vunpack.c.h.b16 %v860
    %v1567 = vunpack.c.l.b16 %v861
    %v1568 = vunpack.c.h.b16 %v861
    %v1569 = vunpack.c.l.b16 %v862
    %v1570 = vunpack.c.h.b16 %v862
    %v1571 = vunpack.c.l.b16 %v863
    %v1572 = vunpack.c.h.b16 %v863
    %v1573 = vunpack.c.l.b16 %v864
    %v1574 = vunpack.c.h.b16 %v864
    %v1575 = vunpack.c.l.b16 %v865
    %v1576 = vunpack.c.h.b16 %v865
    %v1577 = vunpack.c.l.b16 %v866
    %v1578 = vunpack.c.h.b16 %v866
    %v1579 = vunpack.c.l.b16 %v867
    %v1580 = vunpack.c.h.b16 %v867
    %v1581 = vunpack.c.l.b16 %v868
    %v1582 = vunpack.c.h.b16 %v868
    %v1583 = vunpack.c.l.b16 %v869
    %v1584 = vunpack.c.h.b16 %v869
    %v1585 = vunpack.c.l.b16 %v870
    %v1586 = vunpack.c.h.b16 %v870
    %v1587 = vunpack.c.l.b16 %v871
    %v1588 = vunpack.c.h.b16 %v871
    %v1589 = vunpack.c.l.b16 %v872
    %v1590 = vunpack.c.h.b16 %v872
    %v1591 = vunpack.c.l.b16 %v873
    %v1592 = vunpack.c.h.b16 %v873
    %v1593 = vunpack.c.l.b16 %v874
    %v1594 = vunpack.c.h.b16 %v874
    %v1595 = vunpack.c.l.b16 %v875
    %v1596 = vunpack.c.h.b16 %v875
    %v1597 = vunpack.c.l.b16 %v876
    %v1598 = vunpack.c.h.b16 %v876
    %v1599 = vunpack.c.l.b16 %v877
    %v1600 = vunpack.c.h.b16 %v877
    %v1601 = vunpack.c.l.b16 %v878
    %v1602 = vunpack.c.h.b16 %v878
    %v1603 = vunpack.c.l.b16 %v879
    %v1604 = vunpack.c.h.b16 %v879
    %v1605 = vunpack.c.l.b16 %v880
    %v1606 = vunpack.c.h.b16 %v880
    %v1607 = vunpack.c.l.b16 %v881
    %v1608 = vunpack.c.h.b16 %v881
    %v1609 = vunpack.c.l.b16 %v882
    %v1610 = vunpack.c.h.b16 %v882
    %v1611 = vunpack.c.l.b16 %v883
    %v1612 = vunpack.c.h.b16 %v883
    %v1613 = vunpack.c.l.b16 %v884
    %v1614 = vunpack.c.h.b16 %v884
    %v1615 = vunpack.c.l.b16 %v885
    %v1616 = vunpack.c.h.b16 %v885
    %v1617 = vunpack.c.l.b16 %v886
    %v1618 = vunpack.c.h.b16 %v886
    %v1619 = vunpack.c.l.b16 %v887
    %v1620 = vunpack.c.h.b16 %v887
    %v1621 = vunpack.c.l.b16 %v888
    %v1622 = vunpack.c.h.b16 %v888
    %v1623 = vunpack.c.l.b16 %v889
    %v1624 = vunpack.c.h.b16 %v889
    %v1625 = vunpack.c.l.b16 %v890
    %v1626 = vunpack.c.h.b16 %v890
    %v1627 = vunpack.c.l.b16 %v891
    %v1628 = vunpack.c.h.b16 %v891
    %v1629 = vunpack.c.l.b16 %v892
    %v1630 = vunpack.c.h.b16 %v892
    %v1631 = vunpack.c.l.b16 %v893
    %v1632 = vunpack.c.h.b16 %v893
    %v1633 = vunpack.c.l.b16 %v894
    %v1634 = vunpack.c.h.b16 %v894
    %v1635 = vunpack.c.l.b16 %v895
    %v1636 = vunpack.c.h.b16 %v895
    %v1637 = vunpack.c.l.b16 %v896
    %v1638 = vunpack.c.h.b16 %v896
    %v1639 = vunpack.c.l.b16 %v897
    %v1640 = vunpack.c.h.b16 %v897
    %v1641 = vunpack.c.l.b16 %v898
    %v1642 = vunpack.c.h.b16 %v898
    %v1643 = vunpack.c.l.b16 %v899
    %v1644 = vunpack.c.h.b16 %v899
    %v1645 = vunpack.c.l.b16 %v900
    %v1646 = vunpack.c.h.b16 %v900
    %v1647 = vunpack.c.l.b16 %v901
    %v1648 = vunpack.c.h.b16 %v901
    %v1649 = vunpack.c.l.b16 %v902
    %v1650 = vunpack.c.h.b16 %v902
    %v1651 = vunpack.c.l.b16 %v903
    %v1652 = vunpack.c.h.b16 %v903
    %v1653 = vunpack.c.l.b16 %v904
    %v1654 = vunpack.c.h.b16 %v904
    %v1655 = vunpack.c.l.b16 %v905
    %v1656 = vunpack.c.h.b16 %v905
    %v1657 = vunpack.c.l.b16 %v906
    %v1658 = vunpack.c.h.b16 %v906
    %v1659 = vunpack.c.l.b16 %v907
    %v1660 = vunpack.c.h.b16 %v907
    %v1661 = vunpack.c.l.b16 %v908
    %v1662 = vunpack.c.h.b16 %v908
    %v1663 = vunpack.c.l.b16 %v909
    %v1664 = vunpack.c.h.b16 %v909
    %v1665 = vunpack.c.l.b16 %v910
    %v1666 = vunpack.c.h.b16 %v910
    %v1667 = vunpack.c.l.b16 %v911
    %v1668 = vunpack.c.h.b16 %v911
    %v1669 = vunpack.c.l.b16 %v912
    %v1670 = vunpack.c.h.b16 %v912
    %v1671 = vunpack.c.l.b16 %v913
    %v1672 = vunpack.c.h.b16 %v913
    %v1673 = vunpack.c.l.b16 %v914
    %v1674 = vunpack.c.h.b16 %v914
    %v1675 = vunpack.c.l.b16 %v915
    %v1676 = vunpack.c.h.b16 %v915
    %v1677 = vunpack.c.l.b16 %v916
    %v1678 = vunpack.c.h.b16 %v916
    %v1679 = vunpack.c.l.b16 %v917
    %v1680 = vunpack.c.h.b16 %v917
    %v1681 = vunpack.c.l.b16 %v918
    %v1682 = vunpack.c.h.b16 %v918
    %v1683 = vunpack.c.l.b16 %v919
    %v1684 = vunpack.c.h.b16 %v919
    %v1685 = vunpack.c.l.b16 %v920
    %v1686 = vunpack.c.h.b16 %v920
    %v1687 = vunpack.c.l.b16 %v921
    %v1688 = vunpack.c.h.b16 %v921
    %v1689 = vunpack.c.l.b16 %v922
    %v1690 = vunpack.c.h.b16 %v922
    %v1691 = vunpack.c.l.b16 %v923
    %v1692 = vunpack.c.h.b16 %v923
    %v1693 = vunpack.c.l.b16 %v924
    %v1694 = vunpack.c.h.b16 %v924
    %v1695 = vunpack.c.l.b16 %v925
    %v1696 = vunpack.c.h.b16 %v925
    %v1697 = vunpack.c.l.b16 %v926
    %v1698 = vunpack.c.h.b16 %v926
    %v1699 = vunpack.c.l.b16 %v927
    %v1700 = vunpack.c.h.b16 %v927
    %v1701 = vunpack.c.l.b16 %v928
    %v1702 = vunpack.c.h.b16 %v928
    %v1703 = vunpack.c.l.b16 %v929
    %v1704 = vunpack.c.h.b16 %v929
    %v1705 = vunpack.c.l.b16 %v930
    %v1706 = vunpack.c.h.b16 %v930
    %v1707 = vunpack.c.l.b16 %v931
    %v1708 = vunpack.c.h.b16 %v931
    %v1709 = vunpack.c.l.b16 %v932
    %v1710 = vunpack.c.h.b16 %v932
    %v1711 = vunpack.c.l.b16 %v933
    %v1712 = vunpack.c.h.b16 %v933
    %v1713 = vunpack.c.l.b16 %v934
    %v1714 = vunpack.c.h.b16 %v934
    %v1715 = vunpack.c.l.b16 %v935
    %v1716 = vunpack.c.h.b16 %v935
    %v1717 = vunpack.c.l.b16 %v936
    %v1718 = vunpack.c.h.b16 %v936
    %v1719 = vunpack.c.l.b16 %v937
    %v1720 = vunpack.c.h.b16 %v937
    %v1721 = vunpack.c.l.b16 %v938
    %v1722 = vunpack.c.h.b16 %v938
    %v1723 = vpack.c.b16 %v1533, %v1531
    %v1724 = vpack.c.b16 %v1534, %v1532
    %v1725 = vpack.c.b16 %v1537, %v1535
    %v1726 = vpack.c.b16 %v1538, %v1536
    %v1727 = vpack.c.b16 %v1541, %v1539
    %v1728 = vpack.c.b16 %v1542, %v1540
    %v1729 = vpack.c.b16 %v1545, %v1543
    %v1730 = vpack.c.b16 %v1546, %v1544
    %v1731 = vpack.c.b16 %v1549, %v1547
    %v1732 = vpack.c.b16 %v1550, %v1548
    %v1733 = vpack.c.b16 %v1553, %v1551
    %v1734 = vpack.c.b16 %v1554, %v1552
    %v1735 = vpack.c.b16 %v1557, %v1555
    %v1736 = vpack.c.b16 %v1558, %v1556
    %v1737 = vpack.c.b16 %v1561, %v1559
    %v1738 = vpack.c.b16 %v1562, %v1560
    %v1739 = vpack.c.b16 %v1565, %v1563
    %v1740 = vpack.c.b16 %v1566, %v1564
    %v1741 = vpack.c.b16 %v1569, %v1567
    %v1742 = vpack.c.b16 %v1570, %v1568
    %v1743 = vpack.c.b16 %v1573, %v1571
    %v1744 = vpack.c.b16 %v1574, %v1572
    %v1745 = vpack.c.b16 %v1577, %v1575
    %v1746 = vpack.c.b16 %v1578, %v1576
    %v1747 = vpack.c.b16 %v1581, %v1579
    %v1748 = vpack.c.b16 %v1582, %v1580
    %v1749 = vpack.c.b16 %v1585, %v1583
    %v1750 = vpack.c.b16 %v1586, %v1584
    %v1751 = vpack.c.b16 %v1589, %v1587
    %v1752 = vpack.c.b16 %v1590, %v1588
    %v1753 = vpack.c.b16 %v1593, %v1591
    %v1754 = vpack.c.b16 %v1594, %v1592
    %v1755 = vpack.c.b16 %v1597, %v1595
    %v1756 = vpack.c.b16 %v1598, %v1596
    %v1757 = vpack.c.b16 %v1601, %v1599
    %v1758 = vpack.c.b16 %v1602, %v1600
    %v1759 = vpack.c.b16 %v1605, %v1603
    %v1760 = vpack.c.b16 %v1606, %v1604
    %v1761 = vpack.c.b16 %v1609, %v1607
    %v1762 = vpack.c.b16 %v1610, %v1608
    %v1763 = vpack.c.b16 %v1613, %v1611
    %v1764 = vpack.c.b16 %v1614, %v1612
    %v1765 = vpack.c.b16 %v1617, %v1615
    %v1766 = vpack.c.b16 %v1618, %v1616
    %v1767 = vpack.c.b16 %v1621, %v1619
    %v1768 = vpack.c.b16 %v1622, %v1620
    %v1769 = vpack.c.b16 %v1625, %v1623
    %v1770 = vpack.c.b16 %v1626, %v1624
    %v1771 = vpack.c.b16 %v1629, %v1627
    %v1772 = vpack.c.b16 %v1630, %v1628
    %v1773 = vpack.c.b16 %v1633, %v1631
    %v1774 = vpack.c.b16 %v1634, %v1632
    %v1775 = vpack.c.b16 %v1637, %v1635
    %v1776 = vpack.c.b16 %v1638, %v1636
    %v1777 = vpack.c.b16 %v1641, %v1639
    %v1778 = vpack.c.b16 %v1642, %v1640
    %v1779 = vpack.c.b16 %v1645, %v1643
    %v1780 = vpack.c.b16 %v1646, %v1644
    %v1781 = vpack.c.b16 %v1649, %v1647
    %v1782 = vpack.c.b16 %v1650, %v1648
    %v1783 = vpack.c.b16 %v1653, %v1651
    %v1784 = vpack.c.b16 %v1654, %v1652
    %v1785 = vpack.c.b16 %v1657, %v1655
    %v1786 = vpack.c.b16 %v1658, %v1656
    %v1787 = vpack.c.b16 %v1661, %v1659
    %v1788 = vpack.c.b16 %v1662, %v1660
    %v1789 = vpack.c.b16 %v1665, %v1663
    %v1790 = vpack.c.b16 %v1666, %v1664
    %v1791 = vpack.c.b16 %v1669, %v1667
    %v1792 = vpack.c.b16 %v1670, %v1668
    %v1793 = vpack.c.b16 %v1673, %v1671
    %v1794 = vpack.c.b16 %v1674, %v1672
    %v1795 = vpack.c.b16 %v1677, %v1675
    %v1796 = vpack.c.b16 %v1678, %v1676
    %v1797 = vpack.c.b16 %v1681, %v1679
    %v1798 = vpack.c.b16 %v1682, %v1680
    %v1799 = vpack.c.b16 %v1685, %v1683
    %v1800 = vpack.c.b16 %v1686, %v1684
    %v1801 = vpack.c.b16 %v1689, %v1687
    %v1802 = vpack.c.b16 %v1690, %v1688
    %v1803 = vpack.c.b16 %v1693, %v1691
    %v1804 = vpack.c.b16 %v1694, %v1692
    %v1805 = vpack.c.b16 %v1697, %v1695
    %v1806 = vpack.c.b16 %v1698, %v1696
    %v1807 = vpack.c.b16 %v1701, %v1699
    %v1808 = vpack.c.b16 %v1702, %v1700
    %v1809 = vpack.c.b16 %v1705, %v1703
    %v1810 = vpack.c.b16 %v1706, %v1704
    %v1811 = vpack.c.b16 %v1709, %v1707
    %v1812 = vpack.c.b16 %v1710, %v1708
    %v1813 = vpack.c.b16 %v1713, %v1711
    %v1814 = vpack.c.b16 %v1714, %v1712
    %v1815 = vpack.c.b16 %v1717, %v1715
    %v1816 = vpack.c.b16 %v1718, %v1716
    %v1817 = vpack.c.b16 %v1721, %v1719
    %v1818 = vpack.c.b16 %v1722, %v1720
    %1915 = vmatprep.subr.bf16.mxu0 0
    %1916 = vmatpush1.bf16.msra.mxu0 %v946
    %1917 = vmatprep.subr.bf16.mxu0 0
    %1918 = vmatpush1.bf16.msra.mxu0 %v945
    %1919 = vmatprep.subr.bf16.mxu0 0
    %1920 = vmatpush1.bf16.msra.mxu0 %v944
    %1921 = vmatprep.subr.bf16.mxu0 0
    %1922 = vmatpush1.bf16.msra.mxu0 %v943
    %1923 = vmatprep.subr.bf16.mxu0 0
    %1924 = vmatpush1.bf16.msra.mxu0 %v942
    %1925 = vmatprep.subr.bf16.mxu0 0
    %1926 = vmatpush1.bf16.msra.mxu0 %v941
    %1927 = vmatprep.subr.bf16.mxu0 0
    %1928 = vmatpush1.bf16.msra.mxu0 %v940
    %1929 = vmatprep.subr.bf16.mxu0 0
    %1930 = vmatpush1.bf16.msra.mxu0 %v939
    %1931 = vmatprep.subr.bf16.mxu0 0
    %1932 = vmatpush2.bf16.msra.mxu0 %v954
    %1933 = vmatprep.subr.bf16.mxu0 0
    %1934 = vmatpush2.bf16.msra.mxu0 %v953
    %1935 = vmatprep.subr.bf16.mxu0 0
    %1936 = vmatpush2.bf16.msra.mxu0 %v952
    %1937 = vmatprep.subr.bf16.mxu0 0
    %1938 = vmatpush2.bf16.msra.mxu0 %v951
    %1939 = vmatprep.subr.bf16.mxu0 0
    %1940 = vmatpush2.bf16.msra.mxu0 %v950
    %1941 = vmatprep.subr.bf16.mxu0 0
    %1942 = vmatpush2.bf16.msra.mxu0 %v949
    %1943 = vmatprep.subr.bf16.mxu0 0
    %1944 = vmatpush2.bf16.msra.mxu0 %v948
    %1945 = vmatprep.subr.bf16.mxu0 0
    %1946 = vmatpush2.bf16.msra.mxu0 %v947
    %1947 = vmatprep.mubr.bf16.mxu0 %v1724
    %1948 = vmatmul.mubr.bf16.gmra.mxu0 %v1723
    %v1949 = vpop.f32.mrf.mxu0
    %v1950 = vadd.f32 %v958, %v1949
    %v1951 = vpop.f32.mrf.mxu0
    %v1952 = vpop.f32.mrf.mxu0
    %v1953 = vadd.f32 %v963, %v1952
    %v1954 = vpop.f32.mrf.mxu0
    %1955 = vmatprep.mubr.bf16.mxu0 %v1726
    %1956 = vmatmul.mubr.bf16.gmra.mxu0 %v1725
    %v1957 = vpop.f32.mrf.mxu0
    %v1958 = vadd.f32 %v968, %v1957
    %v1959 = vpop.f32.mrf.mxu0
    %v1960 = vpop.f32.mrf.mxu0
    %v1961 = vadd.f32 %v973, %v1960
    %v1962 = vpop.f32.mrf.mxu0
    %1963 = vmatprep.mubr.bf16.mxu0 %v1728
    %1964 = vmatmul.mubr.bf16.gmra.mxu0 %v1727
    %v1965 = vpop.f32.mrf.mxu0
    %v1966 = vadd.f32 %v978, %v1965
    %v1967 = vpop.f32.mrf.mxu0
    %v1968 = vpop.f32.mrf.mxu0
    %v1969 = vadd.f32 %v983, %v1968
    %v1970 = vpop.f32.mrf.mxu0
    %1971 = vmatprep.mubr.bf16.mxu0 %v1730
    %1972 = vmatmul.mubr.bf16.gmra.mxu0 %v1729
    %v1973 = vpop.f32.mrf.mxu0
    %v1974 = vadd.f32 %v988, %v1973
    %v1975 = vpop.f32.mrf.mxu0
    %v1976 = vpop.f32.mrf.mxu0
    %v1977 = vadd.f32 %v993, %v1976
    %v1978 = vpop.f32.mrf.mxu0
    %1979 = vmatprep.mubr.bf16.mxu0 %v1732
    %1980 = vmatmul.mubr.bf16.gmra.mxu0 %v1731
    %v1981 = vpop.f32.mrf.mxu0
    %v1982 = vadd.f32 %v998, %v1981
    %v1983 = vpop.f32.mrf.mxu0
    %v1984 = vpop.f32.mrf.mxu0
    %v1985 = vadd.f32 %v1003, %v1984
    %v1986 = vpop.f32.mrf.mxu0
    %1987 = vmatprep.mubr.bf16.mxu0 %v1734
    %1988 = vmatmul.mubr.bf16.gmra.mxu0 %v1733
    %v1989 = vpop.f32.mrf.mxu0
    %v1990 = vadd.f32 %v1008, %v1989
    %v1991 = vpop.f32.mrf.mxu0
    %v1992 = vpop.f32.mrf.mxu0
    %v1993 = vadd.f32 %v1013, %v1992
    %v1994 = vpop.f32.mrf.mxu0
    %1995 = vmatprep.mubr.bf16.mxu0 %v1736
    %1996 = vmatmul.mubr.bf16.gmra.mxu0 %v1735
    %v1997 = vpop.f32.mrf.mxu0
    %v1998 = vadd.f32 %v1018, %v1997
    %v1999 = vpop.f32.mrf.mxu0
    %v2000 = vpop.f32.mrf.mxu0
    %v2001 = vadd.f32 %v1023, %v2000
    %v2002 = vpop.f32.mrf.mxu0
    %2003 = vmatprep.mubr.bf16.mxu0 %v1738
    %2004 = vmatmul.mubr.bf16.gmra.mxu0 %v1737
    %v2005 = vpop.f32.mrf.mxu0
    %v2006 = vadd.f32 %v1028, %v2005
    %v2007 = vpop.f32.mrf.mxu0
    %v2008 = vpop.f32.mrf.mxu0
    %v2009 = vadd.f32 %v1033, %v2008
    %v2010 = vpop.f32.mrf.mxu0
    %2011 = vmatprep.mubr.bf16.mxu0 %v1740
    %2012 = vmatmul.mubr.bf16.gmra.mxu0 %v1739
    %v2013 = vpop.f32.mrf.mxu0
    %v2014 = vadd.f32 %v1038, %v2013
    %v2015 = vpop.f32.mrf.mxu0
    %v2016 = vpop.f32.mrf.mxu0
    %v2017 = vadd.f32 %v1043, %v2016
    %v2018 = vpop.f32.mrf.mxu0
    %2019 = vmatprep.mubr.bf16.mxu0 %v1742
    %2020 = vmatmul.mubr.bf16.gmra.mxu0 %v1741
    %v2021 = vpop.f32.mrf.mxu0
    %v2022 = vadd.f32 %v1048, %v2021
    %v2023 = vpop.f32.mrf.mxu0
    %v2024 = vpop.f32.mrf.mxu0
    %v2025 = vadd.f32 %v1053, %v2024
    %v2026 = vpop.f32.mrf.mxu0
    %2027 = vmatprep.mubr.bf16.mxu0 %v1744
    %2028 = vmatmul.mubr.bf16.gmra.mxu0 %v1743
    %v2029 = vpop.f32.mrf.mxu0
    %v2030 = vadd.f32 %v1058, %v2029
    %v2031 = vpop.f32.mrf.mxu0
    %v2032 = vpop.f32.mrf.mxu0
    %v2033 = vadd.f32 %v1063, %v2032
    %v2034 = vpop.f32.mrf.mxu0
    %2035 = vmatprep.mubr.bf16.mxu0 %v1746
    %2036 = vmatmul.mubr.bf16.gmra.mxu0 %v1745
    %v2037 = vpop.f32.mrf.mxu0
    %v2038 = vadd.f32 %v1068, %v2037
    %v2039 = vpop.f32.mrf.mxu0
    %v2040 = vpop.f32.mrf.mxu0
    %v2041 = vadd.f32 %v1073, %v2040
    %v2042 = vpop.f32.mrf.mxu0
    %2043 = vmatprep.mubr.bf16.mxu0 %v1748
    %2044 = vmatmul.mubr.bf16.gmra.mxu0 %v1747
    %v2045 = vpop.f32.mrf.mxu0
    %v2046 = vadd.f32 %v1078, %v2045
    %v2047 = vpop.f32.mrf.mxu0
    %v2048 = vpop.f32.mrf.mxu0
    %v2049 = vadd.f32 %v1083, %v2048
    %v2050 = vpop.f32.mrf.mxu0
    %2051 = vmatprep.mubr.bf16.mxu0 %v1750
    %2052 = vmatmul.mubr.bf16.gmra.mxu0 %v1749
    %v2053 = vpop.f32.mrf.mxu0
    %v2054 = vadd.f32 %v1088, %v2053
    %v2055 = vpop.f32.mrf.mxu0
    %v2056 = vpop.f32.mrf.mxu0
    %v2057 = vadd.f32 %v1093, %v2056
    %v2058 = vpop.f32.mrf.mxu0
    %2059 = vmatprep.mubr.bf16.mxu0 %v1752
    %2060 = vmatmul.mubr.bf16.gmra.mxu0 %v1751
    %v2061 = vpop.f32.mrf.mxu0
    %v2062 = vadd.f32 %v1098, %v2061
    %v2063 = vpop.f32.mrf.mxu0
    %v2064 = vpop.f32.mrf.mxu0
    %v2065 = vadd.f32 %v1103, %v2064
    %v2066 = vpop.f32.mrf.mxu0
    %2067 = vmatprep.mubr.bf16.mxu0 %v1754
    %2068 = vmatmul.mubr.bf16.gmra.mxu0 %v1753
    %v2069 = vpop.f32.mrf.mxu0
    %v2070 = vadd.f32 %v1108, %v2069
    %v2071 = vpop.f32.mrf.mxu0
    %v2072 = vpop.f32.mrf.mxu0
    %v2073 = vadd.f32 %v1113, %v2072
    %v2074 = vpop.f32.mrf.mxu0
    %2075 = vmatprep.mubr.bf16.mxu0 %v1756
    %2076 = vmatmul.mubr.bf16.gmra.mxu0 %v1755
    %v2077 = vpop.f32.mrf.mxu0
    %v2078 = vadd.f32 %v1118, %v2077
    %v2079 = vpop.f32.mrf.mxu0
    %v2080 = vpop.f32.mrf.mxu0
    %v2081 = vadd.f32 %v1123, %v2080
    %v2082 = vpop.f32.mrf.mxu0
    %2083 = vmatprep.mubr.bf16.mxu0 %v1758
    %2084 = vmatmul.mubr.bf16.gmra.mxu0 %v1757
    %v2085 = vpop.f32.mrf.mxu0
    %v2086 = vadd.f32 %v1128, %v2085
    %v2087 = vpop.f32.mrf.mxu0
    %v2088 = vpop.f32.mrf.mxu0
    %v2089 = vadd.f32 %v1133, %v2088
    %v2090 = vpop.f32.mrf.mxu0
    %2091 = vmatprep.mubr.bf16.mxu0 %v1760
    %2092 = vmatmul.mubr.bf16.gmra.mxu0 %v1759
    %v2093 = vpop.f32.mrf.mxu0
    %v2094 = vadd.f32 %v1138, %v2093
    %v2095 = vpop.f32.mrf.mxu0
    %v2096 = vpop.f32.mrf.mxu0
    %v2097 = vadd.f32 %v1143, %v2096
    %v2098 = vpop.f32.mrf.mxu0
    %2099 = vmatprep.mubr.bf16.mxu0 %v1762
    %2100 = vmatmul.mubr.bf16.gmra.mxu0 %v1761
    %v2101 = vpop.f32.mrf.mxu0
    %v2102 = vadd.f32 %v1148, %v2101
    %v2103 = vpop.f32.mrf.mxu0
    %v2104 = vpop.f32.mrf.mxu0
    %v2105 = vadd.f32 %v1153, %v2104
    %v2106 = vpop.f32.mrf.mxu0
    %2107 = vmatprep.mubr.bf16.mxu0 %v1764
    %2108 = vmatmul.mubr.bf16.gmra.mxu0 %v1763
    %v2109 = vpop.f32.mrf.mxu0
    %v2110 = vadd.f32 %v1158, %v2109
    %v2111 = vpop.f32.mrf.mxu0
    %v2112 = vpop.f32.mrf.mxu0
    %v2113 = vadd.f32 %v1163, %v2112
    %v2114 = vpop.f32.mrf.mxu0
    %2115 = vmatprep.mubr.bf16.mxu0 %v1766
    %2116 = vmatmul.mubr.bf16.gmra.mxu0 %v1765
    %v2117 = vpop.f32.mrf.mxu0
    %v2118 = vadd.f32 %v1168, %v2117
    %v2119 = vpop.f32.mrf.mxu0
    %v2120 = vpop.f32.mrf.mxu0
    %v2121 = vadd.f32 %v1173, %v2120
    %v2122 = vpop.f32.mrf.mxu0
    %2123 = vmatprep.mubr.bf16.mxu0 %v1768
    %2124 = vmatmul.mubr.bf16.gmra.mxu0 %v1767
    %v2125 = vpop.f32.mrf.mxu0
    %v2126 = vadd.f32 %v1178, %v2125
    %v2127 = vpop.f32.mrf.mxu0
    %v2128 = vpop.f32.mrf.mxu0
    %v2129 = vadd.f32 %v1183, %v2128
    %v2130 = vpop.f32.mrf.mxu0
    %2131 = vmatprep.mubr.bf16.mxu0 %v1770
    %2132 = vmatmul.mubr.bf16.gmra.mxu0 %v1769
    %v2133 = vpop.f32.mrf.mxu0
    %v2134 = vadd.f32 %v1188, %v2133
    %v2135 = vpop.f32.mrf.mxu0
    %v2136 = vpop.f32.mrf.mxu0
    %v2137 = vadd.f32 %v1193, %v2136
    %v2138 = vpop.f32.mrf.mxu0
    %2139 = vmatprep.mubr.bf16.mxu0 %v1772
    %2140 = vmatmul.mubr.bf16.gmra.mxu0 %v1771
    %v2141 = vpop.f32.mrf.mxu0
    %v2142 = vadd.f32 %v1198, %v2141
    %v2143 = vpop.f32.mrf.mxu0
    %v2144 = vpop.f32.mrf.mxu0
    %v2145 = vadd.f32 %v1203, %v2144
    %v2146 = vpop.f32.mrf.mxu0
    %2147 = vmatprep.mubr.bf16.mxu0 %v1774
    %2148 = vmatmul.mubr.bf16.gmra.mxu0 %v1773
    %v2149 = vpop.f32.mrf.mxu0
    %v2150 = vadd.f32 %v1208, %v2149
    %v2151 = vpop.f32.mrf.mxu0
    %v2152 = vpop.f32.mrf.mxu0
    %v2153 = vadd.f32 %v1213, %v2152
    %v2154 = vpop.f32.mrf.mxu0
    %2155 = vmatprep.mubr.bf16.mxu0 %v1776
    %2156 = vmatmul.mubr.bf16.gmra.mxu0 %v1775
    %v2157 = vpop.f32.mrf.mxu0
    %v2158 = vadd.f32 %v1218, %v2157
    %v2159 = vpop.f32.mrf.mxu0
    %v2160 = vpop.f32.mrf.mxu0
    %v2161 = vadd.f32 %v1223, %v2160
    %v2162 = vpop.f32.mrf.mxu0
    %2163 = vmatprep.mubr.bf16.mxu0 %v1778
    %2164 = vmatmul.mubr.bf16.gmra.mxu0 %v1777
    %v2165 = vpop.f32.mrf.mxu0
    %v2166 = vadd.f32 %v1228, %v2165
    %v2167 = vpop.f32.mrf.mxu0
    %v2168 = vpop.f32.mrf.mxu0
    %v2169 = vadd.f32 %v1233, %v2168
    %v2170 = vpop.f32.mrf.mxu0
    %2171 = vmatprep.mubr.bf16.mxu0 %v1780
    %2172 = vmatmul.mubr.bf16.gmra.mxu0 %v1779
    %v2173 = vpop.f32.mrf.mxu0
    %v2174 = vadd.f32 %v1238, %v2173
    %v2175 = vpop.f32.mrf.mxu0
    %v2176 = vpop.f32.mrf.mxu0
    %v2177 = vadd.f32 %v1243, %v2176
    %v2178 = vpop.f32.mrf.mxu0
    %2179 = vmatprep.mubr.bf16.mxu0 %v1782
    %2180 = vmatmul.mubr.bf16.gmra.mxu0 %v1781
    %v2181 = vpop.f32.mrf.mxu0
    %v2182 = vadd.f32 %v1248, %v2181
    %v2183 = vpop.f32.mrf.mxu0
    %v2184 = vpop.f32.mrf.mxu0
    %v2185 = vadd.f32 %v1253, %v2184
    %v2186 = vpop.f32.mrf.mxu0
    %2187 = vmatprep.mubr.bf16.mxu0 %v1784
    %2188 = vmatmul.mubr.bf16.gmra.mxu0 %v1783
    %v2189 = vpop.f32.mrf.mxu0
    %v2190 = vadd.f32 %v1258, %v2189
    %v2191 = vpop.f32.mrf.mxu0
    %v2192 = vpop.f32.mrf.mxu0
    %v2193 = vadd.f32 %v1263, %v2192
    %v2194 = vpop.f32.mrf.mxu0
    %2195 = vmatprep.mubr.bf16.mxu0 %v1786
    %2196 = vmatmul.mubr.bf16.gmra.mxu0 %v1785
    %v2197 = vpop.f32.mrf.mxu0
    %v2198 = vadd.f32 %v1268, %v2197
    %v2199 = vpop.f32.mrf.mxu0
    %v2200 = vpop.f32.mrf.mxu0
    %v2201 = vadd.f32 %v1273, %v2200
    %v2202 = vpop.f32.mrf.mxu0
    %2203 = vmatprep.mubr.bf16.mxu0 %v1788
    %2204 = vmatmul.mubr.bf16.gmra.mxu0 %v1787
    %v2205 = vpop.f32.mrf.mxu0
    %v2206 = vadd.f32 %v1278, %v2205
    %v2207 = vpop.f32.mrf.mxu0
    %v2208 = vpop.f32.mrf.mxu0
    %v2209 = vadd.f32 %v1283, %v2208
    %v2210 = vpop.f32.mrf.mxu0
    %2211 = vmatprep.mubr.bf16.mxu0 %v1790
    %2212 = vmatmul.mubr.bf16.gmra.mxu0 %v1789
    %v2213 = vpop.f32.mrf.mxu0
    %v2214 = vadd.f32 %v1288, %v2213
    %v2215 = vpop.f32.mrf.mxu0
    %v2216 = vpop.f32.mrf.mxu0
    %v2217 = vadd.f32 %v1293, %v2216
    %v2218 = vpop.f32.mrf.mxu0
    %2219 = vmatprep.mubr.bf16.mxu0 %v1792
    %2220 = vmatmul.mubr.bf16.gmra.mxu0 %v1791
    %v2221 = vpop.f32.mrf.mxu0
    %v2222 = vadd.f32 %v1298, %v2221
    %v2223 = vpop.f32.mrf.mxu0
    %v2224 = vpop.f32.mrf.mxu0
    %v2225 = vadd.f32 %v1303, %v2224
    %v2226 = vpop.f32.mrf.mxu0
    %2227 = vmatprep.mubr.bf16.mxu0 %v1794
    %2228 = vmatmul.mubr.bf16.gmra.mxu0 %v1793
    %v2229 = vpop.f32.mrf.mxu0
    %v2230 = vadd.f32 %v1308, %v2229
    %v2231 = vpop.f32.mrf.mxu0
    %v2232 = vpop.f32.mrf.mxu0
    %v2233 = vadd.f32 %v1313, %v2232
    %v2234 = vpop.f32.mrf.mxu0
    %2235 = vmatprep.mubr.bf16.mxu0 %v1796
    %2236 = vmatmul.mubr.bf16.gmra.mxu0 %v1795
    %v2237 = vpop.f32.mrf.mxu0
    %v2238 = vadd.f32 %v1318, %v2237
    %v2239 = vpop.f32.mrf.mxu0
    %v2240 = vpop.f32.mrf.mxu0
    %v2241 = vadd.f32 %v1323, %v2240
    %v2242 = vpop.f32.mrf.mxu0
    %2243 = vmatprep.mubr.bf16.mxu0 %v1798
    %2244 = vmatmul.mubr.bf16.gmra.mxu0 %v1797
    %v2245 = vpop.f32.mrf.mxu0
    %v2246 = vadd.f32 %v1328, %v2245
    %v2247 = vpop.f32.mrf.mxu0
    %v2248 = vpop.f32.mrf.mxu0
    %v2249 = vadd.f32 %v1333, %v2248
    %v2250 = vpop.f32.mrf.mxu0
    %2251 = vmatprep.mubr.bf16.mxu0 %v1800
    %2252 = vmatmul.mubr.bf16.gmra.mxu0 %v1799
    %v2253 = vpop.f32.mrf.mxu0
    %v2254 = vadd.f32 %v1338, %v2253
    %v2255 = vpop.f32.mrf.mxu0
    %v2256 = vpop.f32.mrf.mxu0
    %v2257 = vadd.f32 %v1343, %v2256
    %v2258 = vpop.f32.mrf.mxu0
    %2259 = vmatprep.mubr.bf16.mxu0 %v1802
    %2260 = vmatmul.mubr.bf16.gmra.mxu0 %v1801
    %v2261 = vpop.f32.mrf.mxu0
    %v2262 = vadd.f32 %v1348, %v2261
    %v2263 = vpop.f32.mrf.mxu0
    %v2264 = vpop.f32.mrf.mxu0
    %v2265 = vadd.f32 %v1353, %v2264
    %v2266 = vpop.f32.mrf.mxu0
    %2267 = vmatprep.mubr.bf16.mxu0 %v1804
    %2268 = vmatmul.mubr.bf16.gmra.mxu0 %v1803
    %v2269 = vpop.f32.mrf.mxu0
    %v2270 = vadd.f32 %v1358, %v2269
    %v2271 = vpop.f32.mrf.mxu0
    %v2272 = vpop.f32.mrf.mxu0
    %v2273 = vadd.f32 %v1363, %v2272
    %v2274 = vpop.f32.mrf.mxu0
    %2275 = vmatprep.mubr.bf16.mxu0 %v1806
    %2276 = vmatmul.mubr.bf16.gmra.mxu0 %v1805
    %v2277 = vpop.f32.mrf.mxu0
    %v2278 = vadd.f32 %v1368, %v2277
    %v2279 = vpop.f32.mrf.mxu0
    %v2280 = vpop.f32.mrf.mxu0
    %v2281 = vadd.f32 %v1373, %v2280
    %v2282 = vpop.f32.mrf.mxu0
    %2283 = vmatprep.mubr.bf16.mxu0 %v1808
    %2284 = vmatmul.mubr.bf16.gmra.mxu0 %v1807
    %v2285 = vpop.f32.mrf.mxu0
    %v2286 = vadd.f32 %v1378, %v2285
    %v2287 = vpop.f32.mrf.mxu0
    %v2288 = vpop.f32.mrf.mxu0
    %v2289 = vadd.f32 %v1383, %v2288
    %v2290 = vpop.f32.mrf.mxu0
    %2291 = vmatprep.mubr.bf16.mxu0 %v1810
    %2292 = vmatmul.mubr.bf16.gmra.mxu0 %v1809
    %v2293 = vpop.f32.mrf.mxu0
    %v2294 = vadd.f32 %v1388, %v2293
    %v2295 = vpop.f32.mrf.mxu0
    %v2296 = vpop.f32.mrf.mxu0
    %v2297 = vadd.f32 %v1393, %v2296
    %v2298 = vpop.f32.mrf.mxu0
    %2299 = vmatprep.mubr.bf16.mxu0 %v1812
    %2300 = vmatmul.mubr.bf16.gmra.mxu0 %v1811
    %v2301 = vpop.f32.mrf.mxu0
    %v2302 = vadd.f32 %v1398, %v2301
    %v2303 = vpop.f32.mrf.mxu0
    %v2304 = vpop.f32.mrf.mxu0
    %v2305 = vadd.f32 %v1403, %v2304
    %v2306 = vpop.f32.mrf.mxu0
    %2307 = vmatprep.mubr.bf16.mxu0 %v1814
    %2308 = vmatmul.mubr.bf16.gmra.mxu0 %v1813
    %v2309 = vpop.f32.mrf.mxu0
    %v2310 = vadd.f32 %v1408, %v2309
    %v2311 = vpop.f32.mrf.mxu0
    %v2312 = vpop.f32.mrf.mxu0
    %v2313 = vadd.f32 %v1413, %v2312
    %v2314 = vpop.f32.mrf.mxu0
    %2315 = vmatprep.mubr.bf16.mxu0 %v1816
    %2316 = vmatmul.mubr.bf16.gmra.mxu0 %v1815
    %v2317 = vpop.f32.mrf.mxu0
    %v2318 = vadd.f32 %v1418, %v2317
    %v2319 = vpop.f32.mrf.mxu0
    %v2320 = vpop.f32.mrf.mxu0
    %v2321 = vadd.f32 %v1423, %v2320
    %v2322 = vpop.f32.mrf.mxu0
    %2323 = vmatprep.mubr.bf16.mxu0 %v1818
    %2324 = vmatmul.mubr.bf16.gmra.mxu0 %v1817
    %v2325 = vpop.f32.mrf.mxu0
    %v2326 = vadd.f32 %v1428, %v2325
    %v2327 = vpop.f32.mrf.mxu0
    %v2328 = vpop.f32.mrf.mxu0
    %v2329 = vadd.f32 %v1433, %v2328
    %v2330 = vpop.f32.mrf.mxu0
    %2331 = vdwg.mxu0
    %v2332 = vmul.f32 %v1950, %v2078
    %v2333 = vmul.f32 %v1953, %v2081
    %v2334 = vmul.f32 %v1958, %v2086
    %v2335 = vmul.f32 %v1961, %v2089
    %v2336 = vmul.f32 %v1950, %v2094
    %v2337 = vmul.f32 %v1953, %v2097
    %v2338 = vmul.f32 %v1958, %v2102
    %v2339 = vmul.f32 %v1961, %v2105
    %v2340 = vmul.f32 %v1950, %v2110
    %v2341 = vmul.f32 %v1953, %v2113
    %v2342 = vmul.f32 %v1958, %v2118
    %v2343 = vmul.f32 %v1961, %v2121
    %v2344 = vmul.f32 %v1950, %v2126
    %v2345 = vmul.f32 %v1953, %v2129
    %v2346 = vmul.f32 %v1958, %v2134
    %v2347 = vmul.f32 %v1961, %v2137
    %v2348 = vmul.f32 %v1950, %v2142
    %v2349 = vmul.f32 %v1953, %v2145
    %v2350 = vmul.f32 %v1958, %v2150
    %v2351 = vmul.f32 %v1961, %v2153
    %v2352 = vmul.f32 %v1950, %v2158
    %v2353 = vmul.f32 %v1953, %v2161
    %v2354 = vmul.f32 %v1958, %v2166
    %v2355 = vmul.f32 %v1961, %v2169
    %v2356 = vmul.f32 %v1950, %v2174
    %v2357 = vmul.f32 %v1953, %v2177
    %v2358 = vmul.f32 %v1958, %v2182
    %v2359 = vmul.f32 %v1961, %v2185
    %v2360 = vmul.f32 %v1950, %v2190
    %v2361 = vmul.f32 %v1953, %v2193
    %v2362 = vmul.f32 %v1958, %v2198
    %v2363 = vmul.f32 %v1961, %v2201
    %v2364 = vadd.f32 %v2332, %v2333
    %v2365 = vadd.f32 %v2364, %v2334
    %v2366 = vadd.f32 %v2365, %v2335
    %v2367 = vrot.slane %v2366, 4
    %v2368 = vadd.f32 %v2366, %v2367
    %v2369 = vrot.slane %v2368, 2
    %v2370 = vadd.f32 %v2368, %v2369
    %v2371 = vrot.slane %v2370, 1
    %v2372 = vadd.f32 %v2370, %v2371
    %v2373 = vadd.f32 %v2336, %v2337
    %v2374 = vadd.f32 %v2373, %v2338
    %v2375 = vadd.f32 %v2374, %v2339
    %v2376 = vrot.slane %v2375, 4
    %v2377 = vadd.f32 %v2375, %v2376
    %v2378 = vrot.slane %v2377, 2
    %v2379 = vadd.f32 %v2377, %v2378
    %v2380 = vrot.slane %v2379, 1
    %v2381 = vadd.f32 %v2379, %v2380
    %v2382 = vadd.f32 %v2340, %v2341
    %v2383 = vadd.f32 %v2382, %v2342
    %v2384 = vadd.f32 %v2383, %v2343
    %v2385 = vrot.slane %v2384, 4
    %v2386 = vadd.f32 %v2384, %v2385
    %v2387 = vrot.slane %v2386, 2
    %v2388 = vadd.f32 %v2386, %v2387
    %v2389 = vrot.slane %v2388, 1
    %v2390 = vadd.f32 %v2388, %v2389
    %v2391 = vadd.f32 %v2344, %v2345
    %v2392 = vadd.f32 %v2391, %v2346
    %v2393 = vadd.f32 %v2392, %v2347
    %v2394 = vrot.slane %v2393, 4
    %v2395 = vadd.f32 %v2393, %v2394
    %v2396 = vrot.slane %v2395, 2
    %v2397 = vadd.f32 %v2395, %v2396
    %v2398 = vrot.slane %v2397, 1
    %v2399 = vadd.f32 %v2397, %v2398
    %v2400 = vadd.f32 %v2348, %v2349
    %v2401 = vadd.f32 %v2400, %v2350
    %v2402 = vadd.f32 %v2401, %v2351
    %v2403 = vrot.slane %v2402, 4
    %v2404 = vadd.f32 %v2402, %v2403
    %v2405 = vrot.slane %v2404, 2
    %v2406 = vadd.f32 %v2404, %v2405
    %v2407 = vrot.slane %v2406, 1
    %v2408 = vadd.f32 %v2406, %v2407
    %v2409 = vadd.f32 %v2352, %v2353
    %v2410 = vadd.f32 %v2409, %v2354
    %v2411 = vadd.f32 %v2410, %v2355
    %v2412 = vrot.slane %v2411, 4
    %v2413 = vadd.f32 %v2411, %v2412
    %v2414 = vrot.slane %v2413, 2
    %v2415 = vadd.f32 %v2413, %v2414
    %v2416 = vrot.slane %v2415, 1
    %v2417 = vadd.f32 %v2415, %v2416
    %v2418 = vadd.f32 %v2356, %v2357
    %v2419 = vadd.f32 %v2418, %v2358
    %v2420 = vadd.f32 %v2419, %v2359
    %v2421 = vrot.slane %v2420, 4
    %v2422 = vadd.f32 %v2420, %v2421
    %v2423 = vrot.slane %v2422, 2
    %v2424 = vadd.f32 %v2422, %v2423
    %v2425 = vrot.slane %v2424, 1
    %v2426 = vadd.f32 %v2424, %v2425
    %v2427 = vadd.f32 %v2360, %v2361
    %v2428 = vadd.f32 %v2427, %v2362
    %v2429 = vadd.f32 %v2428, %v2363
    %v2430 = vrot.slane %v2429, 4
    %v2431 = vadd.f32 %v2429, %v2430
    %v2432 = vrot.slane %v2431, 2
    %v2433 = vadd.f32 %v2431, %v2432
    %v2434 = vrot.slane %v2433, 1
    %v2435 = vadd.f32 %v2433, %v2434
    %v2436 = vmax.f32 %v2372, %v2408
    %v2437 = vmax.f32 %v2381, %v2417
    %v2438 = vmax.f32 %v2390, %v2426
    %v2439 = vmax.f32 %v2399, %v2435
    %v2440 = vmax.f32 %v2436, %v2437
    %v2441 = vmax.f32 %v2438, %v2439
    %v2442 = vmax.f32 %v2440, %v2441
    %v2443 = vsub.f32 %v2372, %v2442
    %v2444 = vsub.f32 %v2381, %v2442
    %v2445 = vsub.f32 %v2390, %v2442
    %v2446 = vsub.f32 %v2399, %v2442
    %v2447 = vsub.f32 %v2408, %v2442
    %v2448 = vsub.f32 %v2417, %v2442
    %v2449 = vsub.f32 %v2426, %v2442
    %v2450 = vsub.f32 %v2435, %v2442
    %v2451 = vmul.f32 %v2443, 1.442695
    %v2452 = vpow.pop %v2451
    %v2453 = vmul.f32 %v2444, 1.442695
    %v2454 = vpow.pop %v2453
    %v2455 = vmul.f32 %v2445, 1.442695
    %v2456 = vpow.pop %v2455
    %v2457 = vmul.f32 %v2446, 1.442695
    %v2458 = vpow.pop %v2457
    %v2459 = vmul.f32 %v2447, 1.442695
    %v2460 = vpow.pop %v2459
    %v2461 = vmul.f32 %v2448, 1.442695
    %v2462 = vpow.pop %v2461
    %v2463 = vmul.f32 %v2449, 1.442695
    %v2464 = vpow.pop %v2463
    %v2465 = vmul.f32 %v2450, 1.442695
    %v2466 = vpow.pop %v2465
    %v2475 = vrot.slane %v2454, 7
    %vm2476 = vcmask 1041409
    %v2477 = vsel %vm2476, %v2475, %v2452
    %v2478 = vrot.slane %v2456, 6
    %vm2479 = vcmask 1042434
    %v2480 = vsel %vm2479, %v2478, %v2477
    %v2481 = vrot.slane %v2458, 5
    %vm2482 = vcmask 1043459
    %v2483 = vsel %vm2482, %v2481, %v2480
    %v2484 = vrot.slane %v2460, 4
    %vm2485 = vcmask 1044484
    %v2486 = vsel %vm2485, %v2484, %v2483
    %v2487 = vrot.slane %v2462, 3
    %vm2488 = vcmask 1045509
    %v2489 = vsel %vm2488, %v2487, %v2486
    %v2490 = vrot.slane %v2464, 2
    %vm2491 = vcmask 1046534
    %v2492 = vsel %vm2491, %v2490, %v2489
    %v2493 = vrot.slane %v2466, 1
    %vm2494 = vcmask 1047559
    %v2495 = vsel %vm2494, %v2493, %v2492
    %v2497 = vrot.slane %v2495, 4
    %v2498 = vadd.f32 %v2495, %v2497
    %v2499 = vrot.slane %v2498, 2
    %v2500 = vadd.f32 %v2498, %v2499
    %v2501 = vrot.slane %v2500, 1
    %v2502 = vadd.f32 %v2500, %v2501
    %v2503 = vrcp.pop %v2502
    %v2504 = vlaneseq
    %v2505 = vshrl.u32 %v2504, 7
    %v2506 = vsub.s32 0, %v2505
    %v2507 = vrot.slane %v2503, %v2506
    %v2508 = vmul.f32 %v2452, %v2507
    %v2509 = vmul.f32 %v2454, %v2507
    %v2510 = vmul.f32 %v2456, %v2507
    %v2511 = vmul.f32 %v2458, %v2507
    %v2512 = vmul.f32 %v2460, %v2507
    %v2513 = vmul.f32 %v2462, %v2507
    %v2514 = vmul.f32 %v2464, %v2507
    %v2515 = vmul.f32 %v2466, %v2507
    %v2516 = vadd.f32 %v2508, 0.0
    %v2517 = vadd.f32 %v2509, 0.0
    %v2518 = vadd.f32 %v2510, 0.0
    %v2519 = vadd.f32 %v2511, 0.0
    %v2520 = vadd.f32 %v2512, 0.0
    %v2521 = vadd.f32 %v2513, 0.0
    %v2522 = vadd.f32 %v2514, 0.0
    %v2523 = vadd.f32 %v2515, 0.0
    %v2524 = vmul.f32 %v1966, %v2078
    %v2525 = vmul.f32 %v1969, %v2081
    %v2526 = vmul.f32 %v1974, %v2086
    %v2527 = vmul.f32 %v1977, %v2089
    %v2528 = vmul.f32 %v1966, %v2094
    %v2529 = vmul.f32 %v1969, %v2097
    %v2530 = vmul.f32 %v1974, %v2102
    %v2531 = vmul.f32 %v1977, %v2105
    %v2532 = vmul.f32 %v1966, %v2110
    %v2533 = vmul.f32 %v1969, %v2113
    %v2534 = vmul.f32 %v1974, %v2118
    %v2535 = vmul.f32 %v1977, %v2121
    %v2536 = vmul.f32 %v1966, %v2126
    %v2537 = vmul.f32 %v1969, %v2129
    %v2538 = vmul.f32 %v1974, %v2134
    %v2539 = vmul.f32 %v1977, %v2137
    %v2540 = vmul.f32 %v1966, %v2142
    %v2541 = vmul.f32 %v1969, %v2145
    %v2542 = vmul.f32 %v1974, %v2150
    %v2543 = vmul.f32 %v1977, %v2153
    %v2544 = vmul.f32 %v1966, %v2158
    %v2545 = vmul.f32 %v1969, %v2161
    %v2546 = vmul.f32 %v1974, %v2166
    %v2547 = vmul.f32 %v1977, %v2169
    %v2548 = vmul.f32 %v1966, %v2174
    %v2549 = vmul.f32 %v1969, %v2177
    %v2550 = vmul.f32 %v1974, %v2182
    %v2551 = vmul.f32 %v1977, %v2185
    %v2552 = vmul.f32 %v1966, %v2190
    %v2553 = vmul.f32 %v1969, %v2193
    %v2554 = vmul.f32 %v1974, %v2198
    %v2555 = vmul.f32 %v1977, %v2201
    %v2556 = vadd.f32 %v2524, %v2525
    %v2557 = vadd.f32 %v2556, %v2526
    %v2558 = vadd.f32 %v2557, %v2527
    %v2559 = vrot.slane %v2558, 4
    %v2560 = vadd.f32 %v2558, %v2559
    %v2561 = vrot.slane %v2560, 2
    %v2562 = vadd.f32 %v2560, %v2561
    %v2563 = vrot.slane %v2562, 1
    %v2564 = vadd.f32 %v2562, %v2563
    %v2565 = vadd.f32 %v2528, %v2529
    %v2566 = vadd.f32 %v2565, %v2530
    %v2567 = vadd.f32 %v2566, %v2531
    %v2568 = vrot.slane %v2567, 4
    %v2569 = vadd.f32 %v2567, %v2568
    %v2570 = vrot.slane %v2569, 2
    %v2571 = vadd.f32 %v2569, %v2570
    %v2572 = vrot.slane %v2571, 1
    %v2573 = vadd.f32 %v2571, %v2572
    %v2574 = vadd.f32 %v2532, %v2533
    %v2575 = vadd.f32 %v2574, %v2534
    %v2576 = vadd.f32 %v2575, %v2535
    %v2577 = vrot.slane %v2576, 4
    %v2578 = vadd.f32 %v2576, %v2577
    %v2579 = vrot.slane %v2578, 2
    %v2580 = vadd.f32 %v2578, %v2579
    %v2581 = vrot.slane %v2580, 1
    %v2582 = vadd.f32 %v2580, %v2581
    %v2583 = vadd.f32 %v2536, %v2537
    %v2584 = vadd.f32 %v2583, %v2538
    %v2585 = vadd.f32 %v2584, %v2539
    %v2586 = vrot.slane %v2585, 4
    %v2587 = vadd.f32 %v2585, %v2586
    %v2588 = vrot.slane %v2587, 2
    %v2589 = vadd.f32 %v2587, %v2588
    %v2590 = vrot.slane %v2589, 1
    %v2591 = vadd.f32 %v2589, %v2590
    %v2592 = vadd.f32 %v2540, %v2541
    %v2593 = vadd.f32 %v2592, %v2542
    %v2594 = vadd.f32 %v2593, %v2543
    %v2595 = vrot.slane %v2594, 4
    %v2596 = vadd.f32 %v2594, %v2595
    %v2597 = vrot.slane %v2596, 2
    %v2598 = vadd.f32 %v2596, %v2597
    %v2599 = vrot.slane %v2598, 1
    %v2600 = vadd.f32 %v2598, %v2599
    %v2601 = vadd.f32 %v2544, %v2545
    %v2602 = vadd.f32 %v2601, %v2546
    %v2603 = vadd.f32 %v2602, %v2547
    %v2604 = vrot.slane %v2603, 4
    %v2605 = vadd.f32 %v2603, %v2604
    %v2606 = vrot.slane %v2605, 2
    %v2607 = vadd.f32 %v2605, %v2606
    %v2608 = vrot.slane %v2607, 1
    %v2609 = vadd.f32 %v2607, %v2608
    %v2610 = vadd.f32 %v2548, %v2549
    %v2611 = vadd.f32 %v2610, %v2550
    %v2612 = vadd.f32 %v2611, %v2551
    %v2613 = vrot.slane %v2612, 4
    %v2614 = vadd.f32 %v2612, %v2613
    %v2615 = vrot.slane %v2614, 2
    %v2616 = vadd.f32 %v2614, %v2615
    %v2617 = vrot.slane %v2616, 1
    %v2618 = vadd.f32 %v2616, %v2617
    %v2619 = vadd.f32 %v2552, %v2553
    %v2620 = vadd.f32 %v2619, %v2554
    %v2621 = vadd.f32 %v2620, %v2555
    %v2622 = vrot.slane %v2621, 4
    %v2623 = vadd.f32 %v2621, %v2622
    %v2624 = vrot.slane %v2623, 2
    %v2625 = vadd.f32 %v2623, %v2624
    %v2626 = vrot.slane %v2625, 1
    %v2627 = vadd.f32 %v2625, %v2626
    %v2628 = vmax.f32 %v2564, %v2600
    %v2629 = vmax.f32 %v2573, %v2609
    %v2630 = vmax.f32 %v2582, %v2618
    %v2631 = vmax.f32 %v2591, %v2627
    %v2632 = vmax.f32 %v2628, %v2629
    %v2633 = vmax.f32 %v2630, %v2631
    %v2634 = vmax.f32 %v2632, %v2633
    %v2635 = vsub.f32 %v2564, %v2634
    %v2636 = vsub.f32 %v2573, %v2634
    %v2637 = vsub.f32 %v2582, %v2634
    %v2638 = vsub.f32 %v2591, %v2634
    %v2639 = vsub.f32 %v2600, %v2634
    %v2640 = vsub.f32 %v2609, %v2634
    %v2641 = vsub.f32 %v2618, %v2634
    %v2642 = vsub.f32 %v2627, %v2634
    %v2643 = vmul.f32 %v2635, 1.442695
    %v2644 = vpow.pop %v2643
    %v2645 = vmul.f32 %v2636, 1.442695
    %v2646 = vpow.pop %v2645
    %v2647 = vmul.f32 %v2637, 1.442695
    %v2648 = vpow.pop %v2647
    %v2649 = vmul.f32 %v2638, 1.442695
    %v2650 = vpow.pop %v2649
    %v2651 = vmul.f32 %v2639, 1.442695
    %v2652 = vpow.pop %v2651
    %v2653 = vmul.f32 %v2640, 1.442695
    %v2654 = vpow.pop %v2653
    %v2655 = vmul.f32 %v2641, 1.442695
    %v2656 = vpow.pop %v2655
    %v2657 = vmul.f32 %v2642, 1.442695
    %v2658 = vpow.pop %v2657
    %v2667 = vrot.slane %v2646, 7
    %v2668 = vsel %vm2476, %v2667, %v2644
    %v2669 = vrot.slane %v2648, 6
    %v2670 = vsel %vm2479, %v2669, %v2668
    %v2671 = vrot.slane %v2650, 5
    %v2672 = vsel %vm2482, %v2671, %v2670
    %v2673 = vrot.slane %v2652, 4
    %v2674 = vsel %vm2485, %v2673, %v2672
    %v2675 = vrot.slane %v2654, 3
    %v2676 = vsel %vm2488, %v2675, %v2674
    %v2677 = vrot.slane %v2656, 2
    %v2678 = vsel %vm2491, %v2677, %v2676
    %v2679 = vrot.slane %v2658, 1
    %v2680 = vsel %vm2494, %v2679, %v2678
    %v2682 = vrot.slane %v2680, 4
    %v2683 = vadd.f32 %v2680, %v2682
    %v2684 = vrot.slane %v2683, 2
    %v2685 = vadd.f32 %v2683, %v2684
    %v2686 = vrot.slane %v2685, 1
    %v2687 = vadd.f32 %v2685, %v2686
    %v2688 = vrcp.pop %v2687
    %v2689 = vlaneseq
    %v2690 = vshrl.u32 %v2689, 7
    %v2691 = vsub.s32 0, %v2690
    %v2692 = vrot.slane %v2688, %v2691
    %v2693 = vmul.f32 %v2644, %v2692
    %v2694 = vmul.f32 %v2646, %v2692
    %v2695 = vmul.f32 %v2648, %v2692
    %v2696 = vmul.f32 %v2650, %v2692
    %v2697 = vmul.f32 %v2652, %v2692
    %v2698 = vmul.f32 %v2654, %v2692
    %v2699 = vmul.f32 %v2656, %v2692
    %v2700 = vmul.f32 %v2658, %v2692
    %v2701 = vadd.f32 %v2516, %v2693
    %v2702 = vadd.f32 %v2517, %v2694
    %v2703 = vadd.f32 %v2518, %v2695
    %v2704 = vadd.f32 %v2519, %v2696
    %v2705 = vadd.f32 %v2520, %v2697
    %v2706 = vadd.f32 %v2521, %v2698
    %v2707 = vadd.f32 %v2522, %v2699
    %v2708 = vadd.f32 %v2523, %v2700
    %v2709 = vmul.f32 %v1982, %v2078
    %v2710 = vmul.f32 %v1985, %v2081
    %v2711 = vmul.f32 %v1990, %v2086
    %v2712 = vmul.f32 %v1993, %v2089
    %v2713 = vmul.f32 %v1982, %v2094
    %v2714 = vmul.f32 %v1985, %v2097
    %v2715 = vmul.f32 %v1990, %v2102
    %v2716 = vmul.f32 %v1993, %v2105
    %v2717 = vmul.f32 %v1982, %v2110
    %v2718 = vmul.f32 %v1985, %v2113
    %v2719 = vmul.f32 %v1990, %v2118
    %v2720 = vmul.f32 %v1993, %v2121
    %v2721 = vmul.f32 %v1982, %v2126
    %v2722 = vmul.f32 %v1985, %v2129
    %v2723 = vmul.f32 %v1990, %v2134
    %v2724 = vmul.f32 %v1993, %v2137
    %v2725 = vmul.f32 %v1982, %v2142
    %v2726 = vmul.f32 %v1985, %v2145
    %v2727 = vmul.f32 %v1990, %v2150
    %v2728 = vmul.f32 %v1993, %v2153
    %v2729 = vmul.f32 %v1982, %v2158
    %v2730 = vmul.f32 %v1985, %v2161
    %v2731 = vmul.f32 %v1990, %v2166
    %v2732 = vmul.f32 %v1993, %v2169
    %v2733 = vmul.f32 %v1982, %v2174
    %v2734 = vmul.f32 %v1985, %v2177
    %v2735 = vmul.f32 %v1990, %v2182
    %v2736 = vmul.f32 %v1993, %v2185
    %v2737 = vmul.f32 %v1982, %v2190
    %v2738 = vmul.f32 %v1985, %v2193
    %v2739 = vmul.f32 %v1990, %v2198
    %v2740 = vmul.f32 %v1993, %v2201
    %v2741 = vadd.f32 %v2709, %v2710
    %v2742 = vadd.f32 %v2741, %v2711
    %v2743 = vadd.f32 %v2742, %v2712
    %v2744 = vrot.slane %v2743, 4
    %v2745 = vadd.f32 %v2743, %v2744
    %v2746 = vrot.slane %v2745, 2
    %v2747 = vadd.f32 %v2745, %v2746
    %v2748 = vrot.slane %v2747, 1
    %v2749 = vadd.f32 %v2747, %v2748
    %v2750 = vadd.f32 %v2713, %v2714
    %v2751 = vadd.f32 %v2750, %v2715
    %v2752 = vadd.f32 %v2751, %v2716
    %v2753 = vrot.slane %v2752, 4
    %v2754 = vadd.f32 %v2752, %v2753
    %v2755 = vrot.slane %v2754, 2
    %v2756 = vadd.f32 %v2754, %v2755
    %v2757 = vrot.slane %v2756, 1
    %v2758 = vadd.f32 %v2756, %v2757
    %v2759 = vadd.f32 %v2717, %v2718
    %v2760 = vadd.f32 %v2759, %v2719
    %v2761 = vadd.f32 %v2760, %v2720
    %v2762 = vrot.slane %v2761, 4
    %v2763 = vadd.f32 %v2761, %v2762
    %v2764 = vrot.slane %v2763, 2
    %v2765 = vadd.f32 %v2763, %v2764
    %v2766 = vrot.slane %v2765, 1
    %v2767 = vadd.f32 %v2765, %v2766
    %v2768 = vadd.f32 %v2721, %v2722
    %v2769 = vadd.f32 %v2768, %v2723
    %v2770 = vadd.f32 %v2769, %v2724
    %v2771 = vrot.slane %v2770, 4
    %v2772 = vadd.f32 %v2770, %v2771
    %v2773 = vrot.slane %v2772, 2
    %v2774 = vadd.f32 %v2772, %v2773
    %v2775 = vrot.slane %v2774, 1
    %v2776 = vadd.f32 %v2774, %v2775
    %v2777 = vadd.f32 %v2725, %v2726
    %v2778 = vadd.f32 %v2777, %v2727
    %v2779 = vadd.f32 %v2778, %v2728
    %v2780 = vrot.slane %v2779, 4
    %v2781 = vadd.f32 %v2779, %v2780
    %v2782 = vrot.slane %v2781, 2
    %v2783 = vadd.f32 %v2781, %v2782
    %v2784 = vrot.slane %v2783, 1
    %v2785 = vadd.f32 %v2783, %v2784
    %v2786 = vadd.f32 %v2729, %v2730
    %v2787 = vadd.f32 %v2786, %v2731
    %v2788 = vadd.f32 %v2787, %v2732
    %v2789 = vrot.slane %v2788, 4
    %v2790 = vadd.f32 %v2788, %v2789
    %v2791 = vrot.slane %v2790, 2
    %v2792 = vadd.f32 %v2790, %v2791
    %v2793 = vrot.slane %v2792, 1
    %v2794 = vadd.f32 %v2792, %v2793
    %v2795 = vadd.f32 %v2733, %v2734
    %v2796 = vadd.f32 %v2795, %v2735
    %v2797 = vadd.f32 %v2796, %v2736
    %v2798 = vrot.slane %v2797, 4
    %v2799 = vadd.f32 %v2797, %v2798
    %v2800 = vrot.slane %v2799, 2
    %v2801 = vadd.f32 %v2799, %v2800
    %v2802 = vrot.slane %v2801, 1
    %v2803 = vadd.f32 %v2801, %v2802
    %v2804 = vadd.f32 %v2737, %v2738
    %v2805 = vadd.f32 %v2804, %v2739
    %v2806 = vadd.f32 %v2805, %v2740
    %v2807 = vrot.slane %v2806, 4
    %v2808 = vadd.f32 %v2806, %v2807
    %v2809 = vrot.slane %v2808, 2
    %v2810 = vadd.f32 %v2808, %v2809
    %v2811 = vrot.slane %v2810, 1
    %v2812 = vadd.f32 %v2810, %v2811
    %v2813 = vmax.f32 %v2749, %v2785
    %v2814 = vmax.f32 %v2758, %v2794
    %v2815 = vmax.f32 %v2767, %v2803
    %v2816 = vmax.f32 %v2776, %v2812
    %v2817 = vmax.f32 %v2813, %v2814
    %v2818 = vmax.f32 %v2815, %v2816
    %v2819 = vmax.f32 %v2817, %v2818
    %v2820 = vsub.f32 %v2749, %v2819
    %v2821 = vsub.f32 %v2758, %v2819
    %v2822 = vsub.f32 %v2767, %v2819
    %v2823 = vsub.f32 %v2776, %v2819
    %v2824 = vsub.f32 %v2785, %v2819
    %v2825 = vsub.f32 %v2794, %v2819
    %v2826 = vsub.f32 %v2803, %v2819
    %v2827 = vsub.f32 %v2812, %v2819
    %v2828 = vmul.f32 %v2820, 1.442695
    %v2829 = vpow.pop %v2828
    %v2830 = vmul.f32 %v2821, 1.442695
    %v2831 = vpow.pop %v2830
    %v2832 = vmul.f32 %v2822, 1.442695
    %v2833 = vpow.pop %v2832
    %v2834 = vmul.f32 %v2823, 1.442695
    %v2835 = vpow.pop %v2834
    %v2836 = vmul.f32 %v2824, 1.442695
    %v2837 = vpow.pop %v2836
    %v2838 = vmul.f32 %v2825, 1.442695
    %v2839 = vpow.pop %v2838
    %v2840 = vmul.f32 %v2826, 1.442695
    %v2841 = vpow.pop %v2840
    %v2842 = vmul.f32 %v2827, 1.442695
    %v2843 = vpow.pop %v2842
    %v2852 = vrot.slane %v2831, 7
    %v2853 = vsel %vm2476, %v2852, %v2829
    %v2854 = vrot.slane %v2833, 6
    %v2855 = vsel %vm2479, %v2854, %v2853
    %v2856 = vrot.slane %v2835, 5
    %v2857 = vsel %vm2482, %v2856, %v2855
    %v2858 = vrot.slane %v2837, 4
    %v2859 = vsel %vm2485, %v2858, %v2857
    %v2860 = vrot.slane %v2839, 3
    %v2861 = vsel %vm2488, %v2860, %v2859
    %v2862 = vrot.slane %v2841, 2
    %v2863 = vsel %vm2491, %v2862, %v2861
    %v2864 = vrot.slane %v2843, 1
    %v2865 = vsel %vm2494, %v2864, %v2863
    %v2867 = vrot.slane %v2865, 4
    %v2868 = vadd.f32 %v2865, %v2867
    %v2869 = vrot.slane %v2868, 2
    %v2870 = vadd.f32 %v2868, %v2869
    %v2871 = vrot.slane %v2870, 1
    %v2872 = vadd.f32 %v2870, %v2871
    %v2873 = vrcp.pop %v2872
    %v2874 = vlaneseq
    %v2875 = vshrl.u32 %v2874, 7
    %v2876 = vsub.s32 0, %v2875
    %v2877 = vrot.slane %v2873, %v2876
    %v2878 = vmul.f32 %v2829, %v2877
    %v2879 = vmul.f32 %v2831, %v2877
    %v2880 = vmul.f32 %v2833, %v2877
    %v2881 = vmul.f32 %v2835, %v2877
    %v2882 = vmul.f32 %v2837, %v2877
    %v2883 = vmul.f32 %v2839, %v2877
    %v2884 = vmul.f32 %v2841, %v2877
    %v2885 = vmul.f32 %v2843, %v2877
    %v2886 = vadd.f32 %v2701, %v2878
    %v2887 = vadd.f32 %v2702, %v2879
    %v2888 = vadd.f32 %v2703, %v2880
    %v2889 = vadd.f32 %v2704, %v2881
    %v2890 = vadd.f32 %v2705, %v2882
    %v2891 = vadd.f32 %v2706, %v2883
    %v2892 = vadd.f32 %v2707, %v2884
    %v2893 = vadd.f32 %v2708, %v2885
    %v2894 = vmul.f32 %v1998, %v2078
    %v2895 = vmul.f32 %v2001, %v2081
    %v2896 = vmul.f32 %v2006, %v2086
    %v2897 = vmul.f32 %v2009, %v2089
    %v2898 = vmul.f32 %v1998, %v2094
    %v2899 = vmul.f32 %v2001, %v2097
    %v2900 = vmul.f32 %v2006, %v2102
    %v2901 = vmul.f32 %v2009, %v2105
    %v2902 = vmul.f32 %v1998, %v2110
    %v2903 = vmul.f32 %v2001, %v2113
    %v2904 = vmul.f32 %v2006, %v2118
    %v2905 = vmul.f32 %v2009, %v2121
    %v2906 = vmul.f32 %v1998, %v2126
    %v2907 = vmul.f32 %v2001, %v2129
    %v2908 = vmul.f32 %v2006, %v2134
    %v2909 = vmul.f32 %v2009, %v2137
    %v2910 = vmul.f32 %v1998, %v2142
    %v2911 = vmul.f32 %v2001, %v2145
    %v2912 = vmul.f32 %v2006, %v2150
    %v2913 = vmul.f32 %v2009, %v2153
    %v2914 = vmul.f32 %v1998, %v2158
    %v2915 = vmul.f32 %v2001, %v2161
    %v2916 = vmul.f32 %v2006, %v2166
    %v2917 = vmul.f32 %v2009, %v2169
    %v2918 = vmul.f32 %v1998, %v2174
    %v2919 = vmul.f32 %v2001, %v2177
    %v2920 = vmul.f32 %v2006, %v2182
    %v2921 = vmul.f32 %v2009, %v2185
    %v2922 = vmul.f32 %v1998, %v2190
    %v2923 = vmul.f32 %v2001, %v2193
    %v2924 = vmul.f32 %v2006, %v2198
    %v2925 = vmul.f32 %v2009, %v2201
    %v2926 = vadd.f32 %v2894, %v2895
    %v2927 = vadd.f32 %v2926, %v2896
    %v2928 = vadd.f32 %v2927, %v2897
    %v2929 = vrot.slane %v2928, 4
    %v2930 = vadd.f32 %v2928, %v2929
    %v2931 = vrot.slane %v2930, 2
    %v2932 = vadd.f32 %v2930, %v2931
    %v2933 = vrot.slane %v2932, 1
    %v2934 = vadd.f32 %v2932, %v2933
    %v2935 = vadd.f32 %v2898, %v2899
    %v2936 = vadd.f32 %v2935, %v2900
    %v2937 = vadd.f32 %v2936, %v2901
    %v2938 = vrot.slane %v2937, 4
    %v2939 = vadd.f32 %v2937, %v2938
    %v2940 = vrot.slane %v2939, 2
    %v2941 = vadd.f32 %v2939, %v2940
    %v2942 = vrot.slane %v2941, 1
    %v2943 = vadd.f32 %v2941, %v2942
    %v2944 = vadd.f32 %v2902, %v2903
    %v2945 = vadd.f32 %v2944, %v2904
    %v2946 = vadd.f32 %v2945, %v2905
    %v2947 = vrot.slane %v2946, 4
    %v2948 = vadd.f32 %v2946, %v2947
    %v2949 = vrot.slane %v2948, 2
    %v2950 = vadd.f32 %v2948, %v2949
    %v2951 = vrot.slane %v2950, 1
    %v2952 = vadd.f32 %v2950, %v2951
    %v2953 = vadd.f32 %v2906, %v2907
    %v2954 = vadd.f32 %v2953, %v2908
    %v2955 = vadd.f32 %v2954, %v2909
    %v2956 = vrot.slane %v2955, 4
    %v2957 = vadd.f32 %v2955, %v2956
    %v2958 = vrot.slane %v2957, 2
    %v2959 = vadd.f32 %v2957, %v2958
    %v2960 = vrot.slane %v2959, 1
    %v2961 = vadd.f32 %v2959, %v2960
    %v2962 = vadd.f32 %v2910, %v2911
    %v2963 = vadd.f32 %v2962, %v2912
    %v2964 = vadd.f32 %v2963, %v2913
    %v2965 = vrot.slane %v2964, 4
    %v2966 = vadd.f32 %v2964, %v2965
    %v2967 = vrot.slane %v2966, 2
    %v2968 = vadd.f32 %v2966, %v2967
    %v2969 = vrot.slane %v2968, 1
    %v2970 = vadd.f32 %v2968, %v2969
    %v2971 = vadd.f32 %v2914, %v2915
    %v2972 = vadd.f32 %v2971, %v2916
    %v2973 = vadd.f32 %v2972, %v2917
    %v2974 = vrot.slane %v2973, 4
    %v2975 = vadd.f32 %v2973, %v2974
    %v2976 = vrot.slane %v2975, 2
    %v2977 = vadd.f32 %v2975, %v2976
    %v2978 = vrot.slane %v2977, 1
    %v2979 = vadd.f32 %v2977, %v2978
    %v2980 = vadd.f32 %v2918, %v2919
    %v2981 = vadd.f32 %v2980, %v2920
    %v2982 = vadd.f32 %v2981, %v2921
    %v2983 = vrot.slane %v2982, 4
    %v2984 = vadd.f32 %v2982, %v2983
    %v2985 = vrot.slane %v2984, 2
    %v2986 = vadd.f32 %v2984, %v2985
    %v2987 = vrot.slane %v2986, 1
    %v2988 = vadd.f32 %v2986, %v2987
    %v2989 = vadd.f32 %v2922, %v2923
    %v2990 = vadd.f32 %v2989, %v2924
    %v2991 = vadd.f32 %v2990, %v2925
    %v2992 = vrot.slane %v2991, 4
    %v2993 = vadd.f32 %v2991, %v2992
    %v2994 = vrot.slane %v2993, 2
    %v2995 = vadd.f32 %v2993, %v2994
    %v2996 = vrot.slane %v2995, 1
    %v2997 = vadd.f32 %v2995, %v2996
    %v2998 = vmax.f32 %v2934, %v2970
    %v2999 = vmax.f32 %v2943, %v2979
    %v3000 = vmax.f32 %v2952, %v2988
    %v3001 = vmax.f32 %v2961, %v2997
    %v3002 = vmax.f32 %v2998, %v2999
    %v3003 = vmax.f32 %v3000, %v3001
    %v3004 = vmax.f32 %v3002, %v3003
    %v3005 = vsub.f32 %v2934, %v3004
    %v3006 = vsub.f32 %v2943, %v3004
    %v3007 = vsub.f32 %v2952, %v3004
    %v3008 = vsub.f32 %v2961, %v3004
    %v3009 = vsub.f32 %v2970, %v3004
    %v3010 = vsub.f32 %v2979, %v3004
    %v3011 = vsub.f32 %v2988, %v3004
    %v3012 = vsub.f32 %v2997, %v3004
    %v3013 = vmul.f32 %v3005, 1.442695
    %v3014 = vpow.pop %v3013
    %v3015 = vmul.f32 %v3006, 1.442695
    %v3016 = vpow.pop %v3015
    %v3017 = vmul.f32 %v3007, 1.442695
    %v3018 = vpow.pop %v3017
    %v3019 = vmul.f32 %v3008, 1.442695
    %v3020 = vpow.pop %v3019
    %v3021 = vmul.f32 %v3009, 1.442695
    %v3022 = vpow.pop %v3021
    %v3023 = vmul.f32 %v3010, 1.442695
    %v3024 = vpow.pop %v3023
    %v3025 = vmul.f32 %v3011, 1.442695
    %v3026 = vpow.pop %v3025
    %v3027 = vmul.f32 %v3012, 1.442695
    %v3028 = vpow.pop %v3027
    %v3037 = vrot.slane %v3016, 7
    %v3038 = vsel %vm2476, %v3037, %v3014
    %v3039 = vrot.slane %v3018, 6
    %v3040 = vsel %vm2479, %v3039, %v3038
    %v3041 = vrot.slane %v3020, 5
    %v3042 = vsel %vm2482, %v3041, %v3040
    %v3043 = vrot.slane %v3022, 4
    %v3044 = vsel %vm2485, %v3043, %v3042
    %v3045 = vrot.slane %v3024, 3
    %v3046 = vsel %vm2488, %v3045, %v3044
    %v3047 = vrot.slane %v3026, 2
    %v3048 = vsel %vm2491, %v3047, %v3046
    %v3049 = vrot.slane %v3028, 1
    %v3050 = vsel %vm2494, %v3049, %v3048
    %v3052 = vrot.slane %v3050, 4
    %v3053 = vadd.f32 %v3050, %v3052
    %v3054 = vrot.slane %v3053, 2
    %v3055 = vadd.f32 %v3053, %v3054
    %v3056 = vrot.slane %v3055, 1
    %v3057 = vadd.f32 %v3055, %v3056
    %v3058 = vrcp.pop %v3057
    %v3059 = vlaneseq
    %v3060 = vshrl.u32 %v3059, 7
    %v3061 = vsub.s32 0, %v3060
    %v3062 = vrot.slane %v3058, %v3061
    %v3063 = vmul.f32 %v3014, %v3062
    %v3064 = vmul.f32 %v3016, %v3062
    %v3065 = vmul.f32 %v3018, %v3062
    %v3066 = vmul.f32 %v3020, %v3062
    %v3067 = vmul.f32 %v3022, %v3062
    %v3068 = vmul.f32 %v3024, %v3062
    %v3069 = vmul.f32 %v3026, %v3062
    %v3070 = vmul.f32 %v3028, %v3062
    %v3071 = vadd.f32 %v2886, %v3063
    %v3072 = vadd.f32 %v2887, %v3064
    %v3073 = vadd.f32 %v2888, %v3065
    %v3074 = vadd.f32 %v2889, %v3066
    %v3075 = vadd.f32 %v2890, %v3067
    %v3076 = vadd.f32 %v2891, %v3068
    %v3077 = vadd.f32 %v2892, %v3069
    %v3078 = vadd.f32 %v2893, %v3070
    %v3079 = vmul.f32 %v2014, %v2078
    %v3080 = vmul.f32 %v2017, %v2081
    %v3081 = vmul.f32 %v2022, %v2086
    %v3082 = vmul.f32 %v2025, %v2089
    %v3083 = vmul.f32 %v2014, %v2094
    %v3084 = vmul.f32 %v2017, %v2097
    %v3085 = vmul.f32 %v2022, %v2102
    %v3086 = vmul.f32 %v2025, %v2105
    %v3087 = vmul.f32 %v2014, %v2110
    %v3088 = vmul.f32 %v2017, %v2113
    %v3089 = vmul.f32 %v2022, %v2118
    %v3090 = vmul.f32 %v2025, %v2121
    %v3091 = vmul.f32 %v2014, %v2126
    %v3092 = vmul.f32 %v2017, %v2129
    %v3093 = vmul.f32 %v2022, %v2134
    %v3094 = vmul.f32 %v2025, %v2137
    %v3095 = vmul.f32 %v2014, %v2142
    %v3096 = vmul.f32 %v2017, %v2145
    %v3097 = vmul.f32 %v2022, %v2150
    %v3098 = vmul.f32 %v2025, %v2153
    %v3099 = vmul.f32 %v2014, %v2158
    %v3100 = vmul.f32 %v2017, %v2161
    %v3101 = vmul.f32 %v2022, %v2166
    %v3102 = vmul.f32 %v2025, %v2169
    %v3103 = vmul.f32 %v2014, %v2174
    %v3104 = vmul.f32 %v2017, %v2177
    %v3105 = vmul.f32 %v2022, %v2182
    %v3106 = vmul.f32 %v2025, %v2185
    %v3107 = vmul.f32 %v2014, %v2190
    %v3108 = vmul.f32 %v2017, %v2193
    %v3109 = vmul.f32 %v2022, %v2198
    %v3110 = vmul.f32 %v2025, %v2201
    %v3111 = vadd.f32 %v3079, %v3080
    %v3112 = vadd.f32 %v3111, %v3081
    %v3113 = vadd.f32 %v3112, %v3082
    %v3114 = vrot.slane %v3113, 4
    %v3115 = vadd.f32 %v3113, %v3114
    %v3116 = vrot.slane %v3115, 2
    %v3117 = vadd.f32 %v3115, %v3116
    %v3118 = vrot.slane %v3117, 1
    %v3119 = vadd.f32 %v3117, %v3118
    %v3120 = vadd.f32 %v3083, %v3084
    %v3121 = vadd.f32 %v3120, %v3085
    %v3122 = vadd.f32 %v3121, %v3086
    %v3123 = vrot.slane %v3122, 4
    %v3124 = vadd.f32 %v3122, %v3123
    %v3125 = vrot.slane %v3124, 2
    %v3126 = vadd.f32 %v3124, %v3125
    %v3127 = vrot.slane %v3126, 1
    %v3128 = vadd.f32 %v3126, %v3127
    %v3129 = vadd.f32 %v3087, %v3088
    %v3130 = vadd.f32 %v3129, %v3089
    %v3131 = vadd.f32 %v3130, %v3090
    %v3132 = vrot.slane %v3131, 4
    %v3133 = vadd.f32 %v3131, %v3132
    %v3134 = vrot.slane %v3133, 2
    %v3135 = vadd.f32 %v3133, %v3134
    %v3136 = vrot.slane %v3135, 1
    %v3137 = vadd.f32 %v3135, %v3136
    %v3138 = vadd.f32 %v3091, %v3092
    %v3139 = vadd.f32 %v3138, %v3093
    %v3140 = vadd.f32 %v3139, %v3094
    %v3141 = vrot.slane %v3140, 4
    %v3142 = vadd.f32 %v3140, %v3141
    %v3143 = vrot.slane %v3142, 2
    %v3144 = vadd.f32 %v3142, %v3143
    %v3145 = vrot.slane %v3144, 1
    %v3146 = vadd.f32 %v3144, %v3145
    %v3147 = vadd.f32 %v3095, %v3096
    %v3148 = vadd.f32 %v3147, %v3097
    %v3149 = vadd.f32 %v3148, %v3098
    %v3150 = vrot.slane %v3149, 4
    %v3151 = vadd.f32 %v3149, %v3150
    %v3152 = vrot.slane %v3151, 2
    %v3153 = vadd.f32 %v3151, %v3152
    %v3154 = vrot.slane %v3153, 1
    %v3155 = vadd.f32 %v3153, %v3154
    %v3156 = vadd.f32 %v3099, %v3100
    %v3157 = vadd.f32 %v3156, %v3101
    %v3158 = vadd.f32 %v3157, %v3102
    %v3159 = vrot.slane %v3158, 4
    %v3160 = vadd.f32 %v3158, %v3159
    %v3161 = vrot.slane %v3160, 2
    %v3162 = vadd.f32 %v3160, %v3161
    %v3163 = vrot.slane %v3162, 1
    %v3164 = vadd.f32 %v3162, %v3163
    %v3165 = vadd.f32 %v3103, %v3104
    %v3166 = vadd.f32 %v3165, %v3105
    %v3167 = vadd.f32 %v3166, %v3106
    %v3168 = vrot.slane %v3167, 4
    %v3169 = vadd.f32 %v3167, %v3168
    %v3170 = vrot.slane %v3169, 2
    %v3171 = vadd.f32 %v3169, %v3170
    %v3172 = vrot.slane %v3171, 1
    %v3173 = vadd.f32 %v3171, %v3172
    %v3174 = vadd.f32 %v3107, %v3108
    %v3175 = vadd.f32 %v3174, %v3109
    %v3176 = vadd.f32 %v3175, %v3110
    %v3177 = vrot.slane %v3176, 4
    %v3178 = vadd.f32 %v3176, %v3177
    %v3179 = vrot.slane %v3178, 2
    %v3180 = vadd.f32 %v3178, %v3179
    %v3181 = vrot.slane %v3180, 1
    %v3182 = vadd.f32 %v3180, %v3181
    %v3183 = vmax.f32 %v3119, %v3155
    %v3184 = vmax.f32 %v3128, %v3164
    %v3185 = vmax.f32 %v3137, %v3173
    %v3186 = vmax.f32 %v3146, %v3182
    %v3187 = vmax.f32 %v3183, %v3184
    %v3188 = vmax.f32 %v3185, %v3186
    %v3189 = vmax.f32 %v3187, %v3188
    %v3190 = vsub.f32 %v3119, %v3189
    %v3191 = vsub.f32 %v3128, %v3189
    %v3192 = vsub.f32 %v3137, %v3189
    %v3193 = vsub.f32 %v3146, %v3189
    %v3194 = vsub.f32 %v3155, %v3189
    %v3195 = vsub.f32 %v3164, %v3189
    %v3196 = vsub.f32 %v3173, %v3189
    %v3197 = vsub.f32 %v3182, %v3189
    %v3198 = vmul.f32 %v3190, 1.442695
    %v3199 = vpow.pop %v3198
    %v3200 = vmul.f32 %v3191, 1.442695
    %v3201 = vpow.pop %v3200
    %v3202 = vmul.f32 %v3192, 1.442695
    %v3203 = vpow.pop %v3202
    %v3204 = vmul.f32 %v3193, 1.442695
    %v3205 = vpow.pop %v3204
    %v3206 = vmul.f32 %v3194, 1.442695
    %v3207 = vpow.pop %v3206
    %v3208 = vmul.f32 %v3195, 1.442695
    %v3209 = vpow.pop %v3208
    %v3210 = vmul.f32 %v3196, 1.442695
    %v3211 = vpow.pop %v3210
    %v3212 = vmul.f32 %v3197, 1.442695
    %v3213 = vpow.pop %v3212
    %v3222 = vrot.slane %v3201, 7
    %v3223 = vsel %vm2476, %v3222, %v3199
    %v3224 = vrot.slane %v3203, 6
    %v3225 = vsel %vm2479, %v3224, %v3223
    %v3226 = vrot.slane %v3205, 5
    %v3227 = vsel %vm2482, %v3226, %v3225
    %v3228 = vrot.slane %v3207, 4
    %v3229 = vsel %vm2485, %v3228, %v3227
    %v3230 = vrot.slane %v3209, 3
    %v3231 = vsel %vm2488, %v3230, %v3229
    %v3232 = vrot.slane %v3211, 2
    %v3233 = vsel %vm2491, %v3232, %v3231
    %v3234 = vrot.slane %v3213, 1
    %v3235 = vsel %vm2494, %v3234, %v3233
    %v3237 = vrot.slane %v3235, 4
    %v3238 = vadd.f32 %v3235, %v3237
    %v3239 = vrot.slane %v3238, 2
    %v3240 = vadd.f32 %v3238, %v3239
    %v3241 = vrot.slane %v3240, 1
    %v3242 = vadd.f32 %v3240, %v3241
    %v3243 = vrcp.pop %v3242
    %v3244 = vlaneseq
    %v3245 = vshrl.u32 %v3244, 7
    %v3246 = vsub.s32 0, %v3245
    %v3247 = vrot.slane %v3243, %v3246
    %v3248 = vmul.f32 %v3199, %v3247
    %v3249 = vmul.f32 %v3201, %v3247
    %v3250 = vmul.f32 %v3203, %v3247
    %v3251 = vmul.f32 %v3205, %v3247
    %v3252 = vmul.f32 %v3207, %v3247
    %v3253 = vmul.f32 %v3209, %v3247
    %v3254 = vmul.f32 %v3211, %v3247
    %v3255 = vmul.f32 %v3213, %v3247
    %v3256 = vadd.f32 %v3071, %v3248
    %v3257 = vadd.f32 %v3072, %v3249
    %v3258 = vadd.f32 %v3073, %v3250
    %v3259 = vadd.f32 %v3074, %v3251
    %v3260 = vadd.f32 %v3075, %v3252
    %v3261 = vadd.f32 %v3076, %v3253
    %v3262 = vadd.f32 %v3077, %v3254
    %v3263 = vadd.f32 %v3078, %v3255
    %v3264 = vmul.f32 %v2030, %v2078
    %v3265 = vmul.f32 %v2033, %v2081
    %v3266 = vmul.f32 %v2038, %v2086
    %v3267 = vmul.f32 %v2041, %v2089
    %v3268 = vmul.f32 %v2030, %v2094
    %v3269 = vmul.f32 %v2033, %v2097
    %v3270 = vmul.f32 %v2038, %v2102
    %v3271 = vmul.f32 %v2041, %v2105
    %v3272 = vmul.f32 %v2030, %v2110
    %v3273 = vmul.f32 %v2033, %v2113
    %v3274 = vmul.f32 %v2038, %v2118
    %v3275 = vmul.f32 %v2041, %v2121
    %v3276 = vmul.f32 %v2030, %v2126
    %v3277 = vmul.f32 %v2033, %v2129
    %v3278 = vmul.f32 %v2038, %v2134
    %v3279 = vmul.f32 %v2041, %v2137
    %v3280 = vmul.f32 %v2030, %v2142
    %v3281 = vmul.f32 %v2033, %v2145
    %v3282 = vmul.f32 %v2038, %v2150
    %v3283 = vmul.f32 %v2041, %v2153
    %v3284 = vmul.f32 %v2030, %v2158
    %v3285 = vmul.f32 %v2033, %v2161
    %v3286 = vmul.f32 %v2038, %v2166
    %v3287 = vmul.f32 %v2041, %v2169
    %v3288 = vmul.f32 %v2030, %v2174
    %v3289 = vmul.f32 %v2033, %v2177
    %v3290 = vmul.f32 %v2038, %v2182
    %v3291 = vmul.f32 %v2041, %v2185
    %v3292 = vmul.f32 %v2030, %v2190
    %v3293 = vmul.f32 %v2033, %v2193
    %v3294 = vmul.f32 %v2038, %v2198
    %v3295 = vmul.f32 %v2041, %v2201
    %v3296 = vadd.f32 %v3264, %v3265
    %v3297 = vadd.f32 %v3296, %v3266
    %v3298 = vadd.f32 %v3297, %v3267
    %v3299 = vrot.slane %v3298, 4
    %v3300 = vadd.f32 %v3298, %v3299
    %v3301 = vrot.slane %v3300, 2
    %v3302 = vadd.f32 %v3300, %v3301
    %v3303 = vrot.slane %v3302, 1
    %v3304 = vadd.f32 %v3302, %v3303
    %v3305 = vadd.f32 %v3268, %v3269
    %v3306 = vadd.f32 %v3305, %v3270
    %v3307 = vadd.f32 %v3306, %v3271
    %v3308 = vrot.slane %v3307, 4
    %v3309 = vadd.f32 %v3307, %v3308
    %v3310 = vrot.slane %v3309, 2
    %v3311 = vadd.f32 %v3309, %v3310
    %v3312 = vrot.slane %v3311, 1
    %v3313 = vadd.f32 %v3311, %v3312
    %v3314 = vadd.f32 %v3272, %v3273
    %v3315 = vadd.f32 %v3314, %v3274
    %v3316 = vadd.f32 %v3315, %v3275
    %v3317 = vrot.slane %v3316, 4
    %v3318 = vadd.f32 %v3316, %v3317
    %v3319 = vrot.slane %v3318, 2
    %v3320 = vadd.f32 %v3318, %v3319
    %v3321 = vrot.slane %v3320, 1
    %v3322 = vadd.f32 %v3320, %v3321
    %v3323 = vadd.f32 %v3276, %v3277
    %v3324 = vadd.f32 %v3323, %v3278
    %v3325 = vadd.f32 %v3324, %v3279
    %v3326 = vrot.slane %v3325, 4
    %v3327 = vadd.f32 %v3325, %v3326
    %v3328 = vrot.slane %v3327, 2
    %v3329 = vadd.f32 %v3327, %v3328
    %v3330 = vrot.slane %v3329, 1
    %v3331 = vadd.f32 %v3329, %v3330
    %v3332 = vadd.f32 %v3280, %v3281
    %v3333 = vadd.f32 %v3332, %v3282
    %v3334 = vadd.f32 %v3333, %v3283
    %v3335 = vrot.slane %v3334, 4
    %v3336 = vadd.f32 %v3334, %v3335
    %v3337 = vrot.slane %v3336, 2
    %v3338 = vadd.f32 %v3336, %v3337
    %v3339 = vrot.slane %v3338, 1
    %v3340 = vadd.f32 %v3338, %v3339
    %v3341 = vadd.f32 %v3284, %v3285
    %v3342 = vadd.f32 %v3341, %v3286
    %v3343 = vadd.f32 %v3342, %v3287
    %v3344 = vrot.slane %v3343, 4
    %v3345 = vadd.f32 %v3343, %v3344
    %v3346 = vrot.slane %v3345, 2
    %v3347 = vadd.f32 %v3345, %v3346
    %v3348 = vrot.slane %v3347, 1
    %v3349 = vadd.f32 %v3347, %v3348
    %v3350 = vadd.f32 %v3288, %v3289
    %v3351 = vadd.f32 %v3350, %v3290
    %v3352 = vadd.f32 %v3351, %v3291
    %v3353 = vrot.slane %v3352, 4
    %v3354 = vadd.f32 %v3352, %v3353
    %v3355 = vrot.slane %v3354, 2
    %v3356 = vadd.f32 %v3354, %v3355
    %v3357 = vrot.slane %v3356, 1
    %v3358 = vadd.f32 %v3356, %v3357
    %v3359 = vadd.f32 %v3292, %v3293
    %v3360 = vadd.f32 %v3359, %v3294
    %v3361 = vadd.f32 %v3360, %v3295
    %v3362 = vrot.slane %v3361, 4
    %v3363 = vadd.f32 %v3361, %v3362
    %v3364 = vrot.slane %v3363, 2
    %v3365 = vadd.f32 %v3363, %v3364
    %v3366 = vrot.slane %v3365, 1
    %v3367 = vadd.f32 %v3365, %v3366
    %v3368 = vmax.f32 %v3304, %v3340
    %v3369 = vmax.f32 %v3313, %v3349
    %v3370 = vmax.f32 %v3322, %v3358
    %v3371 = vmax.f32 %v3331, %v3367
    %v3372 = vmax.f32 %v3368, %v3369
    %v3373 = vmax.f32 %v3370, %v3371
    %v3374 = vmax.f32 %v3372, %v3373
    %v3375 = vsub.f32 %v3304, %v3374
    %v3376 = vsub.f32 %v3313, %v3374
    %v3377 = vsub.f32 %v3322, %v3374
    %v3378 = vsub.f32 %v3331, %v3374
    %v3379 = vsub.f32 %v3340, %v3374
    %v3380 = vsub.f32 %v3349, %v3374
    %v3381 = vsub.f32 %v3358, %v3374
    %v3382 = vsub.f32 %v3367, %v3374
    %v3383 = vmul.f32 %v3375, 1.442695
    %v3384 = vpow.pop %v3383
    %v3385 = vmul.f32 %v3376, 1.442695
    %v3386 = vpow.pop %v3385
    %v3387 = vmul.f32 %v3377, 1.442695
    %v3388 = vpow.pop %v3387
    %v3389 = vmul.f32 %v3378, 1.442695
    %v3390 = vpow.pop %v3389
    %v3391 = vmul.f32 %v3379, 1.442695
    %v3392 = vpow.pop %v3391
    %v3393 = vmul.f32 %v3380, 1.442695
    %v3394 = vpow.pop %v3393
    %v3395 = vmul.f32 %v3381, 1.442695
    %v3396 = vpow.pop %v3395
    %v3397 = vmul.f32 %v3382, 1.442695
    %v3398 = vpow.pop %v3397
    %v3407 = vrot.slane %v3386, 7
    %v3408 = vsel %vm2476, %v3407, %v3384
    %v3409 = vrot.slane %v3388, 6
    %v3410 = vsel %vm2479, %v3409, %v3408
    %v3411 = vrot.slane %v3390, 5
    %v3412 = vsel %vm2482, %v3411, %v3410
    %v3413 = vrot.slane %v3392, 4
    %v3414 = vsel %vm2485, %v3413, %v3412
    %v3415 = vrot.slane %v3394, 3
    %v3416 = vsel %vm2488, %v3415, %v3414
    %v3417 = vrot.slane %v3396, 2
    %v3418 = vsel %vm2491, %v3417, %v3416
    %v3419 = vrot.slane %v3398, 1
    %v3420 = vsel %vm2494, %v3419, %v3418
    %v3422 = vrot.slane %v3420, 4
    %v3423 = vadd.f32 %v3420, %v3422
    %v3424 = vrot.slane %v3423, 2
    %v3425 = vadd.f32 %v3423, %v3424
    %v3426 = vrot.slane %v3425, 1
    %v3427 = vadd.f32 %v3425, %v3426
    %v3428 = vrcp.pop %v3427
    %v3429 = vlaneseq
    %v3430 = vshrl.u32 %v3429, 7
    %v3431 = vsub.s32 0, %v3430
    %v3432 = vrot.slane %v3428, %v3431
    %v3433 = vmul.f32 %v3384, %v3432
    %v3434 = vmul.f32 %v3386, %v3432
    %v3435 = vmul.f32 %v3388, %v3432
    %v3436 = vmul.f32 %v3390, %v3432
    %v3437 = vmul.f32 %v3392, %v3432
    %v3438 = vmul.f32 %v3394, %v3432
    %v3439 = vmul.f32 %v3396, %v3432
    %v3440 = vmul.f32 %v3398, %v3432
    %v3441 = vadd.f32 %v3256, %v3433
    %v3442 = vadd.f32 %v3257, %v3434
    %v3443 = vadd.f32 %v3258, %v3435
    %v3444 = vadd.f32 %v3259, %v3436
    %v3445 = vadd.f32 %v3260, %v3437
    %v3446 = vadd.f32 %v3261, %v3438
    %v3447 = vadd.f32 %v3262, %v3439
    %v3448 = vadd.f32 %v3263, %v3440
    %v3449 = vmul.f32 %v2046, %v2078
    %v3450 = vmul.f32 %v2049, %v2081
    %v3451 = vmul.f32 %v2054, %v2086
    %v3452 = vmul.f32 %v2057, %v2089
    %v3453 = vmul.f32 %v2046, %v2094
    %v3454 = vmul.f32 %v2049, %v2097
    %v3455 = vmul.f32 %v2054, %v2102
    %v3456 = vmul.f32 %v2057, %v2105
    %v3457 = vmul.f32 %v2046, %v2110
    %v3458 = vmul.f32 %v2049, %v2113
    %v3459 = vmul.f32 %v2054, %v2118
    %v3460 = vmul.f32 %v2057, %v2121
    %v3461 = vmul.f32 %v2046, %v2126
    %v3462 = vmul.f32 %v2049, %v2129
    %v3463 = vmul.f32 %v2054, %v2134
    %v3464 = vmul.f32 %v2057, %v2137
    %v3465 = vmul.f32 %v2046, %v2142
    %v3466 = vmul.f32 %v2049, %v2145
    %v3467 = vmul.f32 %v2054, %v2150
    %v3468 = vmul.f32 %v2057, %v2153
    %v3469 = vmul.f32 %v2046, %v2158
    %v3470 = vmul.f32 %v2049, %v2161
    %v3471 = vmul.f32 %v2054, %v2166
    %v3472 = vmul.f32 %v2057, %v2169
    %v3473 = vmul.f32 %v2046, %v2174
    %v3474 = vmul.f32 %v2049, %v2177
    %v3475 = vmul.f32 %v2054, %v2182
    %v3476 = vmul.f32 %v2057, %v2185
    %v3477 = vmul.f32 %v2046, %v2190
    %v3478 = vmul.f32 %v2049, %v2193
    %v3479 = vmul.f32 %v2054, %v2198
    %v3480 = vmul.f32 %v2057, %v2201
    %v3481 = vadd.f32 %v3449, %v3450
    %v3482 = vadd.f32 %v3481, %v3451
    %v3483 = vadd.f32 %v3482, %v3452
    %v3484 = vrot.slane %v3483, 4
    %v3485 = vadd.f32 %v3483, %v3484
    %v3486 = vrot.slane %v3485, 2
    %v3487 = vadd.f32 %v3485, %v3486
    %v3488 = vrot.slane %v3487, 1
    %v3489 = vadd.f32 %v3487, %v3488
    %v3490 = vadd.f32 %v3453, %v3454
    %v3491 = vadd.f32 %v3490, %v3455
    %v3492 = vadd.f32 %v3491, %v3456
    %v3493 = vrot.slane %v3492, 4
    %v3494 = vadd.f32 %v3492, %v3493
    %v3495 = vrot.slane %v3494, 2
    %v3496 = vadd.f32 %v3494, %v3495
    %v3497 = vrot.slane %v3496, 1
    %v3498 = vadd.f32 %v3496, %v3497
    %v3499 = vadd.f32 %v3457, %v3458
    %v3500 = vadd.f32 %v3499, %v3459
    %v3501 = vadd.f32 %v3500, %v3460
    %v3502 = vrot.slane %v3501, 4
    %v3503 = vadd.f32 %v3501, %v3502
    %v3504 = vrot.slane %v3503, 2
    %v3505 = vadd.f32 %v3503, %v3504
    %v3506 = vrot.slane %v3505, 1
    %v3507 = vadd.f32 %v3505, %v3506
    %v3508 = vadd.f32 %v3461, %v3462
    %v3509 = vadd.f32 %v3508, %v3463
    %v3510 = vadd.f32 %v3509, %v3464
    %v3511 = vrot.slane %v3510, 4
    %v3512 = vadd.f32 %v3510, %v3511
    %v3513 = vrot.slane %v3512, 2
    %v3514 = vadd.f32 %v3512, %v3513
    %v3515 = vrot.slane %v3514, 1
    %v3516 = vadd.f32 %v3514, %v3515
    %v3517 = vadd.f32 %v3465, %v3466
    %v3518 = vadd.f32 %v3517, %v3467
    %v3519 = vadd.f32 %v3518, %v3468
    %v3520 = vrot.slane %v3519, 4
    %v3521 = vadd.f32 %v3519, %v3520
    %v3522 = vrot.slane %v3521, 2
    %v3523 = vadd.f32 %v3521, %v3522
    %v3524 = vrot.slane %v3523, 1
    %v3525 = vadd.f32 %v3523, %v3524
    %v3526 = vadd.f32 %v3469, %v3470
    %v3527 = vadd.f32 %v3526, %v3471
    %v3528 = vadd.f32 %v3527, %v3472
    %v3529 = vrot.slane %v3528, 4
    %v3530 = vadd.f32 %v3528, %v3529
    %v3531 = vrot.slane %v3530, 2
    %v3532 = vadd.f32 %v3530, %v3531
    %v3533 = vrot.slane %v3532, 1
    %v3534 = vadd.f32 %v3532, %v3533
    %v3535 = vadd.f32 %v3473, %v3474
    %v3536 = vadd.f32 %v3535, %v3475
    %v3537 = vadd.f32 %v3536, %v3476
    %v3538 = vrot.slane %v3537, 4
    %v3539 = vadd.f32 %v3537, %v3538
    %v3540 = vrot.slane %v3539, 2
    %v3541 = vadd.f32 %v3539, %v3540
    %v3542 = vrot.slane %v3541, 1
    %v3543 = vadd.f32 %v3541, %v3542
    %v3544 = vadd.f32 %v3477, %v3478
    %v3545 = vadd.f32 %v3544, %v3479
    %v3546 = vadd.f32 %v3545, %v3480
    %v3547 = vrot.slane %v3546, 4
    %v3548 = vadd.f32 %v3546, %v3547
    %v3549 = vrot.slane %v3548, 2
    %v3550 = vadd.f32 %v3548, %v3549
    %v3551 = vrot.slane %v3550, 1
    %v3552 = vadd.f32 %v3550, %v3551
    %v3553 = vmax.f32 %v3489, %v3525
    %v3554 = vmax.f32 %v3498, %v3534
    %v3555 = vmax.f32 %v3507, %v3543
    %v3556 = vmax.f32 %v3516, %v3552
    %v3557 = vmax.f32 %v3553, %v3554
    %v3558 = vmax.f32 %v3555, %v3556
    %v3559 = vmax.f32 %v3557, %v3558
    %v3560 = vsub.f32 %v3489, %v3559
    %v3561 = vsub.f32 %v3498, %v3559
    %v3562 = vsub.f32 %v3507, %v3559
    %v3563 = vsub.f32 %v3516, %v3559
    %v3564 = vsub.f32 %v3525, %v3559
    %v3565 = vsub.f32 %v3534, %v3559
    %v3566 = vsub.f32 %v3543, %v3559
    %v3567 = vsub.f32 %v3552, %v3559
    %v3568 = vmul.f32 %v3560, 1.442695
    %v3569 = vpow.pop %v3568
    %v3570 = vmul.f32 %v3561, 1.442695
    %v3571 = vpow.pop %v3570
    %v3572 = vmul.f32 %v3562, 1.442695
    %v3573 = vpow.pop %v3572
    %v3574 = vmul.f32 %v3563, 1.442695
    %v3575 = vpow.pop %v3574
    %v3576 = vmul.f32 %v3564, 1.442695
    %v3577 = vpow.pop %v3576
    %v3578 = vmul.f32 %v3565, 1.442695
    %v3579 = vpow.pop %v3578
    %v3580 = vmul.f32 %v3566, 1.442695
    %v3581 = vpow.pop %v3580
    %v3582 = vmul.f32 %v3567, 1.442695
    %v3583 = vpow.pop %v3582
    %v3592 = vrot.slane %v3571, 7
    %v3593 = vsel %vm2476, %v3592, %v3569
    %v3594 = vrot.slane %v3573, 6
    %v3595 = vsel %vm2479, %v3594, %v3593
    %v3596 = vrot.slane %v3575, 5
    %v3597 = vsel %vm2482, %v3596, %v3595
    %v3598 = vrot.slane %v3577, 4
    %v3599 = vsel %vm2485, %v3598, %v3597
    %v3600 = vrot.slane %v3579, 3
    %v3601 = vsel %vm2488, %v3600, %v3599
    %v3602 = vrot.slane %v3581, 2
    %v3603 = vsel %vm2491, %v3602, %v3601
    %v3604 = vrot.slane %v3583, 1
    %v3605 = vsel %vm2494, %v3604, %v3603
    %v3607 = vrot.slane %v3605, 4
    %v3608 = vadd.f32 %v3605, %v3607
    %v3609 = vrot.slane %v3608, 2
    %v3610 = vadd.f32 %v3608, %v3609
    %v3611 = vrot.slane %v3610, 1
    %v3612 = vadd.f32 %v3610, %v3611
    %v3613 = vrcp.pop %v3612
    %v3614 = vlaneseq
    %v3615 = vshrl.u32 %v3614, 7
    %v3616 = vsub.s32 0, %v3615
    %v3617 = vrot.slane %v3613, %v3616
    %v3618 = vmul.f32 %v3569, %v3617
    %v3619 = vmul.f32 %v3571, %v3617
    %v3620 = vmul.f32 %v3573, %v3617
    %v3621 = vmul.f32 %v3575, %v3617
    %v3622 = vmul.f32 %v3577, %v3617
    %v3623 = vmul.f32 %v3579, %v3617
    %v3624 = vmul.f32 %v3581, %v3617
    %v3625 = vmul.f32 %v3583, %v3617
    %v3626 = vadd.f32 %v3441, %v3618
    %v3627 = vadd.f32 %v3442, %v3619
    %v3628 = vadd.f32 %v3443, %v3620
    %v3629 = vadd.f32 %v3444, %v3621
    %v3630 = vadd.f32 %v3445, %v3622
    %v3631 = vadd.f32 %v3446, %v3623
    %v3632 = vadd.f32 %v3447, %v3624
    %v3633 = vadd.f32 %v3448, %v3625
    %v3634 = vmul.f32 %v2062, %v2078
    %v3635 = vmul.f32 %v2065, %v2081
    %v3636 = vmul.f32 %v2070, %v2086
    %v3637 = vmul.f32 %v2073, %v2089
    %v3638 = vmul.f32 %v2062, %v2094
    %v3639 = vmul.f32 %v2065, %v2097
    %v3640 = vmul.f32 %v2070, %v2102
    %v3641 = vmul.f32 %v2073, %v2105
    %v3642 = vmul.f32 %v2062, %v2110
    %v3643 = vmul.f32 %v2065, %v2113
    %v3644 = vmul.f32 %v2070, %v2118
    %v3645 = vmul.f32 %v2073, %v2121
    %v3646 = vmul.f32 %v2062, %v2126
    %v3647 = vmul.f32 %v2065, %v2129
    %v3648 = vmul.f32 %v2070, %v2134
    %v3649 = vmul.f32 %v2073, %v2137
    %v3650 = vmul.f32 %v2062, %v2142
    %v3651 = vmul.f32 %v2065, %v2145
    %v3652 = vmul.f32 %v2070, %v2150
    %v3653 = vmul.f32 %v2073, %v2153
    %v3654 = vmul.f32 %v2062, %v2158
    %v3655 = vmul.f32 %v2065, %v2161
    %v3656 = vmul.f32 %v2070, %v2166
    %v3657 = vmul.f32 %v2073, %v2169
    %v3658 = vmul.f32 %v2062, %v2174
    %v3659 = vmul.f32 %v2065, %v2177
    %v3660 = vmul.f32 %v2070, %v2182
    %v3661 = vmul.f32 %v2073, %v2185
    %v3662 = vmul.f32 %v2062, %v2190
    %v3663 = vmul.f32 %v2065, %v2193
    %v3664 = vmul.f32 %v2070, %v2198
    %v3665 = vmul.f32 %v2073, %v2201
    %v3666 = vadd.f32 %v3634, %v3635
    %v3667 = vadd.f32 %v3666, %v3636
    %v3668 = vadd.f32 %v3667, %v3637
    %v3669 = vrot.slane %v3668, 4
    %v3670 = vadd.f32 %v3668, %v3669
    %v3671 = vrot.slane %v3670, 2
    %v3672 = vadd.f32 %v3670, %v3671
    %v3673 = vrot.slane %v3672, 1
    %v3674 = vadd.f32 %v3672, %v3673
    %v3675 = vadd.f32 %v3638, %v3639
    %v3676 = vadd.f32 %v3675, %v3640
    %v3677 = vadd.f32 %v3676, %v3641
    %v3678 = vrot.slane %v3677, 4
    %v3679 = vadd.f32 %v3677, %v3678
    %v3680 = vrot.slane %v3679, 2
    %v3681 = vadd.f32 %v3679, %v3680
    %v3682 = vrot.slane %v3681, 1
    %v3683 = vadd.f32 %v3681, %v3682
    %v3684 = vadd.f32 %v3642, %v3643
    %v3685 = vadd.f32 %v3684, %v3644
    %v3686 = vadd.f32 %v3685, %v3645
    %v3687 = vrot.slane %v3686, 4
    %v3688 = vadd.f32 %v3686, %v3687
    %v3689 = vrot.slane %v3688, 2
    %v3690 = vadd.f32 %v3688, %v3689
    %v3691 = vrot.slane %v3690, 1
    %v3692 = vadd.f32 %v3690, %v3691
    %v3693 = vadd.f32 %v3646, %v3647
    %v3694 = vadd.f32 %v3693, %v3648
    %v3695 = vadd.f32 %v3694, %v3649
    %v3696 = vrot.slane %v3695, 4
    %v3697 = vadd.f32 %v3695, %v3696
    %v3698 = vrot.slane %v3697, 2
    %v3699 = vadd.f32 %v3697, %v3698
    %v3700 = vrot.slane %v3699, 1
    %v3701 = vadd.f32 %v3699, %v3700
    %v3702 = vadd.f32 %v3650, %v3651
    %v3703 = vadd.f32 %v3702, %v3652
    %v3704 = vadd.f32 %v3703, %v3653
    %v3705 = vrot.slane %v3704, 4
    %v3706 = vadd.f32 %v3704, %v3705
    %v3707 = vrot.slane %v3706, 2
    %v3708 = vadd.f32 %v3706, %v3707
    %v3709 = vrot.slane %v3708, 1
    %v3710 = vadd.f32 %v3708, %v3709
    %v3711 = vadd.f32 %v3654, %v3655
    %v3712 = vadd.f32 %v3711, %v3656
    %v3713 = vadd.f32 %v3712, %v3657
    %v3714 = vrot.slane %v3713, 4
    %v3715 = vadd.f32 %v3713, %v3714
    %v3716 = vrot.slane %v3715, 2
    %v3717 = vadd.f32 %v3715, %v3716
    %v3718 = vrot.slane %v3717, 1
    %v3719 = vadd.f32 %v3717, %v3718
    %v3720 = vadd.f32 %v3658, %v3659
    %v3721 = vadd.f32 %v3720, %v3660
    %v3722 = vadd.f32 %v3721, %v3661
    %v3723 = vrot.slane %v3722, 4
    %v3724 = vadd.f32 %v3722, %v3723
    %v3725 = vrot.slane %v3724, 2
    %v3726 = vadd.f32 %v3724, %v3725
    %v3727 = vrot.slane %v3726, 1
    %v3728 = vadd.f32 %v3726, %v3727
    %v3729 = vadd.f32 %v3662, %v3663
    %v3730 = vadd.f32 %v3729, %v3664
    %v3731 = vadd.f32 %v3730, %v3665
    %v3732 = vrot.slane %v3731, 4
    %v3733 = vadd.f32 %v3731, %v3732
    %v3734 = vrot.slane %v3733, 2
    %v3735 = vadd.f32 %v3733, %v3734
    %v3736 = vrot.slane %v3735, 1
    %v3737 = vadd.f32 %v3735, %v3736
    %v3738 = vmax.f32 %v3674, %v3710
    %v3739 = vmax.f32 %v3683, %v3719
    %v3740 = vmax.f32 %v3692, %v3728
    %v3741 = vmax.f32 %v3701, %v3737
    %v3742 = vmax.f32 %v3738, %v3739
    %v3743 = vmax.f32 %v3740, %v3741
    %v3744 = vmax.f32 %v3742, %v3743
    %v3745 = vsub.f32 %v3674, %v3744
    %v3746 = vsub.f32 %v3683, %v3744
    %v3747 = vsub.f32 %v3692, %v3744
    %v3748 = vsub.f32 %v3701, %v3744
    %v3749 = vsub.f32 %v3710, %v3744
    %v3750 = vsub.f32 %v3719, %v3744
    %v3751 = vsub.f32 %v3728, %v3744
    %v3752 = vsub.f32 %v3737, %v3744
    %v3753 = vmul.f32 %v3745, 1.442695
    %v3754 = vpow.pop %v3753
    %v3755 = vmul.f32 %v3746, 1.442695
    %v3756 = vpow.pop %v3755
    %v3757 = vmul.f32 %v3747, 1.442695
    %v3758 = vpow.pop %v3757
    %v3759 = vmul.f32 %v3748, 1.442695
    %v3760 = vpow.pop %v3759
    %v3761 = vmul.f32 %v3749, 1.442695
    %v3762 = vpow.pop %v3761
    %v3763 = vmul.f32 %v3750, 1.442695
    %v3764 = vpow.pop %v3763
    %v3765 = vmul.f32 %v3751, 1.442695
    %v3766 = vpow.pop %v3765
    %v3767 = vmul.f32 %v3752, 1.442695
    %v3768 = vpow.pop %v3767
    %v3777 = vrot.slane %v3756, 7
    %v3778 = vsel %vm2476, %v3777, %v3754
    %v3779 = vrot.slane %v3758, 6
    %v3780 = vsel %vm2479, %v3779, %v3778
    %v3781 = vrot.slane %v3760, 5
    %v3782 = vsel %vm2482, %v3781, %v3780
    %v3783 = vrot.slane %v3762, 4
    %v3784 = vsel %vm2485, %v3783, %v3782
    %v3785 = vrot.slane %v3764, 3
    %v3786 = vsel %vm2488, %v3785, %v3784
    %v3787 = vrot.slane %v3766, 2
    %v3788 = vsel %vm2491, %v3787, %v3786
    %v3789 = vrot.slane %v3768, 1
    %v3790 = vsel %vm2494, %v3789, %v3788
    %v3792 = vrot.slane %v3790, 4
    %v3793 = vadd.f32 %v3790, %v3792
    %v3794 = vrot.slane %v3793, 2
    %v3795 = vadd.f32 %v3793, %v3794
    %v3796 = vrot.slane %v3795, 1
    %v3797 = vadd.f32 %v3795, %v3796
    %v3798 = vrcp.pop %v3797
    %v3799 = vlaneseq
    %v3800 = vshrl.u32 %v3799, 7
    %v3801 = vsub.s32 0, %v3800
    %v3802 = vrot.slane %v3798, %v3801
    %v3803 = vmul.f32 %v3754, %v3802
    %v3804 = vmul.f32 %v3756, %v3802
    %v3805 = vmul.f32 %v3758, %v3802
    %v3806 = vmul.f32 %v3760, %v3802
    %v3807 = vmul.f32 %v3762, %v3802
    %v3808 = vmul.f32 %v3764, %v3802
    %v3809 = vmul.f32 %v3766, %v3802
    %v3810 = vmul.f32 %v3768, %v3802
    %v3811 = vadd.f32 %v3626, %v3803
    %v3812 = vadd.f32 %v3627, %v3804
    %v3813 = vadd.f32 %v3628, %v3805
    %v3814 = vadd.f32 %v3629, %v3806
    %v3815 = vadd.f32 %v3630, %v3807
    %v3816 = vadd.f32 %v3631, %v3808
    %v3817 = vadd.f32 %v3632, %v3809
    %v3818 = vadd.f32 %v3633, %v3810
    %v3819 = vlaneseq
    %v3820 = vshrl.u32 %v3819, 7
    %v3821 = vsub.s32 0, %v3820
    %v3822 = vrot.slane %v3811, %v3821
    %v3823 = vlaneseq
    %v3824 = vshrl.u32 %v3823, 7
    %v3825 = vsub.s32 0, %v3824
    %v3826 = vrot.slane %v3812, %v3825
    %v3827 = vlaneseq
    %v3828 = vshrl.u32 %v3827, 7
    %v3829 = vsub.s32 0, %v3828
    %v3830 = vrot.slane %v3813, %v3829
    %v3831 = vlaneseq
    %v3832 = vshrl.u32 %v3831, 7
    %v3833 = vsub.s32 0, %v3832
    %v3834 = vrot.slane %v3814, %v3833
    %v3835 = vlaneseq
    %v3836 = vshrl.u32 %v3835, 7
    %v3837 = vsub.s32 0, %v3836
    %v3838 = vrot.slane %v3815, %v3837
    %v3839 = vlaneseq
    %v3840 = vshrl.u32 %v3839, 7
    %v3841 = vsub.s32 0, %v3840
    %v3842 = vrot.slane %v3816, %v3841
    %v3843 = vlaneseq
    %v3844 = vshrl.u32 %v3843, 7
    %v3845 = vsub.s32 0, %v3844
    %v3846 = vrot.slane %v3817, %v3845
    %v3847 = vlaneseq
    %v3848 = vshrl.u32 %v3847, 7
    %v3849 = vsub.s32 0, %v3848
    %v3850 = vrot.slane %v3818, %v3849
    %v3851 = vmul.f32 %v3822, %v2206
    %v3852 = vmul.f32 %v3822, %v2209
    %v3853 = vmul.f32 %v3822, %v2214
    %v3854 = vmul.f32 %v3822, %v2217
    %v3855 = vmul.f32 %v3826, %v2222
    %v3856 = vmul.f32 %v3826, %v2225
    %v3857 = vmul.f32 %v3826, %v2230
    %v3858 = vmul.f32 %v3826, %v2233
    %v3859 = vmul.f32 %v3830, %v2238
    %v3860 = vmul.f32 %v3830, %v2241
    %v3861 = vmul.f32 %v3830, %v2246
    %v3862 = vmul.f32 %v3830, %v2249
    %v3863 = vmul.f32 %v3834, %v2254
    %v3864 = vmul.f32 %v3834, %v2257
    %v3865 = vmul.f32 %v3834, %v2262
    %v3866 = vmul.f32 %v3834, %v2265
    %v3867 = vmul.f32 %v3838, %v2270
    %v3868 = vmul.f32 %v3838, %v2273
    %v3869 = vmul.f32 %v3838, %v2278
    %v3870 = vmul.f32 %v3838, %v2281
    %v3871 = vmul.f32 %v3842, %v2286
    %v3872 = vmul.f32 %v3842, %v2289
    %v3873 = vmul.f32 %v3842, %v2294
    %v3874 = vmul.f32 %v3842, %v2297
    %v3875 = vmul.f32 %v3846, %v2302
    %v3876 = vmul.f32 %v3846, %v2305
    %v3877 = vmul.f32 %v3846, %v2310
    %v3878 = vmul.f32 %v3846, %v2313
    %v3879 = vmul.f32 %v3850, %v2318
    %v3880 = vmul.f32 %v3850, %v2321
    %v3881 = vmul.f32 %v3850, %v2326
    %v3882 = vmul.f32 %v3850, %v2329
    %v3883 = vadd.f32 %v3851, %v3855
    %v3884 = vadd.f32 %v3883, %v3859
    %v3885 = vadd.f32 %v3884, %v3863
    %v3886 = vadd.f32 %v3885, %v3867
    %v3887 = vadd.f32 %v3886, %v3871
    %v3888 = vadd.f32 %v3887, %v3875
    %v3889 = vadd.f32 %v3888, %v3879
    %v3890 = vadd.f32 %v3852, %v3856
    %v3891 = vadd.f32 %v3890, %v3860
    %v3892 = vadd.f32 %v3891, %v3864
    %v3893 = vadd.f32 %v3892, %v3868
    %v3894 = vadd.f32 %v3893, %v3872
    %v3895 = vadd.f32 %v3894, %v3876
    %v3896 = vadd.f32 %v3895, %v3880
    %v3897 = vadd.f32 %v3853, %v3857
    %v3898 = vadd.f32 %v3897, %v3861
    %v3899 = vadd.f32 %v3898, %v3865
    %v3900 = vadd.f32 %v3899, %v3869
    %v3901 = vadd.f32 %v3900, %v3873
    %v3902 = vadd.f32 %v3901, %v3877
    %v3903 = vadd.f32 %v3902, %v3881
    %v3904 = vadd.f32 %v3854, %v3858
    %v3905 = vadd.f32 %v3904, %v3862
    %v3906 = vadd.f32 %v3905, %v3866
    %v3907 = vadd.f32 %v3906, %v3870
    %v3908 = vadd.f32 %v3907, %v3874
    %v3909 = vadd.f32 %v3908, %v3878
    %v3910 = vadd.f32 %v3909, %v3882
    %v3911 = vld [vmem:[%s3] sm:$0xf]
    %v3912 = vld [vmem:[%s3 + $0x4] sm:$0xf]
    %v3913 = vpack.c.bf16 %v3896, %v3889
    %v3914 = vpack.c.bf16 %v3910, %v3903
    %3916 = vset.pattern.permute.xlu0 0
    %3917 = vperm.xlu0 %3916, %v167
    %v3918 = vpop.permute.xlu0 %3917
    %3921 = vset.pattern.permute.xlu0 0
    %3922 = vperm.xlu0 %3921, %v168
    %v3923 = vpop.permute.xlu0 %3922
    %v3927 = vunpack.c.l.b16 %v3911
    %v3928 = vunpack.c.l.b16 %v3912
    %v3929 = vpack.c.b16 %v3928, %v3927
    %vm3930 = vcmask 261120
    %v3932 = vsel %vm3930, %v3929, 0
    %3934 = vmatprep.subr.bf16.mxu0 0
    %3935 = vmatpush1.bf16.msra.mxu0 0
    %3936 = vmatprep.subr.bf16.mxu0 0
    %3937 = vmatpush1.bf16.msra.mxu0 0
    %3938 = vmatprep.subr.bf16.mxu0 0
    %3939 = vmatpush1.bf16.msra.mxu0 0
    %3940 = vmatprep.subr.bf16.mxu0 0
    %3941 = vmatpush1.bf16.msra.mxu0 0
    %3942 = vmatprep.subr.bf16.mxu0 0
    %3943 = vmatpush1.bf16.msra.mxu0 0
    %3944 = vmatprep.subr.bf16.mxu0 0
    %3945 = vmatpush1.bf16.msra.mxu0 0
    %3946 = vmatprep.subr.bf16.mxu0 0
    %3947 = vmatpush1.bf16.msra.mxu0 %v3914
    %3948 = vmatprep.subr.bf16.mxu0 0
    %3949 = vmatpush1.bf16.msra.mxu0 %v3913
    %3950 = vmatprep.subr.bf16.mxu0 0
    %3951 = vmatpush2.bf16.msra.mxu0 0
    %3952 = vmatprep.subr.bf16.mxu0 0
    %3953 = vmatpush2.bf16.msra.mxu0 0
    %3954 = vmatprep.subr.bf16.mxu0 0
    %3955 = vmatpush2.bf16.msra.mxu0 0
    %3956 = vmatprep.subr.bf16.mxu0 0
    %3957 = vmatpush2.bf16.msra.mxu0 0
    %3958 = vmatprep.subr.bf16.mxu0 0
    %3959 = vmatpush2.bf16.msra.mxu0 0
    %3960 = vmatprep.subr.bf16.mxu0 0
    %3961 = vmatpush2.bf16.msra.mxu0 0
    %3962 = vmatprep.subr.bf16.mxu0 0
    %3963 = vmatpush2.bf16.msra.mxu0 0
    %3964 = vmatprep.subr.bf16.mxu0 0
    %3965 = vmatpush2.bf16.msra.mxu0 0
    %3966 = vmatprep.mubr.bf16.mxu0 0
    %3967 = vmatmul.mubr.bf16.gmra.mxu0 %v3932
    %v3968 = vpop.f32.mrf.mxu0
    %v3969 = vadd.f32 %v3918, %v3968
    %v3970 = vpop.f32.mrf.mxu0
    %v3971 = vpop.f32.mrf.mxu0
    %v3972 = vadd.f32 %v3923, %v3971
    %v3973 = vpop.f32.mrf.mxu0
    %3974 = vdwg.mxu0
    %v3975 = vmax.f32 %v3969, 0.0
    %v3976 = vmax.f32 %v3972, 0.0
    %v3977 = vld [vmem:[%s4] sm:$0xf]
    %v3978 = vpack.c.bf16 %v3976, %v3975
    %3980 = vset.pattern.permute.xlu0 0
    %3981 = vperm.xlu0 %3980, %v169
    %v3982 = vpop.permute.xlu0 %3981
    %vm3984 = vcmask 130048
    %v3986 = vsel %vm3984, %v3977, 0
    %3988 = vmatprep.subr.bf16.mxu0 0
    %3989 = vmatpush1.bf16.msra.mxu0 0
    %3990 = vmatprep.subr.bf16.mxu0 0
    %3991 = vmatpush1.bf16.msra.mxu0 0
    %3992 = vmatprep.subr.bf16.mxu0 0
    %3993 = vmatpush1.bf16.msra.mxu0 0
    %3994 = vmatprep.subr.bf16.mxu0 0
    %3995 = vmatpush1.bf16.msra.mxu0 0
    %3996 = vmatprep.subr.bf16.mxu0 0
    %3997 = vmatpush1.bf16.msra.mxu0 0
    %3998 = vmatprep.subr.bf16.mxu0 0
    %3999 = vmatpush1.bf16.msra.mxu0 0
    %4000 = vmatprep.subr.bf16.mxu0 0
    %4001 = vmatpush1.bf16.msra.mxu0 0
    %4002 = vmatprep.subr.bf16.mxu0 0
    %4003 = vmatpush1.bf16.msra.mxu0 %v3978
    %4004 = vmatprep.subr.bf16.mxu0 0
    %4005 = vmatpush2.bf16.msra.mxu0 0
    %4006 = vmatprep.subr.bf16.mxu0 0
    %4007 = vmatpush2.bf16.msra.mxu0 0
    %4008 = vmatprep.subr.bf16.mxu0 0
    %4009 = vmatpush2.bf16.msra.mxu0 0
    %4010 = vmatprep.subr.bf16.mxu0 0
    %4011 = vmatpush2.bf16.msra.mxu0 0
    %4012 = vmatprep.subr.bf16.mxu0 0
    %4013 = vmatpush2.bf16.msra.mxu0 0
    %4014 = vmatprep.subr.bf16.mxu0 0
    %4015 = vmatpush2.bf16.msra.mxu0 0
    %4016 = vmatprep.subr.bf16.mxu0 0
    %4017 = vmatpush2.bf16.msra.mxu0 0
    %4018 = vmatprep.subr.bf16.mxu0 0
    %4019 = vmatpush2.bf16.msra.mxu0 0
    %4020 = vmatprep.mubr.bf16.mxu0 0
    %4021 = vmatmul.mubr.bf16.gmra.mxu0 %v3986
    %v4022 = vpop.f32.mrf.mxu0
    %v4023 = vadd.f32 %v3982, %v4022
    %v4024 = vpop.f32.mrf.mxu0
    %v4025 = vpop.f32.mrf.mxu0
    %v4026 = vpop.f32.mrf.mxu0
    %4027 = vdwg.mxu0
    %4028 = vst [vmem:[#allocation5] sm:$0xff] %v4023
    // Predicated region
    $region30: #{tpu_custom_call.1} parent=1 // pred_check
      _
    $region31: #{tpu_custom_call.1} parent=1 // pred_check_branch
      %4030 = sbr.rel (0) target = $region33
    $region32: #{tpu_custom_call.1} parent=1 // pred_region
      %s4032 = ssub.s32 128, 128
      %4033 = vsyncadd [#allocation4], %s4032
      %s4035 = sshll.u32 [#allocation5], 4
      %s4036 = int_to_ptr.vmem [resolvable:$true] %s4035
      %4038 = dma.vmem_to_hbm [thread:$0]  %s4036, 128, %s6, [#allocation4]
    $region33: #{tpu_custom_call.1} parent=1 // pred_fallthru
      _
    // Predicated region
    $region34: #{tpu_custom_call.1} parent=1 // pred_check
      _
    $region35: #{tpu_custom_call.1} parent=1 // pred_check_branch
      %4040 = sbr.rel (0) target = $region37
    $region36: #{tpu_custom_call.1} parent=1 // pred_region
      %4041 = dma.done [#allocation4], 128
    $region37: #{tpu_custom_call.1} parent=1 // pred_fallthru
      _
    %4042 = vsyncpa [#allocation3], 1
    %4043 = vsyncpa [#allocation4], 1

</llo_original>
